<compile_context>
chip_gen: v6e
topology: v6e:2x2x1
jax: 0.10.0
libtpu: 0.0.40
codegen_flags: <defaults>
</compile_context>

<pallas_src>
import numpy as np
import jax
import jax.numpy as jnp
from jax import lax
from jax.experimental import pallas as pl
from jax.experimental.pallas import tpu as pltpu

EPS = 1e-5  # PyTorch BatchNorm default eps


# ------------------------------ Pallas kernel -------------------------------


def _bottleneck_kernel(x_ref, w1_ref, w2_ref, w3_ref, sm_ref, sp_ref,
                       rp_ref, rpt_ref, rc_ref, rct_ref,
                       g1_ref, b1_ref, g2_ref, b2_ref, g3_ref, b3_ref,
                       o_ref):
    """conv1/bn1/relu -> conv2/bn2/relu -> conv3/bn3 -> +residual -> relu."""
    HN = x_ref.shape[0]                 # H * N rows
    P = rp_ref.shape[1]                 # planes
    W = w1_ref.shape[1] // P            # spatial width
    n_pix = HN * W                      # N * H * W (static)
    inv_m = 1.0 / n_pix

    def bn(y, pool_ref, bcast_ref, g_ref, b_ref):
        # One-pass training-mode batch statistics (biased variance).
        rsum = jnp.sum(y, axis=0, keepdims=True)              # (1, W*C)
        rsumsq = jnp.sum(y * y, axis=0, keepdims=True)        # (1, W*C)
        mu = jnp.dot(rsum, pool_ref[...],
                     preferred_element_type=jnp.float32) * inv_m        # (1, C)
        ex2 = jnp.dot(rsumsq, pool_ref[...],
                      preferred_element_type=jnp.float32) * inv_m       # (1, C)
        var = jnp.maximum(ex2 - mu * mu, 0.0)
        scale_c = lax.rsqrt(var + EPS) * g_ref[...]            # (1, C)
        shift_c = b_ref[...] - mu * scale_c                    # (1, C)
        scale_l = jnp.dot(scale_c, bcast_ref[...],
                          preferred_element_type=jnp.float32)  # (1, W*C)
        shift_l = jnp.dot(shift_c, bcast_ref[...],
                          preferred_element_type=jnp.float32)  # (1, W*C)
        return y * scale_l + shift_l

    x = x_ref[...]                                             # (HN, W*Cin)

    # ---- conv1 (1x1) + bn1 + relu ----
    y1 = jnp.dot(x, w1_ref[...], preferred_element_type=jnp.float32)
    y1 = jnp.maximum(bn(y1, rp_ref, rpt_ref, g1_ref, b1_ref), 0.0)   # (HN, W*P)

    # ---- conv2 (3x3, pad 1): single fused K = 3*W*P matmul ----
    s_up = jnp.dot(sm_ref[...], y1,
                   preferred_element_type=jnp.float32)         # y1 at h-1 (0-padded)
    s_dn = jnp.dot(sp_ref[...], y1,
                   preferred_element_type=jnp.float32)         # y1 at h+1 (0-padded)
    patch = jnp.concatenate([s_up, y1, s_dn], axis=1)          # (HN, 3*W*P)
    y2 = jnp.dot(patch, w2_ref[...], preferred_element_type=jnp.float32)
    y2 = jnp.maximum(bn(y2, rp_ref, rpt_ref, g2_ref, b2_ref), 0.0)   # (HN, W*P)

    # ---- conv3 (1x1) + bn3 + residual add + relu ----
    y3 = jnp.dot(y2, w3_ref[...], preferred_element_type=jnp.float32)
    y3 = bn(y3, rc_ref, rct_ref, g3_ref, b3_ref)               # (HN, W*Cout)

    res = x_ref[...]                     # late re-read of the identity residual
    o_ref[...] = jnp.maximum(y3 + res, 0.0)


# ------------------------------ host wrapper --------------------------------


def bottleneck_forward(x_nchw, params):
    """x_nchw: [N, Cin, H, W] -> [N, Cin, H, W]  (Cin == planes * expansion)."""
    N, Cin, H, W = x_nchw.shape
    P = params["w1"].shape[1]
    Cout = params["w3"].shape[1]
    assert Cin == Cout, "identity residual requires inplanes == planes * expansion"
    HN = H * N
    f32 = jnp.float32

    # 1x1 convs as block-diagonal matmuls in the (w, channel) lane layout.
    eye_w = jnp.eye(W, dtype=f32)
    w1_blk = jnp.kron(eye_w, params["w1"].astype(f32))          # (W*Cin, W*P)
    w3_blk = jnp.kron(eye_w, params["w3"].astype(f32))          # (W*P, W*Cout)

    # 3x3 conv: w-shifts (+ zero pad at w edges) folded into a banded weight.
    k2 = params["w2"].astype(f32).reshape(3, 3, P, P)           # (kh, kw, ci, co)
    bands = []
    for kh in range(3):
        band = jnp.zeros((W * P, W * P), f32)
        for kw in range(3):
            band = band + jnp.kron(jnp.eye(W, k=-(kw - 1), dtype=f32), k2[kh, kw])
        bands.append(band)
    w2_big = jnp.concatenate(bands, axis=0)                     # (3*W*P, W*P)

    # h-shift (+ zero pad at h edges) matrices; row index r = h*N + n.
    sm = jnp.eye(HN, k=-N, dtype=f32)                           # selects y1 at h-1
    sp = jnp.eye(HN, k=N, dtype=f32)                            # selects y1 at h+1

    # BN pooling over w (per-channel stats) and broadcast back to lanes.
    rp = jnp.kron(jnp.ones((W, 1), f32), jnp.eye(P, dtype=f32))      # (W*P, P)
    rc = jnp.kron(jnp.ones((W, 1), f32), jnp.eye(Cout, dtype=f32))   # (W*Cout, Cout)

    # Lane-dense activation slab: rows = (h, n), lanes = (w, channel).
    x2d = jnp.transpose(x_nchw, (2, 0, 3, 1)).reshape(HN, W * Cin)

    def row(v):
        return v.astype(f32).reshape(1, -1)

    vmem = pl.BlockSpec(memory_space=pltpu.MemorySpace.VMEM)

    out2d = pl.pallas_call(
        _bottleneck_kernel,
        out_shape=jax.ShapeDtypeStruct((HN, W * Cout), f32),
        in_specs=[vmem] * 16,
        out_specs=vmem,
    )(x2d, w1_blk, w2_big, w3_blk, sm, sp,
      rp, rp.T, rc, rc.T,
      row(params["g1"]), row(params["b1"]),
      row(params["g2"]), row(params["b2"]),
      row(params["g3"]), row(params["b3"]))

    # (HN, W*Cout) -> (H, N, W, C) -> NCHW
    return jnp.transpose(out2d.reshape(H, N, W, Cout), (1, 3, 0, 2))


# -------------------------- deterministic params ----------------------------


def init_params(key, inplanes=32, planes=16):
    expansion = 2
    kw1, kw2, kw3, kg, kb = jax.random.split(key, 5)
    P = {
        "w1": jax.random.normal(kw1, (inplanes, planes), jnp.float32)
              / np.sqrt(inplanes),
        "w2": jax.random.normal(kw2, (9, planes, planes), jnp.float32)
              / np.sqrt(9.0 * planes),
        "w3": jax.random.normal(kw3, (planes, planes * expansion), jnp.float32)
              / np.sqrt(planes),
    }
    kgs = jax.random.split(kg, 3)
    kbs = jax.random.split(kb, 3)
    for i, c in enumerate([planes, planes, planes * expansion]):
        P[f"g{i + 1}"] = jax.random.uniform(kgs[i], (c,), jnp.float32, 0.5, 1.5)
        P[f"b{i + 1}"] = 0.1 * jax.random.normal(kbs[i], (c,), jnp.float32)
    return P


# ------------------------------ JAX reference --------------------------------


def _ref_bn(y, g, b):
    mu = jnp.mean(y, axis=(0, 1, 2), keepdims=True)
    var = jnp.mean((y - mu) ** 2, axis=(0, 1, 2), keepdims=True)
    return (y - mu) * lax.rsqrt(var + EPS) * g + b


def ref_forward(x_nchw, params):
    hi = lax.Precision.HIGHEST
    x = jnp.transpose(x_nchw, (0, 2, 3, 1))
    P = params["w1"].shape[1]

    y = jnp.einsum("nhwc,cp->nhwp", x, params["w1"], precision=hi)
    y = jnp.maximum(_ref_bn(y, params["g1"], params["b1"]), 0.0)

    w2 = params["w2"].reshape(3, 3, P, P)                       # HWIO
    y = lax.conv_general_dilated(
        y, w2, (1, 1), ((1, 1), (1, 1)),
        dimension_numbers=("NHWC", "HWIO", "NHWC"), precision=hi)
    y = jnp.maximum(_ref_bn(y, params["g2"], params["b2"]), 0.0)

    y = jnp.einsum("nhwp,pc->nhwc", y, params["w3"], precision=hi)
    y = _ref_bn(y, params["g3"], params["b3"])
    y = jnp.maximum(y + x, 0.0)
    return jnp.transpose(y, (0, 3, 1, 2))


# ---------------------------------- main -------------------------------------


if __name__ == "__main__":
    # Bottleneck(inplanes=32, planes=16, stride=1, downsample=None)
    # PyTorch-style NCHW input: batch=2, channels=32, 16x16 spatial.
    x = jax.random.normal(jax.random.PRNGKey(0), (2, 32, 16, 16), jnp.float32)
    params = init_params(jax.random.PRNGKey(1))

    out = jax.block_until_ready(jax.jit(bottleneck_forward)(x, params))
    assert out.shape == (2, 32, 16, 16), out.shape

    ref = jax.block_until_ready(ref_forward(x, params))
    np.testing.assert_allclose(np.asarray(out), np.asarray(ref),
                               atol=2e-2, rtol=2e-2)

    print("KERNEL_OK")
</pallas_src>

<mosaic_0001>
module attributes {stable_mosaic.version = 11 : i64} {
  func.func @_bottleneck_kernel(%arg0: memref<32x512xf32, #tpu.memory_space<vmem>>, %arg1: memref<512x256xf32, #tpu.memory_space<vmem>>, %arg2: memref<768x256xf32, #tpu.memory_space<vmem>>, %arg3: memref<256x512xf32, #tpu.memory_space<vmem>>, %arg4: memref<32x32xf32, #tpu.memory_space<vmem>>, %arg5: memref<32x32xf32, #tpu.memory_space<vmem>>, %arg6: memref<256x16xf32, #tpu.memory_space<vmem>>, %arg7: memref<16x256xf32, #tpu.memory_space<vmem>>, %arg8: memref<512x32xf32, #tpu.memory_space<vmem>>, %arg9: memref<32x512xf32, #tpu.memory_space<vmem>>, %arg10: memref<1x16xf32, #tpu.memory_space<vmem>>, %arg11: memref<1x16xf32, #tpu.memory_space<vmem>>, %arg12: memref<1x16xf32, #tpu.memory_space<vmem>>, %arg13: memref<1x16xf32, #tpu.memory_space<vmem>>, %arg14: memref<1x32xf32, #tpu.memory_space<vmem>>, %arg15: memref<1x32xf32, #tpu.memory_space<vmem>>, %arg16: memref<32x512xf32, #tpu.memory_space<vmem>>) attributes {dimension_semantics = [], scalar_prefetch = 0 : i64, scratch_operands = 0 : i64, tpu.core_type = #tpu.core_type<tc>} {
    %c0 = arith.constant 0 : index
    %c0_0 = arith.constant 0 : index
    %0 = vector.load %arg0[%c0, %c0_0] : memref<32x512xf32, #tpu.memory_space<vmem>>, vector<32x512xf32>
    %c0_1 = arith.constant 0 : index
    %c0_2 = arith.constant 0 : index
    %1 = vector.load %arg1[%c0_1, %c0_2] : memref<512x256xf32, #tpu.memory_space<vmem>>, vector<512x256xf32>
    %cst = arith.constant dense<0.000000e+00> : vector<32x256xf32>
    %2 = tpu.matmul %0, %1, %cst {dimension_numbers = #tpu.dot_dimension_numbers<[1], [0], [0], [1], [0, 0, 1, 1], [], []>} : vector<32x512xf32>, vector<512x256xf32>, vector<32x256xf32> -> vector<32x256xf32>
    %cst_3 = arith.constant dense<0.000000e+00> : vector<256xf32>
    %3 = vector.multi_reduction <add>, %2, %cst_3 [0] : vector<32x256xf32> to vector<256xf32>
    %4 = vector.shape_cast %3 : vector<256xf32> to vector<1x256xf32>
    %5 = arith.mulf %2, %2 : vector<32x256xf32>
    %cst_4 = arith.constant dense<0.000000e+00> : vector<256xf32>
    %6 = vector.multi_reduction <add>, %5, %cst_4 [0] : vector<32x256xf32> to vector<256xf32>
    %7 = vector.shape_cast %6 : vector<256xf32> to vector<1x256xf32>
    %c0_5 = arith.constant 0 : index
    %c0_6 = arith.constant 0 : index
    %8 = vector.load %arg6[%c0_5, %c0_6] : memref<256x16xf32, #tpu.memory_space<vmem>>, vector<256x16xf32>
    %cst_7 = arith.constant dense<0.000000e+00> : vector<1x16xf32>
    %9 = tpu.matmul %4, %8, %cst_7 {dimension_numbers = #tpu.dot_dimension_numbers<[1], [0], [0], [1], [0, 0, 1, 1], [], []>} : vector<1x256xf32>, vector<256x16xf32>, vector<1x16xf32> -> vector<1x16xf32>
    %cst_8 = arith.constant 0.001953125 : f32
    %10 = vector.broadcast %cst_8 : f32 to vector<1x16xf32>
    %11 = arith.mulf %9, %10 : vector<1x16xf32>
    %c0_9 = arith.constant 0 : index
    %c0_10 = arith.constant 0 : index
    %12 = vector.load %arg6[%c0_9, %c0_10] : memref<256x16xf32, #tpu.memory_space<vmem>>, vector<256x16xf32>
    %cst_11 = arith.constant dense<0.000000e+00> : vector<1x16xf32>
    %13 = tpu.matmul %7, %12, %cst_11 {dimension_numbers = #tpu.dot_dimension_numbers<[1], [0], [0], [1], [0, 0, 1, 1], [], []>} : vector<1x256xf32>, vector<256x16xf32>, vector<1x16xf32> -> vector<1x16xf32>
    %cst_12 = arith.constant 0.001953125 : f32
    %14 = vector.broadcast %cst_12 : f32 to vector<1x16xf32>
    %15 = arith.mulf %13, %14 : vector<1x16xf32>
    %16 = arith.mulf %11, %11 : vector<1x16xf32>
    %17 = arith.subf %15, %16 : vector<1x16xf32>
    %cst_13 = arith.constant 0.000000e+00 : f32
    %18 = vector.broadcast %cst_13 : f32 to vector<1x16xf32>
    %19 = arith.maximumf %17, %18 : vector<1x16xf32>
    %cst_14 = arith.constant 9.99999974E-6 : f32
    %20 = vector.broadcast %cst_14 : f32 to vector<1x16xf32>
    %21 = arith.addf %19, %20 : vector<1x16xf32>
    %22 = math.rsqrt %21 : vector<1x16xf32>
    %c0_15 = arith.constant 0 : index
    %c0_16 = arith.constant 0 : index
    %23 = vector.load %arg10[%c0_15, %c0_16] : memref<1x16xf32, #tpu.memory_space<vmem>>, vector<1x16xf32>
    %24 = arith.mulf %22, %23 : vector<1x16xf32>
    %c0_17 = arith.constant 0 : index
    %c0_18 = arith.constant 0 : index
    %25 = vector.load %arg11[%c0_17, %c0_18] : memref<1x16xf32, #tpu.memory_space<vmem>>, vector<1x16xf32>
    %26 = arith.mulf %11, %24 : vector<1x16xf32>
    %27 = arith.subf %25, %26 : vector<1x16xf32>
    %c0_19 = arith.constant 0 : index
    %c0_20 = arith.constant 0 : index
    %28 = vector.load %arg7[%c0_19, %c0_20] : memref<16x256xf32, #tpu.memory_space<vmem>>, vector<16x256xf32>
    %cst_21 = arith.constant dense<0.000000e+00> : vector<1x256xf32>
    %29 = tpu.matmul %24, %28, %cst_21 {dimension_numbers = #tpu.dot_dimension_numbers<[1], [0], [0], [1], [0, 0, 1, 1], [], []>} : vector<1x16xf32>, vector<16x256xf32>, vector<1x256xf32> -> vector<1x256xf32>
    %c0_22 = arith.constant 0 : index
    %c0_23 = arith.constant 0 : index
    %30 = vector.load %arg7[%c0_22, %c0_23] : memref<16x256xf32, #tpu.memory_space<vmem>>, vector<16x256xf32>
    %cst_24 = arith.constant dense<0.000000e+00> : vector<1x256xf32>
    %31 = tpu.matmul %27, %30, %cst_24 {dimension_numbers = #tpu.dot_dimension_numbers<[1], [0], [0], [1], [0, 0, 1, 1], [], []>} : vector<1x16xf32>, vector<16x256xf32>, vector<1x256xf32> -> vector<1x256xf32>
    %32 = vector.broadcast %29 : vector<1x256xf32> to vector<32x256xf32>
    %33 = arith.mulf %2, %32 : vector<32x256xf32>
    %34 = vector.broadcast %31 : vector<1x256xf32> to vector<32x256xf32>
    %35 = arith.addf %33, %34 : vector<32x256xf32>
    %cst_25 = arith.constant 0.000000e+00 : f32
    %36 = vector.broadcast %cst_25 : f32 to vector<32x256xf32>
    %37 = arith.maximumf %35, %36 : vector<32x256xf32>
    %c0_26 = arith.constant 0 : index
    %c0_27 = arith.constant 0 : index
    %38 = vector.load %arg4[%c0_26, %c0_27] : memref<32x32xf32, #tpu.memory_space<vmem>>, vector<32x32xf32>
    %cst_28 = arith.constant dense<0.000000e+00> : vector<32x256xf32>
    %39 = tpu.matmul %38, %37, %cst_28 {dimension_numbers = #tpu.dot_dimension_numbers<[1], [0], [0], [1], [0, 0, 1, 1], [], []>} : vector<32x32xf32>, vector<32x256xf32>, vector<32x256xf32> -> vector<32x256xf32>
    %c0_29 = arith.constant 0 : index
    %c0_30 = arith.constant 0 : index
    %40 = vector.load %arg5[%c0_29, %c0_30] : memref<32x32xf32, #tpu.memory_space<vmem>>, vector<32x32xf32>
    %cst_31 = arith.constant dense<0.000000e+00> : vector<32x256xf32>
    %41 = tpu.matmul %40, %37, %cst_31 {dimension_numbers = #tpu.dot_dimension_numbers<[1], [0], [0], [1], [0, 0, 1, 1], [], []>} : vector<32x32xf32>, vector<32x256xf32>, vector<32x256xf32> -> vector<32x256xf32>
    %42 = tpu.concatenate %39, %37, %41 in 1 : vector<32x256xf32>, vector<32x256xf32>, vector<32x256xf32> -> vector<32x768xf32>
    %c0_32 = arith.constant 0 : index
    %c0_33 = arith.constant 0 : index
    %43 = vector.load %arg2[%c0_32, %c0_33] : memref<768x256xf32, #tpu.memory_space<vmem>>, vector<768x256xf32>
    %cst_34 = arith.constant dense<0.000000e+00> : vector<32x256xf32>
    %44 = tpu.matmul %42, %43, %cst_34 {dimension_numbers = #tpu.dot_dimension_numbers<[1], [0], [0], [1], [0, 0, 1, 1], [], []>} : vector<32x768xf32>, vector<768x256xf32>, vector<32x256xf32> -> vector<32x256xf32>
    %cst_35 = arith.constant dense<0.000000e+00> : vector<256xf32>
    %45 = vector.multi_reduction <add>, %44, %cst_35 [0] : vector<32x256xf32> to vector<256xf32>
    %46 = vector.shape_cast %45 : vector<256xf32> to vector<1x256xf32>
    %47 = arith.mulf %44, %44 : vector<32x256xf32>
    %cst_36 = arith.constant dense<0.000000e+00> : vector<256xf32>
    %48 = vector.multi_reduction <add>, %47, %cst_36 [0] : vector<32x256xf32> to vector<256xf32>
    %49 = vector.shape_cast %48 : vector<256xf32> to vector<1x256xf32>
    %c0_37 = arith.constant 0 : index
    %c0_38 = arith.constant 0 : index
    %50 = vector.load %arg6[%c0_37, %c0_38] : memref<256x16xf32, #tpu.memory_space<vmem>>, vector<256x16xf32>
    %cst_39 = arith.constant dense<0.000000e+00> : vector<1x16xf32>
    %51 = tpu.matmul %46, %50, %cst_39 {dimension_numbers = #tpu.dot_dimension_numbers<[1], [0], [0], [1], [0, 0, 1, 1], [], []>} : vector<1x256xf32>, vector<256x16xf32>, vector<1x16xf32> -> vector<1x16xf32>
    %cst_40 = arith.constant 0.001953125 : f32
    %52 = vector.broadcast %cst_40 : f32 to vector<1x16xf32>
    %53 = arith.mulf %51, %52 : vector<1x16xf32>
    %c0_41 = arith.constant 0 : index
    %c0_42 = arith.constant 0 : index
    %54 = vector.load %arg6[%c0_41, %c0_42] : memref<256x16xf32, #tpu.memory_space<vmem>>, vector<256x16xf32>
    %cst_43 = arith.constant dense<0.000000e+00> : vector<1x16xf32>
    %55 = tpu.matmul %49, %54, %cst_43 {dimension_numbers = #tpu.dot_dimension_numbers<[1], [0], [0], [1], [0, 0, 1, 1], [], []>} : vector<1x256xf32>, vector<256x16xf32>, vector<1x16xf32> -> vector<1x16xf32>
    %cst_44 = arith.constant 0.001953125 : f32
    %56 = vector.broadcast %cst_44 : f32 to vector<1x16xf32>
    %57 = arith.mulf %55, %56 : vector<1x16xf32>
    %58 = arith.mulf %53, %53 : vector<1x16xf32>
    %59 = arith.subf %57, %58 : vector<1x16xf32>
    %cst_45 = arith.constant 0.000000e+00 : f32
    %60 = vector.broadcast %cst_45 : f32 to vector<1x16xf32>
    %61 = arith.maximumf %59, %60 : vector<1x16xf32>
    %cst_46 = arith.constant 9.99999974E-6 : f32
    %62 = vector.broadcast %cst_46 : f32 to vector<1x16xf32>
    %63 = arith.addf %61, %62 : vector<1x16xf32>
    %64 = math.rsqrt %63 : vector<1x16xf32>
    %c0_47 = arith.constant 0 : index
    %c0_48 = arith.constant 0 : index
    %65 = vector.load %arg12[%c0_47, %c0_48] : memref<1x16xf32, #tpu.memory_space<vmem>>, vector<1x16xf32>
    %66 = arith.mulf %64, %65 : vector<1x16xf32>
    %c0_49 = arith.constant 0 : index
    %c0_50 = arith.constant 0 : index
    %67 = vector.load %arg13[%c0_49, %c0_50] : memref<1x16xf32, #tpu.memory_space<vmem>>, vector<1x16xf32>
    %68 = arith.mulf %53, %66 : vector<1x16xf32>
    %69 = arith.subf %67, %68 : vector<1x16xf32>
    %c0_51 = arith.constant 0 : index
    %c0_52 = arith.constant 0 : index
    %70 = vector.load %arg7[%c0_51, %c0_52] : memref<16x256xf32, #tpu.memory_space<vmem>>, vector<16x256xf32>
    %cst_53 = arith.constant dense<0.000000e+00> : vector<1x256xf32>
    %71 = tpu.matmul %66, %70, %cst_53 {dimension_numbers = #tpu.dot_dimension_numbers<[1], [0], [0], [1], [0, 0, 1, 1], [], []>} : vector<1x16xf32>, vector<16x256xf32>, vector<1x256xf32> -> vector<1x256xf32>
    %c0_54 = arith.constant 0 : index
    %c0_55 = arith.constant 0 : index
    %72 = vector.load %arg7[%c0_54, %c0_55] : memref<16x256xf32, #tpu.memory_space<vmem>>, vector<16x256xf32>
    %cst_56 = arith.constant dense<0.000000e+00> : vector<1x256xf32>
    %73 = tpu.matmul %69, %72, %cst_56 {dimension_numbers = #tpu.dot_dimension_numbers<[1], [0], [0], [1], [0, 0, 1, 1], [], []>} : vector<1x16xf32>, vector<16x256xf32>, vector<1x256xf32> -> vector<1x256xf32>
    %74 = vector.broadcast %71 : vector<1x256xf32> to vector<32x256xf32>
    %75 = arith.mulf %44, %74 : vector<32x256xf32>
    %76 = vector.broadcast %73 : vector<1x256xf32> to vector<32x256xf32>
    %77 = arith.addf %75, %76 : vector<32x256xf32>
    %cst_57 = arith.constant 0.000000e+00 : f32
    %78 = vector.broadcast %cst_57 : f32 to vector<32x256xf32>
    %79 = arith.maximumf %77, %78 : vector<32x256xf32>
    %c0_58 = arith.constant 0 : index
    %c0_59 = arith.constant 0 : index
    %80 = vector.load %arg3[%c0_58, %c0_59] : memref<256x512xf32, #tpu.memory_space<vmem>>, vector<256x512xf32>
    %cst_60 = arith.constant dense<0.000000e+00> : vector<32x512xf32>
    %81 = tpu.matmul %79, %80, %cst_60 {dimension_numbers = #tpu.dot_dimension_numbers<[1], [0], [0], [1], [0, 0, 1, 1], [], []>} : vector<32x256xf32>, vector<256x512xf32>, vector<32x512xf32> -> vector<32x512xf32>
    %cst_61 = arith.constant dense<0.000000e+00> : vector<512xf32>
    %82 = vector.multi_reduction <add>, %81, %cst_61 [0] : vector<32x512xf32> to vector<512xf32>
    %83 = vector.shape_cast %82 : vector<512xf32> to vector<1x512xf32>
    %84 = arith.mulf %81, %81 : vector<32x512xf32>
    %cst_62 = arith.constant dense<0.000000e+00> : vector<512xf32>
    %85 = vector.multi_reduction <add>, %84, %cst_62 [0] : vector<32x512xf32> to vector<512xf32>
    %86 = vector.shape_cast %85 : vector<512xf32> to vector<1x512xf32>
    %c0_63 = arith.constant 0 : index
    %c0_64 = arith.constant 0 : index
    %87 = vector.load %arg8[%c0_63, %c0_64] : memref<512x32xf32, #tpu.memory_space<vmem>>, vector<512x32xf32>
    %cst_65 = arith.constant dense<0.000000e+00> : vector<1x32xf32>
    %88 = tpu.matmul %83, %87, %cst_65 {dimension_numbers = #tpu.dot_dimension_numbers<[1], [0], [0], [1], [0, 0, 1, 1], [], []>} : vector<1x512xf32>, vector<512x32xf32>, vector<1x32xf32> -> vector<1x32xf32>
    %cst_66 = arith.constant 0.001953125 : f32
    %89 = vector.broadcast %cst_66 : f32 to vector<1x32xf32>
    %90 = arith.mulf %88, %89 : vector<1x32xf32>
    %c0_67 = arith.constant 0 : index
    %c0_68 = arith.constant 0 : index
    %91 = vector.load %arg8[%c0_67, %c0_68] : memref<512x32xf32, #tpu.memory_space<vmem>>, vector<512x32xf32>
    %cst_69 = arith.constant dense<0.000000e+00> : vector<1x32xf32>
    %92 = tpu.matmul %86, %91, %cst_69 {dimension_numbers = #tpu.dot_dimension_numbers<[1], [0], [0], [1], [0, 0, 1, 1], [], []>} : vector<1x512xf32>, vector<512x32xf32>, vector<1x32xf32> -> vector<1x32xf32>
    %cst_70 = arith.constant 0.001953125 : f32
    %93 = vector.broadcast %cst_70 : f32 to vector<1x32xf32>
    %94 = arith.mulf %92, %93 : vector<1x32xf32>
    %95 = arith.mulf %90, %90 : vector<1x32xf32>
    %96 = arith.subf %94, %95 : vector<1x32xf32>
    %cst_71 = arith.constant 0.000000e+00 : f32
    %97 = vector.broadcast %cst_71 : f32 to vector<1x32xf32>
    %98 = arith.maximumf %96, %97 : vector<1x32xf32>
    %cst_72 = arith.constant 9.99999974E-6 : f32
    %99 = vector.broadcast %cst_72 : f32 to vector<1x32xf32>
    %100 = arith.addf %98, %99 : vector<1x32xf32>
    %101 = math.rsqrt %100 : vector<1x32xf32>
    %c0_73 = arith.constant 0 : index
    %c0_74 = arith.constant 0 : index
    %102 = vector.load %arg14[%c0_73, %c0_74] : memref<1x32xf32, #tpu.memory_space<vmem>>, vector<1x32xf32>
    %103 = arith.mulf %101, %102 : vector<1x32xf32>
    %c0_75 = arith.constant 0 : index
    %c0_76 = arith.constant 0 : index
    %104 = vector.load %arg15[%c0_75, %c0_76] : memref<1x32xf32, #tpu.memory_space<vmem>>, vector<1x32xf32>
    %105 = arith.mulf %90, %103 : vector<1x32xf32>
    %106 = arith.subf %104, %105 : vector<1x32xf32>
    %c0_77 = arith.constant 0 : index
    %c0_78 = arith.constant 0 : index
    %107 = vector.load %arg9[%c0_77, %c0_78] : memref<32x512xf32, #tpu.memory_space<vmem>>, vector<32x512xf32>
    %cst_79 = arith.constant dense<0.000000e+00> : vector<1x512xf32>
    %108 = tpu.matmul %103, %107, %cst_79 {dimension_numbers = #tpu.dot_dimension_numbers<[1], [0], [0], [1], [0, 0, 1, 1], [], []>} : vector<1x32xf32>, vector<32x512xf32>, vector<1x512xf32> -> vector<1x512xf32>
    %c0_80 = arith.constant 0 : index
    %c0_81 = arith.constant 0 : index
    %109 = vector.load %arg9[%c0_80, %c0_81] : memref<32x512xf32, #tpu.memory_space<vmem>>, vector<32x512xf32>
    %cst_82 = arith.constant dense<0.000000e+00> : vector<1x512xf32>
    %110 = tpu.matmul %106, %109, %cst_82 {dimension_numbers = #tpu.dot_dimension_numbers<[1], [0], [0], [1], [0, 0, 1, 1], [], []>} : vector<1x32xf32>, vector<32x512xf32>, vector<1x512xf32> -> vector<1x512xf32>
    %111 = vector.broadcast %108 : vector<1x512xf32> to vector<32x512xf32>
    %112 = arith.mulf %81, %111 : vector<32x512xf32>
    %113 = vector.broadcast %110 : vector<1x512xf32> to vector<32x512xf32>
    %114 = arith.addf %112, %113 : vector<32x512xf32>
    %c0_83 = arith.constant 0 : index
    %c0_84 = arith.constant 0 : index
    %115 = vector.load %arg0[%c0_83, %c0_84] : memref<32x512xf32, #tpu.memory_space<vmem>>, vector<32x512xf32>
    %116 = arith.addf %114, %115 : vector<32x512xf32>
    %cst_85 = arith.constant 0.000000e+00 : f32
    %117 = vector.broadcast %cst_85 : f32 to vector<32x512xf32>
    %118 = arith.maximumf %116, %117 : vector<32x512xf32>
    %c0_86 = arith.constant 0 : index
    %c0_87 = arith.constant 0 : index
    %119 = vector.load %arg16[%c0_86, %c0_87] : memref<32x512xf32, #tpu.memory_space<vmem>>, vector<32x512xf32>
    tpu.vector_store %arg16[%c0_86, %c0_87], %118 {strides = array<i32>} : memref<32x512xf32, #tpu.memory_space<vmem>>, vector<32x512xf32>,
    return
  }
}

</mosaic_0001>

<llo_original>
// kernel: bottleneck_forward.1
$region0: #{bottleneck_forward.1}
  #allocation0 [shape = 'u32[]', space=smem, size = 0x4, offset = 0x4, fixed_abs, tag = 'smem constant byte address 0x4 - core index']
  #allocation1 [shape = 'u32[144,128]{1,0:T(1,128)}', space=vmem, size = 0x12000, scoped, tag = 'internal scratch']
  %s0 = inlined_call_operand.vmem [shape: f32[32,512], index: 0, kind: input, shape index: {}]
  %s1 = inlined_call_operand.vmem [shape: f32[512,256], index: 1, kind: input, shape index: {}]
  %s2 = inlined_call_operand.vmem [shape: f32[768,256], index: 2, kind: input, shape index: {}]
  %s3 = inlined_call_operand.vmem [shape: f32[256,512], index: 3, kind: input, shape index: {}]
  %s4 = inlined_call_operand.vmem [shape: f32[32,32], index: 4, kind: input, shape index: {}]
  %s5 = inlined_call_operand.vmem [shape: f32[32,32], index: 5, kind: input, shape index: {}]
  %s6 = inlined_call_operand.vmem [shape: f32[256,16], index: 6, kind: input, shape index: {}]
  %s7 = inlined_call_operand.vmem [shape: f32[16,256], index: 7, kind: input, shape index: {}]
  %s8 = inlined_call_operand.vmem [shape: f32[512,32], index: 8, kind: input, shape index: {}]
  %s9 = inlined_call_operand.vmem [shape: f32[32,512], index: 9, kind: input, shape index: {}]
  %s10 = inlined_call_operand.vmem [shape: f32[1,16], index: 10, kind: input, shape index: {}]
  %s11 = inlined_call_operand.vmem [shape: f32[1,16], index: 11, kind: input, shape index: {}]
  %s12 = inlined_call_operand.vmem [shape: f32[1,16], index: 12, kind: input, shape index: {}]
  %s13 = inlined_call_operand.vmem [shape: f32[1,16], index: 13, kind: input, shape index: {}]
  %s14 = inlined_call_operand.vmem [shape: f32[1,32], index: 14, kind: input, shape index: {}]
  %s15 = inlined_call_operand.vmem [shape: f32[1,32], index: 15, kind: input, shape index: {}]
  %s16 = inlined_call_operand.vmem [shape: f32[32,512], index: 16, kind: output, shape index: {}]
  %s17 = sld [smem:[#allocation0]]
  $region74: #{bottleneck_forward.1} parent=0
    _
  %s19 = ssub.s32 1, %s17
  %s20 = scalar_select 0, %s19, %s17
  // Predicated region
  $region2: #{bottleneck_forward.1} parent=0 // pred_check
    _
  $region3: #{bottleneck_forward.1} parent=0 // pred_check_branch
    %22 = sbr.rel (0) target = $region5
  $region4: #{bottleneck_forward.1} parent=0 // pred_region
    _
  $region5: #{bottleneck_forward.1} parent=0 // pred_fallthru
    _
  // Predicated region
  $region6: #{bottleneck_forward.1} parent=0 // pred_check
    _
  $region7: #{bottleneck_forward.1} parent=0 // pred_check_branch
    %24 = sbr.rel (0) target = $region9
  $region8: #{bottleneck_forward.1} parent=0 // pred_region
    _
  $region9: #{bottleneck_forward.1} parent=0 // pred_fallthru
    _
  // Predicated region
  $region10: #{bottleneck_forward.1} parent=0 // pred_check
    _
  $region11: #{bottleneck_forward.1} parent=0 // pred_check_branch
    %26 = sbr.rel (0) target = $region13
  $region12: #{bottleneck_forward.1} parent=0 // pred_region
    _
  $region13: #{bottleneck_forward.1} parent=0 // pred_fallthru
    _
  // Predicated region
  $region14: #{bottleneck_forward.1} parent=0 // pred_check
    _
  $region15: #{bottleneck_forward.1} parent=0 // pred_check_branch
    %28 = sbr.rel (0) target = $region17
  $region16: #{bottleneck_forward.1} parent=0 // pred_region
    _
  $region17: #{bottleneck_forward.1} parent=0 // pred_fallthru
    _
  // Predicated region
  $region18: #{bottleneck_forward.1} parent=0 // pred_check
    _
  $region19: #{bottleneck_forward.1} parent=0 // pred_check_branch
    %30 = sbr.rel (0) target = $region21
  $region20: #{bottleneck_forward.1} parent=0 // pred_region
    _
  $region21: #{bottleneck_forward.1} parent=0 // pred_fallthru
    _
  // Predicated region
  $region22: #{bottleneck_forward.1} parent=0 // pred_check
    _
  $region23: #{bottleneck_forward.1} parent=0 // pred_check_branch
    %32 = sbr.rel (0) target = $region25
  $region24: #{bottleneck_forward.1} parent=0 // pred_region
    _
  $region25: #{bottleneck_forward.1} parent=0 // pred_fallthru
    _
  // Predicated region
  $region26: #{bottleneck_forward.1} parent=0 // pred_check
    _
  $region27: #{bottleneck_forward.1} parent=0 // pred_check_branch
    %34 = sbr.rel (0) target = $region29
  $region28: #{bottleneck_forward.1} parent=0 // pred_region
    _
  $region29: #{bottleneck_forward.1} parent=0 // pred_fallthru
    _
  // Predicated region
  $region30: #{bottleneck_forward.1} parent=0 // pred_check
    _
  $region31: #{bottleneck_forward.1} parent=0 // pred_check_branch
    %36 = sbr.rel (0) target = $region33
  $region32: #{bottleneck_forward.1} parent=0 // pred_region
    _
  $region33: #{bottleneck_forward.1} parent=0 // pred_fallthru
    _
  // Predicated region
  $region34: #{bottleneck_forward.1} parent=0 // pred_check
    _
  $region35: #{bottleneck_forward.1} parent=0 // pred_check_branch
    %38 = sbr.rel (0) target = $region37
  $region36: #{bottleneck_forward.1} parent=0 // pred_region
    _
  $region37: #{bottleneck_forward.1} parent=0 // pred_fallthru
    _
  // Predicated region
  $region38: #{bottleneck_forward.1} parent=0 // pred_check
    _
  $region39: #{bottleneck_forward.1} parent=0 // pred_check_branch
    %40 = sbr.rel (0) target = $region41
  $region40: #{bottleneck_forward.1} parent=0 // pred_region
    _
  $region41: #{bottleneck_forward.1} parent=0 // pred_fallthru
    _
  // Predicated region
  $region42: #{bottleneck_forward.1} parent=0 // pred_check
    _
  $region43: #{bottleneck_forward.1} parent=0 // pred_check_branch
    %42 = sbr.rel (0) target = $region45
  $region44: #{bottleneck_forward.1} parent=0 // pred_region
    _
  $region45: #{bottleneck_forward.1} parent=0 // pred_fallthru
    _
  // Predicated region
  $region46: #{bottleneck_forward.1} parent=0 // pred_check
    _
  $region47: #{bottleneck_forward.1} parent=0 // pred_check_branch
    %44 = sbr.rel (0) target = $region49
  $region48: #{bottleneck_forward.1} parent=0 // pred_region
    _
  $region49: #{bottleneck_forward.1} parent=0 // pred_fallthru
    _
  // Predicated region
  $region50: #{bottleneck_forward.1} parent=0 // pred_check
    _
  $region51: #{bottleneck_forward.1} parent=0 // pred_check_branch
    %46 = sbr.rel (0) target = $region53
  $region52: #{bottleneck_forward.1} parent=0 // pred_region
    _
  $region53: #{bottleneck_forward.1} parent=0 // pred_fallthru
    _
  // Predicated region
  $region54: #{bottleneck_forward.1} parent=0 // pred_check
    _
  $region55: #{bottleneck_forward.1} parent=0 // pred_check_branch
    %48 = sbr.rel (0) target = $region57
  $region56: #{bottleneck_forward.1} parent=0 // pred_region
    _
  $region57: #{bottleneck_forward.1} parent=0 // pred_fallthru
    _
  // Predicated region
  $region58: #{bottleneck_forward.1} parent=0 // pred_check
    _
  $region59: #{bottleneck_forward.1} parent=0 // pred_check_branch
    %50 = sbr.rel (0) target = $region61
  $region60: #{bottleneck_forward.1} parent=0 // pred_region
    _
  $region61: #{bottleneck_forward.1} parent=0 // pred_fallthru
    _
  // Predicated region
  $region62: #{bottleneck_forward.1} parent=0 // pred_check
    _
  $region63: #{bottleneck_forward.1} parent=0 // pred_check_branch
    %52 = sbr.rel (0) target = $region65
  $region64: #{bottleneck_forward.1} parent=0 // pred_region
    _
  $region65: #{bottleneck_forward.1} parent=0 // pred_fallthru
    _
  %v53 = vld [vmem:[%s0] sm:$0xff]
  %v54 = vld [vmem:[%s0 + $0x8] sm:$0xff]
  %v55 = vld [vmem:[%s0 + $0x10] sm:$0xff]
  %v56 = vld [vmem:[%s0 + $0x18] sm:$0xff]
  %v57 = vld [vmem:[%s0 + $0x20] sm:$0xff]
  %v58 = vld [vmem:[%s0 + $0x28] sm:$0xff]
  %v59 = vld [vmem:[%s0 + $0x30] sm:$0xff]
  %v60 = vld [vmem:[%s0 + $0x38] sm:$0xff]
  %v61 = vld [vmem:[%s0 + $0x40] sm:$0xff]
  %v62 = vld [vmem:[%s0 + $0x48] sm:$0xff]
  %v63 = vld [vmem:[%s0 + $0x50] sm:$0xff]
  %v64 = vld [vmem:[%s0 + $0x58] sm:$0xff]
  %v65 = vld [vmem:[%s0 + $0x60] sm:$0xff]
  %v66 = vld [vmem:[%s0 + $0x68] sm:$0xff]
  %v67 = vld [vmem:[%s0 + $0x70] sm:$0xff]
  %v68 = vld [vmem:[%s0 + $0x78] sm:$0xff]
  %v69 = vld [vmem:[%s1] sm:$0xff]
  %v70 = vld [vmem:[%s1 + $0x8] sm:$0xff]
  %v71 = vld [vmem:[%s1 + $0x10] sm:$0xff]
  %v72 = vld [vmem:[%s1 + $0x18] sm:$0xff]
  %v73 = vld [vmem:[%s1 + $0x20] sm:$0xff]
  %v74 = vld [vmem:[%s1 + $0x28] sm:$0xff]
  %v75 = vld [vmem:[%s1 + $0x30] sm:$0xff]
  %v76 = vld [vmem:[%s1 + $0x38] sm:$0xff]
  %v77 = vld [vmem:[%s1 + $0x40] sm:$0xff]
  %v78 = vld [vmem:[%s1 + $0x48] sm:$0xff]
  %v79 = vld [vmem:[%s1 + $0x50] sm:$0xff]
  %v80 = vld [vmem:[%s1 + $0x58] sm:$0xff]
  %v81 = vld [vmem:[%s1 + $0x60] sm:$0xff]
  %v82 = vld [vmem:[%s1 + $0x68] sm:$0xff]
  %v83 = vld [vmem:[%s1 + $0x70] sm:$0xff]
  %v84 = vld [vmem:[%s1 + $0x78] sm:$0xff]
  %v85 = vld [vmem:[%s1 + $0x80] sm:$0xff]
  %v86 = vld [vmem:[%s1 + $0x88] sm:$0xff]
  %v87 = vld [vmem:[%s1 + $0x90] sm:$0xff]
  %v88 = vld [vmem:[%s1 + $0x98] sm:$0xff]
  %v89 = vld [vmem:[%s1 + $0xa0] sm:$0xff]
  %v90 = vld [vmem:[%s1 + $0xa8] sm:$0xff]
  %v91 = vld [vmem:[%s1 + $0xb0] sm:$0xff]
  %v92 = vld [vmem:[%s1 + $0xb8] sm:$0xff]
  %v93 = vld [vmem:[%s1 + $0xc0] sm:$0xff]
  %v94 = vld [vmem:[%s1 + $0xc8] sm:$0xff]
  %v95 = vld [vmem:[%s1 + $0xd0] sm:$0xff]
  %v96 = vld [vmem:[%s1 + $0xd8] sm:$0xff]
  %v97 = vld [vmem:[%s1 + $0xe0] sm:$0xff]
  %v98 = vld [vmem:[%s1 + $0xe8] sm:$0xff]
  %v99 = vld [vmem:[%s1 + $0xf0] sm:$0xff]
  %v100 = vld [vmem:[%s1 + $0xf8] sm:$0xff]
  %v101 = vld [vmem:[%s1 + $0x100] sm:$0xff]
  %v102 = vld [vmem:[%s1 + $0x108] sm:$0xff]
  %v103 = vld [vmem:[%s1 + $0x110] sm:$0xff]
  %v104 = vld [vmem:[%s1 + $0x118] sm:$0xff]
  %v105 = vld [vmem:[%s1 + $0x120] sm:$0xff]
  %v106 = vld [vmem:[%s1 + $0x128] sm:$0xff]
  %v107 = vld [vmem:[%s1 + $0x130] sm:$0xff]
  %v108 = vld [vmem:[%s1 + $0x138] sm:$0xff]
  %v109 = vld [vmem:[%s1 + $0x140] sm:$0xff]
  %v110 = vld [vmem:[%s1 + $0x148] sm:$0xff]
  %v111 = vld [vmem:[%s1 + $0x150] sm:$0xff]
  %v112 = vld [vmem:[%s1 + $0x158] sm:$0xff]
  %v113 = vld [vmem:[%s1 + $0x160] sm:$0xff]
  %v114 = vld [vmem:[%s1 + $0x168] sm:$0xff]
  %v115 = vld [vmem:[%s1 + $0x170] sm:$0xff]
  %v116 = vld [vmem:[%s1 + $0x178] sm:$0xff]
  %v117 = vld [vmem:[%s1 + $0x180] sm:$0xff]
  %v118 = vld [vmem:[%s1 + $0x188] sm:$0xff]
  %v119 = vld [vmem:[%s1 + $0x190] sm:$0xff]
  %v120 = vld [vmem:[%s1 + $0x198] sm:$0xff]
  %v121 = vld [vmem:[%s1 + $0x1a0] sm:$0xff]
  %v122 = vld [vmem:[%s1 + $0x1a8] sm:$0xff]
  %v123 = vld [vmem:[%s1 + $0x1b0] sm:$0xff]
  %v124 = vld [vmem:[%s1 + $0x1b8] sm:$0xff]
  %v125 = vld [vmem:[%s1 + $0x1c0] sm:$0xff]
  %v126 = vld [vmem:[%s1 + $0x1c8] sm:$0xff]
  %v127 = vld [vmem:[%s1 + $0x1d0] sm:$0xff]
  %v128 = vld [vmem:[%s1 + $0x1d8] sm:$0xff]
  %v129 = vld [vmem:[%s1 + $0x1e0] sm:$0xff]
  %v130 = vld [vmem:[%s1 + $0x1e8] sm:$0xff]
  %v131 = vld [vmem:[%s1 + $0x1f0] sm:$0xff]
  %v132 = vld [vmem:[%s1 + $0x1f8] sm:$0xff]
  %v133 = vld [vmem:[%s1 + $0x200] sm:$0xff]
  %v134 = vld [vmem:[%s1 + $0x208] sm:$0xff]
  %v135 = vld [vmem:[%s1 + $0x210] sm:$0xff]
  %v136 = vld [vmem:[%s1 + $0x218] sm:$0xff]
  %v137 = vld [vmem:[%s1 + $0x220] sm:$0xff]
  %v138 = vld [vmem:[%s1 + $0x228] sm:$0xff]
  %v139 = vld [vmem:[%s1 + $0x230] sm:$0xff]
  %v140 = vld [vmem:[%s1 + $0x238] sm:$0xff]
  %v141 = vld [vmem:[%s1 + $0x240] sm:$0xff]
  %v142 = vld [vmem:[%s1 + $0x248] sm:$0xff]
  %v143 = vld [vmem:[%s1 + $0x250] sm:$0xff]
  %v144 = vld [vmem:[%s1 + $0x258] sm:$0xff]
  %v145 = vld [vmem:[%s1 + $0x260] sm:$0xff]
  %v146 = vld [vmem:[%s1 + $0x268] sm:$0xff]
  %v147 = vld [vmem:[%s1 + $0x270] sm:$0xff]
  %v148 = vld [vmem:[%s1 + $0x278] sm:$0xff]
  %v149 = vld [vmem:[%s1 + $0x280] sm:$0xff]
  %v150 = vld [vmem:[%s1 + $0x288] sm:$0xff]
  %v151 = vld [vmem:[%s1 + $0x290] sm:$0xff]
  %v152 = vld [vmem:[%s1 + $0x298] sm:$0xff]
  %v153 = vld [vmem:[%s1 + $0x2a0] sm:$0xff]
  %v154 = vld [vmem:[%s1 + $0x2a8] sm:$0xff]
  %v155 = vld [vmem:[%s1 + $0x2b0] sm:$0xff]
  %v156 = vld [vmem:[%s1 + $0x2b8] sm:$0xff]
  %v157 = vld [vmem:[%s1 + $0x2c0] sm:$0xff]
  %v158 = vld [vmem:[%s1 + $0x2c8] sm:$0xff]
  %v159 = vld [vmem:[%s1 + $0x2d0] sm:$0xff]
  %v160 = vld [vmem:[%s1 + $0x2d8] sm:$0xff]
  %v161 = vld [vmem:[%s1 + $0x2e0] sm:$0xff]
  %v162 = vld [vmem:[%s1 + $0x2e8] sm:$0xff]
  %v163 = vld [vmem:[%s1 + $0x2f0] sm:$0xff]
  %v164 = vld [vmem:[%s1 + $0x2f8] sm:$0xff]
  %v165 = vld [vmem:[%s1 + $0x300] sm:$0xff]
  %v166 = vld [vmem:[%s1 + $0x308] sm:$0xff]
  %v167 = vld [vmem:[%s1 + $0x310] sm:$0xff]
  %v168 = vld [vmem:[%s1 + $0x318] sm:$0xff]
  %v169 = vld [vmem:[%s1 + $0x320] sm:$0xff]
  %v170 = vld [vmem:[%s1 + $0x328] sm:$0xff]
  %v171 = vld [vmem:[%s1 + $0x330] sm:$0xff]
  %v172 = vld [vmem:[%s1 + $0x338] sm:$0xff]
  %v173 = vld [vmem:[%s1 + $0x340] sm:$0xff]
  %v174 = vld [vmem:[%s1 + $0x348] sm:$0xff]
  %v175 = vld [vmem:[%s1 + $0x350] sm:$0xff]
  %v176 = vld [vmem:[%s1 + $0x358] sm:$0xff]
  %v177 = vld [vmem:[%s1 + $0x360] sm:$0xff]
  %v178 = vld [vmem:[%s1 + $0x368] sm:$0xff]
  %v179 = vld [vmem:[%s1 + $0x370] sm:$0xff]
  %v180 = vld [vmem:[%s1 + $0x378] sm:$0xff]
  %v181 = vld [vmem:[%s1 + $0x380] sm:$0xff]
  %v182 = vld [vmem:[%s1 + $0x388] sm:$0xff]
  %v183 = vld [vmem:[%s1 + $0x390] sm:$0xff]
  %v184 = vld [vmem:[%s1 + $0x398] sm:$0xff]
  %v185 = vld [vmem:[%s1 + $0x3a0] sm:$0xff]
  %v186 = vld [vmem:[%s1 + $0x3a8] sm:$0xff]
  %v187 = vld [vmem:[%s1 + $0x3b0] sm:$0xff]
  %v188 = vld [vmem:[%s1 + $0x3b8] sm:$0xff]
  %v189 = vld [vmem:[%s1 + $0x3c0] sm:$0xff]
  %v190 = vld [vmem:[%s1 + $0x3c8] sm:$0xff]
  %v191 = vld [vmem:[%s1 + $0x3d0] sm:$0xff]
  %v192 = vld [vmem:[%s1 + $0x3d8] sm:$0xff]
  %v193 = vld [vmem:[%s1 + $0x3e0] sm:$0xff]
  %v194 = vld [vmem:[%s1 + $0x3e8] sm:$0xff]
  %v195 = vld [vmem:[%s1 + $0x3f0] sm:$0xff]
  %v196 = vld [vmem:[%s1 + $0x3f8] sm:$0xff]
  %197 = vmatprep.subr.mxu0 %v100
  %198 = vmatpush1.msra.mxu0 %v99
  %199 = vmatprep.subr.mxu0 %v98
  %200 = vmatpush1.msra.mxu0 %v97
  %201 = vmatprep.subr.mxu0 %v96
  %202 = vmatpush1.msra.mxu0 %v95
  %203 = vmatprep.subr.mxu0 %v94
  %204 = vmatpush1.msra.mxu0 %v93
  %205 = vmatprep.subr.mxu0 %v92
  %206 = vmatpush1.msra.mxu0 %v91
  %207 = vmatprep.subr.mxu0 %v90
  %208 = vmatpush1.msra.mxu0 %v89
  %209 = vmatprep.subr.mxu0 %v88
  %210 = vmatpush1.msra.mxu0 %v87
  %211 = vmatprep.subr.mxu0 %v86
  %212 = vmatpush1.msra.mxu0 %v85
  %213 = vmatprep.subr.mxu0 %v84
  %214 = vmatpush1.msra.mxu0 %v83
  %215 = vmatprep.subr.mxu0 %v82
  %216 = vmatpush1.msra.mxu0 %v81
  %217 = vmatprep.subr.mxu0 %v80
  %218 = vmatpush1.msra.mxu0 %v79
  %219 = vmatprep.subr.mxu0 %v78
  %220 = vmatpush1.msra.mxu0 %v77
  %221 = vmatprep.subr.mxu0 %v76
  %222 = vmatpush1.msra.mxu0 %v75
  %223 = vmatprep.subr.mxu0 %v74
  %224 = vmatpush1.msra.mxu0 %v73
  %225 = vmatprep.subr.mxu0 %v72
  %226 = vmatpush1.msra.mxu0 %v71
  %227 = vmatprep.subr.mxu0 %v70
  %228 = vmatpush1.msra.mxu0 %v69
  %229 = vmatprep.subr.mxu0 %v132
  %230 = vmatpush2.msra.mxu0 %v131
  %231 = vmatprep.subr.mxu0 %v130
  %232 = vmatpush2.msra.mxu0 %v129
  %233 = vmatprep.subr.mxu0 %v128
  %234 = vmatpush2.msra.mxu0 %v127
  %235 = vmatprep.subr.mxu0 %v126
  %236 = vmatpush2.msra.mxu0 %v125
  %237 = vmatprep.subr.mxu0 %v124
  %238 = vmatpush2.msra.mxu0 %v123
  %239 = vmatprep.subr.mxu0 %v122
  %240 = vmatpush2.msra.mxu0 %v121
  %241 = vmatprep.subr.mxu0 %v120
  %242 = vmatpush2.msra.mxu0 %v119
  %243 = vmatprep.subr.mxu0 %v118
  %244 = vmatpush2.msra.mxu0 %v117
  %245 = vmatprep.subr.mxu0 %v116
  %246 = vmatpush2.msra.mxu0 %v115
  %247 = vmatprep.subr.mxu0 %v114
  %248 = vmatpush2.msra.mxu0 %v113
  %249 = vmatprep.subr.mxu0 %v112
  %250 = vmatpush2.msra.mxu0 %v111
  %251 = vmatprep.subr.mxu0 %v110
  %252 = vmatpush2.msra.mxu0 %v109
  %253 = vmatprep.subr.mxu0 %v108
  %254 = vmatpush2.msra.mxu0 %v107
  %255 = vmatprep.subr.mxu0 %v106
  %256 = vmatpush2.msra.mxu0 %v105
  %257 = vmatprep.subr.mxu0 %v104
  %258 = vmatpush2.msra.mxu0 %v103
  %259 = vmatprep.subr.mxu0 %v102
  %260 = vmatpush2.msra.mxu0 %v101
  %261 = vmatprep.mubr.f32.mxu0 %v54
  %262 = vmatmul.mubr.f32.gmra.mxu0 %v53
  %v263 = vpop.f32.mrf.mxu0
  %v264 = vadd.f32 0.0, %v263
  %v265 = vpop.f32.mrf.mxu0
  %v266 = vadd.f32 0.0, %v265
  %267 = vmatprep.mubr.f32.mxu0 %v58
  %268 = vmatmul.mubr.f32.gmra.mxu0 %v57
  %v269 = vpop.f32.mrf.mxu0
  %v270 = vadd.f32 0.0, %v269
  %v271 = vpop.f32.mrf.mxu0
  %v272 = vadd.f32 0.0, %v271
  %273 = vmatprep.mubr.f32.mxu0 %v62
  %274 = vmatmul.mubr.f32.gmra.mxu0 %v61
  %v275 = vpop.f32.mrf.mxu0
  %v276 = vadd.f32 0.0, %v275
  %v277 = vpop.f32.mrf.mxu0
  %v278 = vadd.f32 0.0, %v277
  %279 = vmatprep.mubr.f32.mxu0 %v66
  %280 = vmatmul.mubr.f32.gmra.mxu0 %v65
  %v281 = vpop.f32.mrf.mxu0
  %v282 = vadd.f32 0.0, %v281
  %v283 = vpop.f32.mrf.mxu0
  %v284 = vadd.f32 0.0, %v283
  %285 = vdwg.mxu0
  %286 = vmatprep.subr.mxu0 %v164
  %287 = vmatpush1.msra.mxu0 %v163
  %288 = vmatprep.subr.mxu0 %v162
  %289 = vmatpush1.msra.mxu0 %v161
  %290 = vmatprep.subr.mxu0 %v160
  %291 = vmatpush1.msra.mxu0 %v159
  %292 = vmatprep.subr.mxu0 %v158
  %293 = vmatpush1.msra.mxu0 %v157
  %294 = vmatprep.subr.mxu0 %v156
  %295 = vmatpush1.msra.mxu0 %v155
  %296 = vmatprep.subr.mxu0 %v154
  %297 = vmatpush1.msra.mxu0 %v153
  %298 = vmatprep.subr.mxu0 %v152
  %299 = vmatpush1.msra.mxu0 %v151
  %300 = vmatprep.subr.mxu0 %v150
  %301 = vmatpush1.msra.mxu0 %v149
  %302 = vmatprep.subr.mxu0 %v148
  %303 = vmatpush1.msra.mxu0 %v147
  %304 = vmatprep.subr.mxu0 %v146
  %305 = vmatpush1.msra.mxu0 %v145
  %306 = vmatprep.subr.mxu0 %v144
  %307 = vmatpush1.msra.mxu0 %v143
  %308 = vmatprep.subr.mxu0 %v142
  %309 = vmatpush1.msra.mxu0 %v141
  %310 = vmatprep.subr.mxu0 %v140
  %311 = vmatpush1.msra.mxu0 %v139
  %312 = vmatprep.subr.mxu0 %v138
  %313 = vmatpush1.msra.mxu0 %v137
  %314 = vmatprep.subr.mxu0 %v136
  %315 = vmatpush1.msra.mxu0 %v135
  %316 = vmatprep.subr.mxu0 %v134
  %317 = vmatpush1.msra.mxu0 %v133
  %318 = vmatprep.subr.mxu0 %v196
  %319 = vmatpush2.msra.mxu0 %v195
  %320 = vmatprep.subr.mxu0 %v194
  %321 = vmatpush2.msra.mxu0 %v193
  %322 = vmatprep.subr.mxu0 %v192
  %323 = vmatpush2.msra.mxu0 %v191
  %324 = vmatprep.subr.mxu0 %v190
  %325 = vmatpush2.msra.mxu0 %v189
  %326 = vmatprep.subr.mxu0 %v188
  %327 = vmatpush2.msra.mxu0 %v187
  %328 = vmatprep.subr.mxu0 %v186
  %329 = vmatpush2.msra.mxu0 %v185
  %330 = vmatprep.subr.mxu0 %v184
  %331 = vmatpush2.msra.mxu0 %v183
  %332 = vmatprep.subr.mxu0 %v182
  %333 = vmatpush2.msra.mxu0 %v181
  %334 = vmatprep.subr.mxu0 %v180
  %335 = vmatpush2.msra.mxu0 %v179
  %336 = vmatprep.subr.mxu0 %v178
  %337 = vmatpush2.msra.mxu0 %v177
  %338 = vmatprep.subr.mxu0 %v176
  %339 = vmatpush2.msra.mxu0 %v175
  %340 = vmatprep.subr.mxu0 %v174
  %341 = vmatpush2.msra.mxu0 %v173
  %342 = vmatprep.subr.mxu0 %v172
  %343 = vmatpush2.msra.mxu0 %v171
  %344 = vmatprep.subr.mxu0 %v170
  %345 = vmatpush2.msra.mxu0 %v169
  %346 = vmatprep.subr.mxu0 %v168
  %347 = vmatpush2.msra.mxu0 %v167
  %348 = vmatprep.subr.mxu0 %v166
  %349 = vmatpush2.msra.mxu0 %v165
  %350 = vmatprep.mubr.f32.mxu0 %v56
  %351 = vmatmul.mubr.f32.gmra.mxu0 %v55
  %v352 = vpop.f32.mrf.mxu0
  %v353 = vadd.f32 %v264, %v352
  %v354 = vpop.f32.mrf.mxu0
  %v355 = vadd.f32 %v266, %v354
  %356 = vmatprep.mubr.f32.mxu0 %v60
  %357 = vmatmul.mubr.f32.gmra.mxu0 %v59
  %v358 = vpop.f32.mrf.mxu0
  %v359 = vadd.f32 %v270, %v358
  %v360 = vpop.f32.mrf.mxu0
  %v361 = vadd.f32 %v272, %v360
  %362 = vmatprep.mubr.f32.mxu0 %v64
  %363 = vmatmul.mubr.f32.gmra.mxu0 %v63
  %v364 = vpop.f32.mrf.mxu0
  %v365 = vadd.f32 %v276, %v364
  %v366 = vpop.f32.mrf.mxu0
  %v367 = vadd.f32 %v278, %v366
  %368 = vmatprep.mubr.f32.mxu0 %v68
  %369 = vmatmul.mubr.f32.gmra.mxu0 %v67
  %v370 = vpop.f32.mrf.mxu0
  %v371 = vadd.f32 %v282, %v370
  %v372 = vpop.f32.mrf.mxu0
  %v373 = vadd.f32 %v284, %v372
  %374 = vdwg.mxu0
  %v375 = vadd.f32 %v353, %v359
  %v376 = vadd.f32 %v375, %v365
  %v377 = vadd.f32 %v376, %v371
  %v378 = vrot.slane %v377, 4
  %v379 = vadd.f32 %v377, %v378
  %v380 = vrot.slane %v379, 2
  %v381 = vadd.f32 %v379, %v380
  %v382 = vrot.slane %v381, 1
  %v383 = vadd.f32 %v381, %v382
  %v384 = vadd.f32 %v355, %v361
  %v385 = vadd.f32 %v384, %v367
  %v386 = vadd.f32 %v385, %v373
  %v387 = vrot.slane %v386, 4
  %v388 = vadd.f32 %v386, %v387
  %v389 = vrot.slane %v388, 2
  %v390 = vadd.f32 %v388, %v389
  %v391 = vrot.slane %v390, 1
  %v392 = vadd.f32 %v390, %v391
  %v393 = vmul.f32 %v353, %v353
  %v394 = vmul.f32 %v355, %v355
  %v395 = vmul.f32 %v359, %v359
  %v396 = vmul.f32 %v361, %v361
  %v397 = vmul.f32 %v365, %v365
  %v398 = vmul.f32 %v367, %v367
  %v399 = vmul.f32 %v371, %v371
  %v400 = vmul.f32 %v373, %v373
  %v401 = vadd.f32 %v393, %v395
  %v402 = vadd.f32 %v401, %v397
  %v403 = vadd.f32 %v402, %v399
  %v404 = vrot.slane %v403, 4
  %v405 = vadd.f32 %v403, %v404
  %v406 = vrot.slane %v405, 2
  %v407 = vadd.f32 %v405, %v406
  %v408 = vrot.slane %v407, 1
  %v409 = vadd.f32 %v407, %v408
  %v410 = vadd.f32 %v394, %v396
  %v411 = vadd.f32 %v410, %v398
  %v412 = vadd.f32 %v411, %v400
  %v413 = vrot.slane %v412, 4
  %v414 = vadd.f32 %v412, %v413
  %v415 = vrot.slane %v414, 2
  %v416 = vadd.f32 %v414, %v415
  %v417 = vrot.slane %v416, 1
  %v418 = vadd.f32 %v416, %v417
  %v419 = vld [vmem:[%s6] sm:$0xff]
  %v420 = vld [vmem:[%s6 + $0x8] sm:$0xff]
  %v421 = vld [vmem:[%s6 + $0x10] sm:$0xff]
  %v422 = vld [vmem:[%s6 + $0x18] sm:$0xff]
  %v423 = vld [vmem:[%s6 + $0x20] sm:$0xff]
  %v424 = vld [vmem:[%s6 + $0x28] sm:$0xff]
  %v425 = vld [vmem:[%s6 + $0x30] sm:$0xff]
  %v426 = vld [vmem:[%s6 + $0x38] sm:$0xff]
  %v427 = vld [vmem:[%s6 + $0x40] sm:$0xff]
  %v428 = vld [vmem:[%s6 + $0x48] sm:$0xff]
  %v429 = vld [vmem:[%s6 + $0x50] sm:$0xff]
  %v430 = vld [vmem:[%s6 + $0x58] sm:$0xff]
  %v431 = vld [vmem:[%s6 + $0x60] sm:$0xff]
  %v432 = vld [vmem:[%s6 + $0x68] sm:$0xff]
  %v433 = vld [vmem:[%s6 + $0x70] sm:$0xff]
  %v434 = vld [vmem:[%s6 + $0x78] sm:$0xff]
  %v435 = vld [vmem:[%s6 + $0x80] sm:$0xff]
  %v436 = vld [vmem:[%s6 + $0x88] sm:$0xff]
  %v437 = vld [vmem:[%s6 + $0x90] sm:$0xff]
  %v438 = vld [vmem:[%s6 + $0x98] sm:$0xff]
  %v439 = vld [vmem:[%s6 + $0xa0] sm:$0xff]
  %v440 = vld [vmem:[%s6 + $0xa8] sm:$0xff]
  %v441 = vld [vmem:[%s6 + $0xb0] sm:$0xff]
  %v442 = vld [vmem:[%s6 + $0xb8] sm:$0xff]
  %v443 = vld [vmem:[%s6 + $0xc0] sm:$0xff]
  %v444 = vld [vmem:[%s6 + $0xc8] sm:$0xff]
  %v445 = vld [vmem:[%s6 + $0xd0] sm:$0xff]
  %v446 = vld [vmem:[%s6 + $0xd8] sm:$0xff]
  %v447 = vld [vmem:[%s6 + $0xe0] sm:$0xff]
  %v448 = vld [vmem:[%s6 + $0xe8] sm:$0xff]
  %v449 = vld [vmem:[%s6 + $0xf0] sm:$0xff]
  %v450 = vld [vmem:[%s6 + $0xf8] sm:$0xff]
  %451 = vmatprep.subr.mxu0 0.0
  %452 = vmatpush1.msra.mxu0 %v434
  %453 = vmatprep.subr.mxu0 0.0
  %454 = vmatpush1.msra.mxu0 %v433
  %455 = vmatprep.subr.mxu0 0.0
  %456 = vmatpush1.msra.mxu0 %v432
  %457 = vmatprep.subr.mxu0 0.0
  %458 = vmatpush1.msra.mxu0 %v431
  %459 = vmatprep.subr.mxu0 0.0
  %460 = vmatpush1.msra.mxu0 %v430
  %461 = vmatprep.subr.mxu0 0.0
  %462 = vmatpush1.msra.mxu0 %v429
  %463 = vmatprep.subr.mxu0 0.0
  %464 = vmatpush1.msra.mxu0 %v428
  %465 = vmatprep.subr.mxu0 0.0
  %466 = vmatpush1.msra.mxu0 %v427
  %467 = vmatprep.subr.mxu0 0.0
  %468 = vmatpush1.msra.mxu0 %v426
  %469 = vmatprep.subr.mxu0 0.0
  %470 = vmatpush1.msra.mxu0 %v425
  %471 = vmatprep.subr.mxu0 0.0
  %472 = vmatpush1.msra.mxu0 %v424
  %473 = vmatprep.subr.mxu0 0.0
  %474 = vmatpush1.msra.mxu0 %v423
  %475 = vmatprep.subr.mxu0 0.0
  %476 = vmatpush1.msra.mxu0 %v422
  %477 = vmatprep.subr.mxu0 0.0
  %478 = vmatpush1.msra.mxu0 %v421
  %479 = vmatprep.subr.mxu0 0.0
  %480 = vmatpush1.msra.mxu0 %v420
  %481 = vmatprep.subr.mxu0 0.0
  %482 = vmatpush1.msra.mxu0 %v419
  %483 = vmatprep.subr.mxu0 0.0
  %484 = vmatpush2.msra.mxu0 %v450
  %485 = vmatprep.subr.mxu0 0.0
  %486 = vmatpush2.msra.mxu0 %v449
  %487 = vmatprep.subr.mxu0 0.0
  %488 = vmatpush2.msra.mxu0 %v448
  %489 = vmatprep.subr.mxu0 0.0
  %490 = vmatpush2.msra.mxu0 %v447
  %491 = vmatprep.subr.mxu0 0.0
  %492 = vmatpush2.msra.mxu0 %v446
  %493 = vmatprep.subr.mxu0 0.0
  %494 = vmatpush2.msra.mxu0 %v445
  %495 = vmatprep.subr.mxu0 0.0
  %496 = vmatpush2.msra.mxu0 %v444
  %497 = vmatprep.subr.mxu0 0.0
  %498 = vmatpush2.msra.mxu0 %v443
  %499 = vmatprep.subr.mxu0 0.0
  %500 = vmatpush2.msra.mxu0 %v442
  %501 = vmatprep.subr.mxu0 0.0
  %502 = vmatpush2.msra.mxu0 %v441
  %503 = vmatprep.subr.mxu0 0.0
  %504 = vmatpush2.msra.mxu0 %v440
  %505 = vmatprep.subr.mxu0 0.0
  %506 = vmatpush2.msra.mxu0 %v439
  %507 = vmatprep.subr.mxu0 0.0
  %508 = vmatpush2.msra.mxu0 %v438
  %509 = vmatprep.subr.mxu0 0.0
  %510 = vmatpush2.msra.mxu0 %v437
  %511 = vmatprep.subr.mxu0 0.0
  %512 = vmatpush2.msra.mxu0 %v436
  %513 = vmatprep.subr.mxu0 0.0
  %514 = vmatpush2.msra.mxu0 %v435
  %515 = vmatprep.mubr.f32.mxu0 %v392
  %516 = vmatmul.mubr.f32.gmra.mxu0 %v383
  %v517 = vpop.f32.mrf.mxu0
  %v518 = vadd.f32 0.0, %v517
  %v519 = vpop.f32.mrf.mxu0
  %520 = vdwg.mxu0
  %v521 = vmul.f32 %v518, 0.001953125
  %522 = vmatprep.subr.mxu0 0.0
  %523 = vmatpush1.msra.mxu0 %v434
  %524 = vmatprep.subr.mxu0 0.0
  %525 = vmatpush1.msra.mxu0 %v433
  %526 = vmatprep.subr.mxu0 0.0
  %527 = vmatpush1.msra.mxu0 %v432
  %528 = vmatprep.subr.mxu0 0.0
  %529 = vmatpush1.msra.mxu0 %v431
  %530 = vmatprep.subr.mxu0 0.0
  %531 = vmatpush1.msra.mxu0 %v430
  %532 = vmatprep.subr.mxu0 0.0
  %533 = vmatpush1.msra.mxu0 %v429
  %534 = vmatprep.subr.mxu0 0.0
  %535 = vmatpush1.msra.mxu0 %v428
  %536 = vmatprep.subr.mxu0 0.0
  %537 = vmatpush1.msra.mxu0 %v427
  %538 = vmatprep.subr.mxu0 0.0
  %539 = vmatpush1.msra.mxu0 %v426
  %540 = vmatprep.subr.mxu0 0.0
  %541 = vmatpush1.msra.mxu0 %v425
  %542 = vmatprep.subr.mxu0 0.0
  %543 = vmatpush1.msra.mxu0 %v424
  %544 = vmatprep.subr.mxu0 0.0
  %545 = vmatpush1.msra.mxu0 %v423
  %546 = vmatprep.subr.mxu0 0.0
  %547 = vmatpush1.msra.mxu0 %v422
  %548 = vmatprep.subr.mxu0 0.0
  %549 = vmatpush1.msra.mxu0 %v421
  %550 = vmatprep.subr.mxu0 0.0
  %551 = vmatpush1.msra.mxu0 %v420
  %552 = vmatprep.subr.mxu0 0.0
  %553 = vmatpush1.msra.mxu0 %v419
  %554 = vmatprep.subr.mxu0 0.0
  %555 = vmatpush2.msra.mxu0 %v450
  %556 = vmatprep.subr.mxu0 0.0
  %557 = vmatpush2.msra.mxu0 %v449
  %558 = vmatprep.subr.mxu0 0.0
  %559 = vmatpush2.msra.mxu0 %v448
  %560 = vmatprep.subr.mxu0 0.0
  %561 = vmatpush2.msra.mxu0 %v447
  %562 = vmatprep.subr.mxu0 0.0
  %563 = vmatpush2.msra.mxu0 %v446
  %564 = vmatprep.subr.mxu0 0.0
  %565 = vmatpush2.msra.mxu0 %v445
  %566 = vmatprep.subr.mxu0 0.0
  %567 = vmatpush2.msra.mxu0 %v444
  %568 = vmatprep.subr.mxu0 0.0
  %569 = vmatpush2.msra.mxu0 %v443
  %570 = vmatprep.subr.mxu0 0.0
  %571 = vmatpush2.msra.mxu0 %v442
  %572 = vmatprep.subr.mxu0 0.0
  %573 = vmatpush2.msra.mxu0 %v441
  %574 = vmatprep.subr.mxu0 0.0
  %575 = vmatpush2.msra.mxu0 %v440
  %576 = vmatprep.subr.mxu0 0.0
  %577 = vmatpush2.msra.mxu0 %v439
  %578 = vmatprep.subr.mxu0 0.0
  %579 = vmatpush2.msra.mxu0 %v438
  %580 = vmatprep.subr.mxu0 0.0
  %581 = vmatpush2.msra.mxu0 %v437
  %582 = vmatprep.subr.mxu0 0.0
  %583 = vmatpush2.msra.mxu0 %v436
  %584 = vmatprep.subr.mxu0 0.0
  %585 = vmatpush2.msra.mxu0 %v435
  %586 = vmatprep.mubr.f32.mxu0 %v418
  %587 = vmatmul.mubr.f32.gmra.mxu0 %v409
  %v588 = vpop.f32.mrf.mxu0
  %v589 = vadd.f32 0.0, %v588
  %v590 = vpop.f32.mrf.mxu0
  %591 = vdwg.mxu0
  %v592 = vmul.f32 %v589, 0.001953125
  %v593 = vmul.f32 %v521, %v521
  %v594 = vsub.f32 %v592, %v593
  %v595 = vmax.f32 %v594, 0.0
  %v596 = vadd.f32 %v595, 1e-05
  %v597 = vrsqrt.pop %v596
  %v598 = vld [vmem:[%s10] sm:$0x1]
  %v599 = vmul.f32 %v597, %v598
  %v600 = vld [vmem:[%s11] sm:$0x1]
  %v601 = vmul.f32 %v521, %v599
  %v602 = vsub.f32 %v600, %v601
  %v603 = vld [vmem:[%s7] sm:$0xff]
  %v604 = vld [vmem:[%s7 + $0x8] sm:$0xff]
  %v605 = vld [vmem:[%s7 + $0x10] sm:$0xff]
  %v606 = vld [vmem:[%s7 + $0x18] sm:$0xff]
  %vm607 = vcmask 130048
  %v609 = vsel %vm607, %v599, 0
  %611 = vmatprep.subr.mxu0 0.0
  %612 = vmatpush1.msra.mxu0 0.0
  %613 = vmatprep.subr.mxu0 0.0
  %614 = vmatpush1.msra.mxu0 0.0
  %615 = vmatprep.subr.mxu0 0.0
  %616 = vmatpush1.msra.mxu0 0.0
  %617 = vmatprep.subr.mxu0 0.0
  %618 = vmatpush1.msra.mxu0 0.0
  %619 = vmatprep.subr.mxu0 0.0
  %620 = vmatpush1.msra.mxu0 0.0
  %621 = vmatprep.subr.mxu0 0.0
  %622 = vmatpush1.msra.mxu0 0.0
  %623 = vmatprep.subr.mxu0 0.0
  %624 = vmatpush1.msra.mxu0 0.0
  %625 = vmatprep.subr.mxu0 0.0
  %626 = vmatpush1.msra.mxu0 0.0
  %627 = vmatprep.subr.mxu0 0.0
  %628 = vmatpush1.msra.mxu0 0.0
  %629 = vmatprep.subr.mxu0 0.0
  %630 = vmatpush1.msra.mxu0 0.0
  %631 = vmatprep.subr.mxu0 0.0
  %632 = vmatpush1.msra.mxu0 0.0
  %633 = vmatprep.subr.mxu0 0.0
  %634 = vmatpush1.msra.mxu0 0.0
  %635 = vmatprep.subr.mxu0 0.0
  %636 = vmatpush1.msra.mxu0 0.0
  %637 = vmatprep.subr.mxu0 0.0
  %638 = vmatpush1.msra.mxu0 0.0
  %639 = vmatprep.subr.mxu0 %v606
  %640 = vmatpush1.msra.mxu0 %v605
  %641 = vmatprep.subr.mxu0 %v604
  %642 = vmatpush1.msra.mxu0 %v603
  %643 = vmatprep.subr.mxu0 0.0
  %644 = vmatpush2.msra.mxu0 0.0
  %645 = vmatprep.subr.mxu0 0.0
  %646 = vmatpush2.msra.mxu0 0.0
  %647 = vmatprep.subr.mxu0 0.0
  %648 = vmatpush2.msra.mxu0 0.0
  %649 = vmatprep.subr.mxu0 0.0
  %650 = vmatpush2.msra.mxu0 0.0
  %651 = vmatprep.subr.mxu0 0.0
  %652 = vmatpush2.msra.mxu0 0.0
  %653 = vmatprep.subr.mxu0 0.0
  %654 = vmatpush2.msra.mxu0 0.0
  %655 = vmatprep.subr.mxu0 0.0
  %656 = vmatpush2.msra.mxu0 0.0
  %657 = vmatprep.subr.mxu0 0.0
  %658 = vmatpush2.msra.mxu0 0.0
  %659 = vmatprep.subr.mxu0 0.0
  %660 = vmatpush2.msra.mxu0 0.0
  %661 = vmatprep.subr.mxu0 0.0
  %662 = vmatpush2.msra.mxu0 0.0
  %663 = vmatprep.subr.mxu0 0.0
  %664 = vmatpush2.msra.mxu0 0.0
  %665 = vmatprep.subr.mxu0 0.0
  %666 = vmatpush2.msra.mxu0 0.0
  %667 = vmatprep.subr.mxu0 0.0
  %668 = vmatpush2.msra.mxu0 0.0
  %669 = vmatprep.subr.mxu0 0.0
  %670 = vmatpush2.msra.mxu0 0.0
  %671 = vmatprep.subr.mxu0 0.0
  %672 = vmatpush2.msra.mxu0 0.0
  %673 = vmatprep.subr.mxu0 0.0
  %674 = vmatpush2.msra.mxu0 0.0
  %675 = vmatprep.mubr.f32.mxu0 0.0
  %676 = vmatmul.mubr.f32.gmra.mxu0 %v609
  %v677 = vpop.f32.mrf.mxu0
  %v678 = vadd.f32 0.0, %v677
  %v679 = vpop.f32.mrf.mxu0
  %v680 = vadd.f32 0.0, %v679
  %681 = vdwg.mxu0
  %v683 = vsel %vm607, %v602, 0
  %685 = vmatprep.subr.mxu0 0.0
  %686 = vmatpush1.msra.mxu0 0.0
  %687 = vmatprep.subr.mxu0 0.0
  %688 = vmatpush1.msra.mxu0 0.0
  %689 = vmatprep.subr.mxu0 0.0
  %690 = vmatpush1.msra.mxu0 0.0
  %691 = vmatprep.subr.mxu0 0.0
  %692 = vmatpush1.msra.mxu0 0.0
  %693 = vmatprep.subr.mxu0 0.0
  %694 = vmatpush1.msra.mxu0 0.0
  %695 = vmatprep.subr.mxu0 0.0
  %696 = vmatpush1.msra.mxu0 0.0
  %697 = vmatprep.subr.mxu0 0.0
  %698 = vmatpush1.msra.mxu0 0.0
  %699 = vmatprep.subr.mxu0 0.0
  %700 = vmatpush1.msra.mxu0 0.0
  %701 = vmatprep.subr.mxu0 0.0
  %702 = vmatpush1.msra.mxu0 0.0
  %703 = vmatprep.subr.mxu0 0.0
  %704 = vmatpush1.msra.mxu0 0.0
  %705 = vmatprep.subr.mxu0 0.0
  %706 = vmatpush1.msra.mxu0 0.0
  %707 = vmatprep.subr.mxu0 0.0
  %708 = vmatpush1.msra.mxu0 0.0
  %709 = vmatprep.subr.mxu0 0.0
  %710 = vmatpush1.msra.mxu0 0.0
  %711 = vmatprep.subr.mxu0 0.0
  %712 = vmatpush1.msra.mxu0 0.0
  %713 = vmatprep.subr.mxu0 %v606
  %714 = vmatpush1.msra.mxu0 %v605
  %715 = vmatprep.subr.mxu0 %v604
  %716 = vmatpush1.msra.mxu0 %v603
  %717 = vmatprep.subr.mxu0 0.0
  %718 = vmatpush2.msra.mxu0 0.0
  %719 = vmatprep.subr.mxu0 0.0
  %720 = vmatpush2.msra.mxu0 0.0
  %721 = vmatprep.subr.mxu0 0.0
  %722 = vmatpush2.msra.mxu0 0.0
  %723 = vmatprep.subr.mxu0 0.0
  %724 = vmatpush2.msra.mxu0 0.0
  %725 = vmatprep.subr.mxu0 0.0
  %726 = vmatpush2.msra.mxu0 0.0
  %727 = vmatprep.subr.mxu0 0.0
  %728 = vmatpush2.msra.mxu0 0.0
  %729 = vmatprep.subr.mxu0 0.0
  %730 = vmatpush2.msra.mxu0 0.0
  %731 = vmatprep.subr.mxu0 0.0
  %732 = vmatpush2.msra.mxu0 0.0
  %733 = vmatprep.subr.mxu0 0.0
  %734 = vmatpush2.msra.mxu0 0.0
  %735 = vmatprep.subr.mxu0 0.0
  %736 = vmatpush2.msra.mxu0 0.0
  %737 = vmatprep.subr.mxu0 0.0
  %738 = vmatpush2.msra.mxu0 0.0
  %739 = vmatprep.subr.mxu0 0.0
  %740 = vmatpush2.msra.mxu0 0.0
  %741 = vmatprep.subr.mxu0 0.0
  %742 = vmatpush2.msra.mxu0 0.0
  %743 = vmatprep.subr.mxu0 0.0
  %744 = vmatpush2.msra.mxu0 0.0
  %745 = vmatprep.subr.mxu0 0.0
  %746 = vmatpush2.msra.mxu0 0.0
  %747 = vmatprep.subr.mxu0 0.0
  %748 = vmatpush2.msra.mxu0 0.0
  %749 = vmatprep.mubr.f32.mxu0 0.0
  %750 = vmatmul.mubr.f32.gmra.mxu0 %v683
  %v751 = vpop.f32.mrf.mxu0
  %v752 = vadd.f32 0.0, %v751
  %v753 = vpop.f32.mrf.mxu0
  %v754 = vadd.f32 0.0, %v753
  %755 = vdwg.mxu0
  %v756 = vlaneseq
  %v757 = vshrl.u32 %v756, 7
  %v758 = vsub.s32 0, %v757
  %v759 = vrot.slane %v678, %v758
  %v760 = vlaneseq
  %v761 = vshrl.u32 %v760, 7
  %v762 = vsub.s32 0, %v761
  %v763 = vrot.slane %v680, %v762
  %v764 = vmul.f32 %v353, %v759
  %v765 = vmul.f32 %v355, %v763
  %v766 = vmul.f32 %v359, %v759
  %v767 = vmul.f32 %v361, %v763
  %v768 = vmul.f32 %v365, %v759
  %v769 = vmul.f32 %v367, %v763
  %v770 = vmul.f32 %v371, %v759
  %v771 = vmul.f32 %v373, %v763
  %v772 = vlaneseq
  %v773 = vshrl.u32 %v772, 7
  %v774 = vsub.s32 0, %v773
  %v775 = vrot.slane %v752, %v774
  %v776 = vlaneseq
  %v777 = vshrl.u32 %v776, 7
  %v778 = vsub.s32 0, %v777
  %v779 = vrot.slane %v754, %v778
  %v780 = vadd.f32 %v764, %v775
  %v781 = vadd.f32 %v765, %v779
  %v782 = vadd.f32 %v766, %v775
  %v783 = vadd.f32 %v767, %v779
  %v784 = vadd.f32 %v768, %v775
  %v785 = vadd.f32 %v769, %v779
  %v786 = vadd.f32 %v770, %v775
  %v787 = vadd.f32 %v771, %v779
  %v788 = vmax.f32 %v780, 0.0
  %v789 = vmax.f32 %v781, 0.0
  %v790 = vmax.f32 %v782, 0.0
  %v791 = vmax.f32 %v783, 0.0
  %v792 = vmax.f32 %v784, 0.0
  %v793 = vmax.f32 %v785, 0.0
  %v794 = vmax.f32 %v786, 0.0
  %v795 = vmax.f32 %v787, 0.0
  %v796 = vld [vmem:[%s4] sm:$0xff]
  %v797 = vld [vmem:[%s4 + $0x8] sm:$0xff]
  %v798 = vld [vmem:[%s4 + $0x10] sm:$0xff]
  %v799 = vld [vmem:[%s4 + $0x18] sm:$0xff]
  %vm800 = vcmask 261120
  %v802 = vsel %vm800, %v796, 0
  %v805 = vsel %vm800, %v797, 0
  %v808 = vsel %vm800, %v798, 0
  %v811 = vsel %vm800, %v799, 0
  %813 = vmatprep.subr.mxu0 0.0
  %814 = vmatpush1.msra.mxu0 0.0
  %815 = vmatprep.subr.mxu0 0.0
  %816 = vmatpush1.msra.mxu0 0.0
  %817 = vmatprep.subr.mxu0 0.0
  %818 = vmatpush1.msra.mxu0 0.0
  %819 = vmatprep.subr.mxu0 0.0
  %820 = vmatpush1.msra.mxu0 0.0
  %821 = vmatprep.subr.mxu0 0.0
  %822 = vmatpush1.msra.mxu0 0.0
  %823 = vmatprep.subr.mxu0 0.0
  %824 = vmatpush1.msra.mxu0 0.0
  %825 = vmatprep.subr.mxu0 0.0
  %826 = vmatpush1.msra.mxu0 0.0
  %827 = vmatprep.subr.mxu0 0.0
  %828 = vmatpush1.msra.mxu0 0.0
  %829 = vmatprep.subr.mxu0 0.0
  %830 = vmatpush1.msra.mxu0 0.0
  %831 = vmatprep.subr.mxu0 0.0
  %832 = vmatpush1.msra.mxu0 0.0
  %833 = vmatprep.subr.mxu0 0.0
  %834 = vmatpush1.msra.mxu0 0.0
  %835 = vmatprep.subr.mxu0 0.0
  %836 = vmatpush1.msra.mxu0 0.0
  %837 = vmatprep.subr.mxu0 %v795
  %838 = vmatpush1.msra.mxu0 %v794
  %839 = vmatprep.subr.mxu0 %v793
  %840 = vmatpush1.msra.mxu0 %v792
  %841 = vmatprep.subr.mxu0 %v791
  %842 = vmatpush1.msra.mxu0 %v790
  %843 = vmatprep.subr.mxu0 %v789
  %844 = vmatpush1.msra.mxu0 %v788
  %845 = vmatprep.subr.mxu0 0.0
  %846 = vmatpush2.msra.mxu0 0.0
  %847 = vmatprep.subr.mxu0 0.0
  %848 = vmatpush2.msra.mxu0 0.0
  %849 = vmatprep.subr.mxu0 0.0
  %850 = vmatpush2.msra.mxu0 0.0
  %851 = vmatprep.subr.mxu0 0.0
  %852 = vmatpush2.msra.mxu0 0.0
  %853 = vmatprep.subr.mxu0 0.0
  %854 = vmatpush2.msra.mxu0 0.0
  %855 = vmatprep.subr.mxu0 0.0
  %856 = vmatpush2.msra.mxu0 0.0
  %857 = vmatprep.subr.mxu0 0.0
  %858 = vmatpush2.msra.mxu0 0.0
  %859 = vmatprep.subr.mxu0 0.0
  %860 = vmatpush2.msra.mxu0 0.0
  %861 = vmatprep.subr.mxu0 0.0
  %862 = vmatpush2.msra.mxu0 0.0
  %863 = vmatprep.subr.mxu0 0.0
  %864 = vmatpush2.msra.mxu0 0.0
  %865 = vmatprep.subr.mxu0 0.0
  %866 = vmatpush2.msra.mxu0 0.0
  %867 = vmatprep.subr.mxu0 0.0
  %868 = vmatpush2.msra.mxu0 0.0
  %869 = vmatprep.subr.mxu0 0.0
  %870 = vmatpush2.msra.mxu0 0.0
  %871 = vmatprep.subr.mxu0 0.0
  %872 = vmatpush2.msra.mxu0 0.0
  %873 = vmatprep.subr.mxu0 0.0
  %874 = vmatpush2.msra.mxu0 0.0
  %875 = vmatprep.subr.mxu0 0.0
  %876 = vmatpush2.msra.mxu0 0.0
  %877 = vmatprep.mubr.f32.mxu0 0.0
  %878 = vmatmul.mubr.f32.gmra.mxu0 %v802
  %v879 = vpop.f32.mrf.mxu0
  %v880 = vadd.f32 0.0, %v879
  %v881 = vpop.f32.mrf.mxu0
  %v882 = vadd.f32 0.0, %v881
  %883 = vmatprep.mubr.f32.mxu0 0.0
  %884 = vmatmul.mubr.f32.gmra.mxu0 %v805
  %v885 = vpop.f32.mrf.mxu0
  %v886 = vadd.f32 0.0, %v885
  %v887 = vpop.f32.mrf.mxu0
  %v888 = vadd.f32 0.0, %v887
  %889 = vmatprep.mubr.f32.mxu0 0.0
  %890 = vmatmul.mubr.f32.gmra.mxu0 %v808
  %v891 = vpop.f32.mrf.mxu0
  %v892 = vadd.f32 0.0, %v891
  %v893 = vpop.f32.mrf.mxu0
  %v894 = vadd.f32 0.0, %v893
  %895 = vmatprep.mubr.f32.mxu0 0.0
  %896 = vmatmul.mubr.f32.gmra.mxu0 %v811
  %v897 = vpop.f32.mrf.mxu0
  %v898 = vadd.f32 0.0, %v897
  %v899 = vpop.f32.mrf.mxu0
  %v900 = vadd.f32 0.0, %v899
  %901 = vdwg.mxu0
  %v902 = vld [vmem:[%s5] sm:$0xff]
  %v903 = vld [vmem:[%s5 + $0x8] sm:$0xff]
  %v904 = vld [vmem:[%s5 + $0x10] sm:$0xff]
  %v905 = vld [vmem:[%s5 + $0x18] sm:$0xff]
  %v907 = vsel %vm800, %v902, 0
  %v910 = vsel %vm800, %v903, 0
  %v913 = vsel %vm800, %v904, 0
  %v916 = vsel %vm800, %v905, 0
  %918 = vmatprep.subr.mxu0 0.0
  %919 = vmatpush1.msra.mxu0 0.0
  %920 = vmatprep.subr.mxu0 0.0
  %921 = vmatpush1.msra.mxu0 0.0
  %922 = vmatprep.subr.mxu0 0.0
  %923 = vmatpush1.msra.mxu0 0.0
  %924 = vmatprep.subr.mxu0 0.0
  %925 = vmatpush1.msra.mxu0 0.0
  %926 = vmatprep.subr.mxu0 0.0
  %927 = vmatpush1.msra.mxu0 0.0
  %928 = vmatprep.subr.mxu0 0.0
  %929 = vmatpush1.msra.mxu0 0.0
  %930 = vmatprep.subr.mxu0 0.0
  %931 = vmatpush1.msra.mxu0 0.0
  %932 = vmatprep.subr.mxu0 0.0
  %933 = vmatpush1.msra.mxu0 0.0
  %934 = vmatprep.subr.mxu0 0.0
  %935 = vmatpush1.msra.mxu0 0.0
  %936 = vmatprep.subr.mxu0 0.0
  %937 = vmatpush1.msra.mxu0 0.0
  %938 = vmatprep.subr.mxu0 0.0
  %939 = vmatpush1.msra.mxu0 0.0
  %940 = vmatprep.subr.mxu0 0.0
  %941 = vmatpush1.msra.mxu0 0.0
  %942 = vmatprep.subr.mxu0 %v795
  %943 = vmatpush1.msra.mxu0 %v794
  %944 = vmatprep.subr.mxu0 %v793
  %945 = vmatpush1.msra.mxu0 %v792
  %946 = vmatprep.subr.mxu0 %v791
  %947 = vmatpush1.msra.mxu0 %v790
  %948 = vmatprep.subr.mxu0 %v789
  %949 = vmatpush1.msra.mxu0 %v788
  %950 = vmatprep.subr.mxu0 0.0
  %951 = vmatpush2.msra.mxu0 0.0
  %952 = vmatprep.subr.mxu0 0.0
  %953 = vmatpush2.msra.mxu0 0.0
  %954 = vmatprep.subr.mxu0 0.0
  %955 = vmatpush2.msra.mxu0 0.0
  %956 = vmatprep.subr.mxu0 0.0
  %957 = vmatpush2.msra.mxu0 0.0
  %958 = vmatprep.subr.mxu0 0.0
  %959 = vmatpush2.msra.mxu0 0.0
  %960 = vmatprep.subr.mxu0 0.0
  %961 = vmatpush2.msra.mxu0 0.0
  %962 = vmatprep.subr.mxu0 0.0
  %963 = vmatpush2.msra.mxu0 0.0
  %964 = vmatprep.subr.mxu0 0.0
  %965 = vmatpush2.msra.mxu0 0.0
  %966 = vmatprep.subr.mxu0 0.0
  %967 = vmatpush2.msra.mxu0 0.0
  %968 = vmatprep.subr.mxu0 0.0
  %969 = vmatpush2.msra.mxu0 0.0
  %970 = vmatprep.subr.mxu0 0.0
  %971 = vmatpush2.msra.mxu0 0.0
  %972 = vmatprep.subr.mxu0 0.0
  %973 = vmatpush2.msra.mxu0 0.0
  %974 = vmatprep.subr.mxu0 0.0
  %975 = vmatpush2.msra.mxu0 0.0
  %976 = vmatprep.subr.mxu0 0.0
  %977 = vmatpush2.msra.mxu0 0.0
  %978 = vmatprep.subr.mxu0 0.0
  %979 = vmatpush2.msra.mxu0 0.0
  %980 = vmatprep.subr.mxu0 0.0
  %981 = vmatpush2.msra.mxu0 0.0
  %982 = vmatprep.mubr.f32.mxu0 0.0
  %983 = vmatmul.mubr.f32.gmra.mxu0 %v907
  %v984 = vpop.f32.mrf.mxu0
  %v985 = vadd.f32 0.0, %v984
  %v986 = vpop.f32.mrf.mxu0
  %v987 = vadd.f32 0.0, %v986
  %988 = vmatprep.mubr.f32.mxu0 0.0
  %989 = vmatmul.mubr.f32.gmra.mxu0 %v910
  %v990 = vpop.f32.mrf.mxu0
  %v991 = vadd.f32 0.0, %v990
  %v992 = vpop.f32.mrf.mxu0
  %v993 = vadd.f32 0.0, %v992
  %994 = vmatprep.mubr.f32.mxu0 0.0
  %995 = vmatmul.mubr.f32.gmra.mxu0 %v913
  %v996 = vpop.f32.mrf.mxu0
  %v997 = vadd.f32 0.0, %v996
  %v998 = vpop.f32.mrf.mxu0
  %v999 = vadd.f32 0.0, %v998
  %1000 = vmatprep.mubr.f32.mxu0 0.0
  %1001 = vmatmul.mubr.f32.gmra.mxu0 %v916
  %v1002 = vpop.f32.mrf.mxu0
  %v1003 = vadd.f32 0.0, %v1002
  %v1004 = vpop.f32.mrf.mxu0
  %v1005 = vadd.f32 0.0, %v1004
  %1006 = vdwg.mxu0
  %v1007 = vld [vmem:[%s2] sm:$0xff]
  %v1008 = vld [vmem:[%s2 + $0x8] sm:$0xff]
  %v1009 = vld [vmem:[%s2 + $0x10] sm:$0xff]
  %v1010 = vld [vmem:[%s2 + $0x18] sm:$0xff]
  %v1011 = vld [vmem:[%s2 + $0x20] sm:$0xff]
  %v1012 = vld [vmem:[%s2 + $0x28] sm:$0xff]
  %v1013 = vld [vmem:[%s2 + $0x30] sm:$0xff]
  %v1014 = vld [vmem:[%s2 + $0x38] sm:$0xff]
  %v1015 = vld [vmem:[%s2 + $0x40] sm:$0xff]
  %v1016 = vld [vmem:[%s2 + $0x48] sm:$0xff]
  %v1017 = vld [vmem:[%s2 + $0x50] sm:$0xff]
  %v1018 = vld [vmem:[%s2 + $0x58] sm:$0xff]
  %v1019 = vld [vmem:[%s2 + $0x60] sm:$0xff]
  %v1020 = vld [vmem:[%s2 + $0x68] sm:$0xff]
  %v1021 = vld [vmem:[%s2 + $0x70] sm:$0xff]
  %v1022 = vld [vmem:[%s2 + $0x78] sm:$0xff]
  %v1023 = vld [vmem:[%s2 + $0x80] sm:$0xff]
  %v1024 = vld [vmem:[%s2 + $0x88] sm:$0xff]
  %v1025 = vld [vmem:[%s2 + $0x90] sm:$0xff]
  %v1026 = vld [vmem:[%s2 + $0x98] sm:$0xff]
  %v1027 = vld [vmem:[%s2 + $0xa0] sm:$0xff]
  %v1028 = vld [vmem:[%s2 + $0xa8] sm:$0xff]
  %v1029 = vld [vmem:[%s2 + $0xb0] sm:$0xff]
  %v1030 = vld [vmem:[%s2 + $0xb8] sm:$0xff]
  %v1031 = vld [vmem:[%s2 + $0xc0] sm:$0xff]
  %v1032 = vld [vmem:[%s2 + $0xc8] sm:$0xff]
  %v1033 = vld [vmem:[%s2 + $0xd0] sm:$0xff]
  %v1034 = vld [vmem:[%s2 + $0xd8] sm:$0xff]
  %v1035 = vld [vmem:[%s2 + $0xe0] sm:$0xff]
  %v1036 = vld [vmem:[%s2 + $0xe8] sm:$0xff]
  %v1037 = vld [vmem:[%s2 + $0xf0] sm:$0xff]
  %v1038 = vld [vmem:[%s2 + $0xf8] sm:$0xff]
  %v1039 = vld [vmem:[%s2 + $0x100] sm:$0xff]
  %v1040 = vld [vmem:[%s2 + $0x108] sm:$0xff]
  %v1041 = vld [vmem:[%s2 + $0x110] sm:$0xff]
  %v1042 = vld [vmem:[%s2 + $0x118] sm:$0xff]
  %v1043 = vld [vmem:[%s2 + $0x120] sm:$0xff]
  %v1044 = vld [vmem:[%s2 + $0x128] sm:$0xff]
  %v1045 = vld [vmem:[%s2 + $0x130] sm:$0xff]
  %v1046 = vld [vmem:[%s2 + $0x138] sm:$0xff]
  %v1047 = vld [vmem:[%s2 + $0x140] sm:$0xff]
  %v1048 = vld [vmem:[%s2 + $0x148] sm:$0xff]
  %v1049 = vld [vmem:[%s2 + $0x150] sm:$0xff]
  %v1050 = vld [vmem:[%s2 + $0x158] sm:$0xff]
  %v1051 = vld [vmem:[%s2 + $0x160] sm:$0xff]
  %v1052 = vld [vmem:[%s2 + $0x168] sm:$0xff]
  %v1053 = vld [vmem:[%s2 + $0x170] sm:$0xff]
  %v1054 = vld [vmem:[%s2 + $0x178] sm:$0xff]
  %v1055 = vld [vmem:[%s2 + $0x180] sm:$0xff]
  %v1056 = vld [vmem:[%s2 + $0x188] sm:$0xff]
  %v1057 = vld [vmem:[%s2 + $0x190] sm:$0xff]
  %v1058 = vld [vmem:[%s2 + $0x198] sm:$0xff]
  %v1059 = vld [vmem:[%s2 + $0x1a0] sm:$0xff]
  %v1060 = vld [vmem:[%s2 + $0x1a8] sm:$0xff]
  %v1061 = vld [vmem:[%s2 + $0x1b0] sm:$0xff]
  %v1062 = vld [vmem:[%s2 + $0x1b8] sm:$0xff]
  %v1063 = vld [vmem:[%s2 + $0x1c0] sm:$0xff]
  %v1064 = vld [vmem:[%s2 + $0x1c8] sm:$0xff]
  %v1065 = vld [vmem:[%s2 + $0x1d0] sm:$0xff]
  %v1066 = vld [vmem:[%s2 + $0x1d8] sm:$0xff]
  %v1067 = vld [vmem:[%s2 + $0x1e0] sm:$0xff]
  %v1068 = vld [vmem:[%s2 + $0x1e8] sm:$0xff]
  %v1069 = vld [vmem:[%s2 + $0x1f0] sm:$0xff]
  %v1070 = vld [vmem:[%s2 + $0x1f8] sm:$0xff]
  %v1071 = vld [vmem:[%s2 + $0x200] sm:$0xff]
  %v1072 = vld [vmem:[%s2 + $0x208] sm:$0xff]
  %v1073 = vld [vmem:[%s2 + $0x210] sm:$0xff]
  %v1074 = vld [vmem:[%s2 + $0x218] sm:$0xff]
  %v1075 = vld [vmem:[%s2 + $0x220] sm:$0xff]
  %v1076 = vld [vmem:[%s2 + $0x228] sm:$0xff]
  %v1077 = vld [vmem:[%s2 + $0x230] sm:$0xff]
  %v1078 = vld [vmem:[%s2 + $0x238] sm:$0xff]
  %v1079 = vld [vmem:[%s2 + $0x240] sm:$0xff]
  %v1080 = vld [vmem:[%s2 + $0x248] sm:$0xff]
  %v1081 = vld [vmem:[%s2 + $0x250] sm:$0xff]
  %v1082 = vld [vmem:[%s2 + $0x258] sm:$0xff]
  %v1083 = vld [vmem:[%s2 + $0x260] sm:$0xff]
  %v1084 = vld [vmem:[%s2 + $0x268] sm:$0xff]
  %v1085 = vld [vmem:[%s2 + $0x270] sm:$0xff]
  %v1086 = vld [vmem:[%s2 + $0x278] sm:$0xff]
  %v1087 = vld [vmem:[%s2 + $0x280] sm:$0xff]
  %v1088 = vld [vmem:[%s2 + $0x288] sm:$0xff]
  %v1089 = vld [vmem:[%s2 + $0x290] sm:$0xff]
  %v1090 = vld [vmem:[%s2 + $0x298] sm:$0xff]
  %v1091 = vld [vmem:[%s2 + $0x2a0] sm:$0xff]
  %v1092 = vld [vmem:[%s2 + $0x2a8] sm:$0xff]
  %v1093 = vld [vmem:[%s2 + $0x2b0] sm:$0xff]
  %v1094 = vld [vmem:[%s2 + $0x2b8] sm:$0xff]
  %v1095 = vld [vmem:[%s2 + $0x2c0] sm:$0xff]
  %v1096 = vld [vmem:[%s2 + $0x2c8] sm:$0xff]
  %v1097 = vld [vmem:[%s2 + $0x2d0] sm:$0xff]
  %v1098 = vld [vmem:[%s2 + $0x2d8] sm:$0xff]
  %v1099 = vld [vmem:[%s2 + $0x2e0] sm:$0xff]
  %v1100 = vld [vmem:[%s2 + $0x2e8] sm:$0xff]
  %v1101 = vld [vmem:[%s2 + $0x2f0] sm:$0xff]
  %v1102 = vld [vmem:[%s2 + $0x2f8] sm:$0xff]
  %v1103 = vld [vmem:[%s2 + $0x300] sm:$0xff]
  %v1104 = vld [vmem:[%s2 + $0x308] sm:$0xff]
  %v1105 = vld [vmem:[%s2 + $0x310] sm:$0xff]
  %v1106 = vld [vmem:[%s2 + $0x318] sm:$0xff]
  %v1107 = vld [vmem:[%s2 + $0x320] sm:$0xff]
  %v1108 = vld [vmem:[%s2 + $0x328] sm:$0xff]
  %v1109 = vld [vmem:[%s2 + $0x330] sm:$0xff]
  %v1110 = vld [vmem:[%s2 + $0x338] sm:$0xff]
  %v1111 = vld [vmem:[%s2 + $0x340] sm:$0xff]
  %v1112 = vld [vmem:[%s2 + $0x348] sm:$0xff]
  %v1113 = vld [vmem:[%s2 + $0x350] sm:$0xff]
  %v1114 = vld [vmem:[%s2 + $0x358] sm:$0xff]
  %v1115 = vld [vmem:[%s2 + $0x360] sm:$0xff]
  %v1116 = vld [vmem:[%s2 + $0x368] sm:$0xff]
  %v1117 = vld [vmem:[%s2 + $0x370] sm:$0xff]
  %v1118 = vld [vmem:[%s2 + $0x378] sm:$0xff]
  %v1119 = vld [vmem:[%s2 + $0x380] sm:$0xff]
  %v1120 = vld [vmem:[%s2 + $0x388] sm:$0xff]
  %v1121 = vld [vmem:[%s2 + $0x390] sm:$0xff]
  %v1122 = vld [vmem:[%s2 + $0x398] sm:$0xff]
  %v1123 = vld [vmem:[%s2 + $0x3a0] sm:$0xff]
  %v1124 = vld [vmem:[%s2 + $0x3a8] sm:$0xff]
  %v1125 = vld [vmem:[%s2 + $0x3b0] sm:$0xff]
  %v1126 = vld [vmem:[%s2 + $0x3b8] sm:$0xff]
  %v1127 = vld [vmem:[%s2 + $0x3c0] sm:$0xff]
  %v1128 = vld [vmem:[%s2 + $0x3c8] sm:$0xff]
  %v1129 = vld [vmem:[%s2 + $0x3d0] sm:$0xff]
  %v1130 = vld [vmem:[%s2 + $0x3d8] sm:$0xff]
  %v1131 = vld [vmem:[%s2 + $0x3e0] sm:$0xff]
  %v1132 = vld [vmem:[%s2 + $0x3e8] sm:$0xff]
  %v1133 = vld [vmem:[%s2 + $0x3f0] sm:$0xff]
  %v1134 = vld [vmem:[%s2 + $0x3f8] sm:$0xff]
  %v1135 = vld [vmem:[%s2 + $0x400] sm:$0xff]
  %v1136 = vld [vmem:[%s2 + $0x408] sm:$0xff]
  %v1137 = vld [vmem:[%s2 + $0x410] sm:$0xff]
  %v1138 = vld [vmem:[%s2 + $0x418] sm:$0xff]
  %v1139 = vld [vmem:[%s2 + $0x420] sm:$0xff]
  %v1140 = vld [vmem:[%s2 + $0x428] sm:$0xff]
  %v1141 = vld [vmem:[%s2 + $0x430] sm:$0xff]
  %v1142 = vld [vmem:[%s2 + $0x438] sm:$0xff]
  %v1143 = vld [vmem:[%s2 + $0x440] sm:$0xff]
  %v1144 = vld [vmem:[%s2 + $0x448] sm:$0xff]
  %v1145 = vld [vmem:[%s2 + $0x450] sm:$0xff]
  %v1146 = vld [vmem:[%s2 + $0x458] sm:$0xff]
  %v1147 = vld [vmem:[%s2 + $0x460] sm:$0xff]
  %v1148 = vld [vmem:[%s2 + $0x468] sm:$0xff]
  %v1149 = vld [vmem:[%s2 + $0x470] sm:$0xff]
  %v1150 = vld [vmem:[%s2 + $0x478] sm:$0xff]
  %v1151 = vld [vmem:[%s2 + $0x480] sm:$0xff]
  %v1152 = vld [vmem:[%s2 + $0x488] sm:$0xff]
  %v1153 = vld [vmem:[%s2 + $0x490] sm:$0xff]
  %v1154 = vld [vmem:[%s2 + $0x498] sm:$0xff]
  %v1155 = vld [vmem:[%s2 + $0x4a0] sm:$0xff]
  %v1156 = vld [vmem:[%s2 + $0x4a8] sm:$0xff]
  %v1157 = vld [vmem:[%s2 + $0x4b0] sm:$0xff]
  %v1158 = vld [vmem:[%s2 + $0x4b8] sm:$0xff]
  %v1159 = vld [vmem:[%s2 + $0x4c0] sm:$0xff]
  %v1160 = vld [vmem:[%s2 + $0x4c8] sm:$0xff]
  %v1161 = vld [vmem:[%s2 + $0x4d0] sm:$0xff]
  %v1162 = vld [vmem:[%s2 + $0x4d8] sm:$0xff]
  %v1163 = vld [vmem:[%s2 + $0x4e0] sm:$0xff]
  %v1164 = vld [vmem:[%s2 + $0x4e8] sm:$0xff]
  %v1165 = vld [vmem:[%s2 + $0x4f0] sm:$0xff]
  %v1166 = vld [vmem:[%s2 + $0x4f8] sm:$0xff]
  %v1167 = vld [vmem:[%s2 + $0x500] sm:$0xff]
  %v1168 = vld [vmem:[%s2 + $0x508] sm:$0xff]
  %v1169 = vld [vmem:[%s2 + $0x510] sm:$0xff]
  %v1170 = vld [vmem:[%s2 + $0x518] sm:$0xff]
  %v1171 = vld [vmem:[%s2 + $0x520] sm:$0xff]
  %v1172 = vld [vmem:[%s2 + $0x528] sm:$0xff]
  %v1173 = vld [vmem:[%s2 + $0x530] sm:$0xff]
  %v1174 = vld [vmem:[%s2 + $0x538] sm:$0xff]
  %v1175 = vld [vmem:[%s2 + $0x540] sm:$0xff]
  %v1176 = vld [vmem:[%s2 + $0x548] sm:$0xff]
  %v1177 = vld [vmem:[%s2 + $0x550] sm:$0xff]
  %v1178 = vld [vmem:[%s2 + $0x558] sm:$0xff]
  %v1179 = vld [vmem:[%s2 + $0x560] sm:$0xff]
  %v1180 = vld [vmem:[%s2 + $0x568] sm:$0xff]
  %v1181 = vld [vmem:[%s2 + $0x570] sm:$0xff]
  %v1182 = vld [vmem:[%s2 + $0x578] sm:$0xff]
  %v1183 = vld [vmem:[%s2 + $0x580] sm:$0xff]
  %v1184 = vld [vmem:[%s2 + $0x588] sm:$0xff]
  %v1185 = vld [vmem:[%s2 + $0x590] sm:$0xff]
  %v1186 = vld [vmem:[%s2 + $0x598] sm:$0xff]
  %v1187 = vld [vmem:[%s2 + $0x5a0] sm:$0xff]
  %v1188 = vld [vmem:[%s2 + $0x5a8] sm:$0xff]
  %v1189 = vld [vmem:[%s2 + $0x5b0] sm:$0xff]
  %v1190 = vld [vmem:[%s2 + $0x5b8] sm:$0xff]
  %v1191 = vld [vmem:[%s2 + $0x5c0] sm:$0xff]
  %v1192 = vld [vmem:[%s2 + $0x5c8] sm:$0xff]
  %v1193 = vld [vmem:[%s2 + $0x5d0] sm:$0xff]
  %v1194 = vld [vmem:[%s2 + $0x5d8] sm:$0xff]
  %v1195 = vld [vmem:[%s2 + $0x5e0] sm:$0xff]
  %v1196 = vld [vmem:[%s2 + $0x5e8] sm:$0xff]
  %v1197 = vld [vmem:[%s2 + $0x5f0] sm:$0xff]
  %v1198 = vld [vmem:[%s2 + $0x5f8] sm:$0xff]
  %1199 = vmatprep.subr.mxu0 %v1038
  %1200 = vmatpush1.msra.mxu0 %v1037
  %1201 = vmatprep.subr.mxu0 %v1036
  %1202 = vmatpush1.msra.mxu0 %v1035
  %1203 = vmatprep.subr.mxu0 %v1034
  %1204 = vmatpush1.msra.mxu0 %v1033
  %1205 = vmatprep.subr.mxu0 %v1032
  %1206 = vmatpush1.msra.mxu0 %v1031
  %1207 = vmatprep.subr.mxu0 %v1030
  %1208 = vmatpush1.msra.mxu0 %v1029
  %1209 = vmatprep.subr.mxu0 %v1028
  %1210 = vmatpush1.msra.mxu0 %v1027
  %1211 = vmatprep.subr.mxu0 %v1026
  %1212 = vmatpush1.msra.mxu0 %v1025
  %1213 = vmatprep.subr.mxu0 %v1024
  %1214 = vmatpush1.msra.mxu0 %v1023
  %1215 = vmatprep.subr.mxu0 %v1022
  %1216 = vmatpush1.msra.mxu0 %v1021
  %1217 = vmatprep.subr.mxu0 %v1020
  %1218 = vmatpush1.msra.mxu0 %v1019
  %1219 = vmatprep.subr.mxu0 %v1018
  %1220 = vmatpush1.msra.mxu0 %v1017
  %1221 = vmatprep.subr.mxu0 %v1016
  %1222 = vmatpush1.msra.mxu0 %v1015
  %1223 = vmatprep.subr.mxu0 %v1014
  %1224 = vmatpush1.msra.mxu0 %v1013
  %1225 = vmatprep.subr.mxu0 %v1012
  %1226 = vmatpush1.msra.mxu0 %v1011
  %1227 = vmatprep.subr.mxu0 %v1010
  %1228 = vmatpush1.msra.mxu0 %v1009
  %1229 = vmatprep.subr.mxu0 %v1008
  %1230 = vmatpush1.msra.mxu0 %v1007
  %1231 = vmatprep.subr.mxu0 %v1070
  %1232 = vmatpush2.msra.mxu0 %v1069
  %1233 = vmatprep.subr.mxu0 %v1068
  %1234 = vmatpush2.msra.mxu0 %v1067
  %1235 = vmatprep.subr.mxu0 %v1066
  %1236 = vmatpush2.msra.mxu0 %v1065
  %1237 = vmatprep.subr.mxu0 %v1064
  %1238 = vmatpush2.msra.mxu0 %v1063
  %1239 = vmatprep.subr.mxu0 %v1062
  %1240 = vmatpush2.msra.mxu0 %v1061
  %1241 = vmatprep.subr.mxu0 %v1060
  %1242 = vmatpush2.msra.mxu0 %v1059
  %1243 = vmatprep.subr.mxu0 %v1058
  %1244 = vmatpush2.msra.mxu0 %v1057
  %1245 = vmatprep.subr.mxu0 %v1056
  %1246 = vmatpush2.msra.mxu0 %v1055
  %1247 = vmatprep.subr.mxu0 %v1054
  %1248 = vmatpush2.msra.mxu0 %v1053
  %1249 = vmatprep.subr.mxu0 %v1052
  %1250 = vmatpush2.msra.mxu0 %v1051
  %1251 = vmatprep.subr.mxu0 %v1050
  %1252 = vmatpush2.msra.mxu0 %v1049
  %1253 = vmatprep.subr.mxu0 %v1048
  %1254 = vmatpush2.msra.mxu0 %v1047
  %1255 = vmatprep.subr.mxu0 %v1046
  %1256 = vmatpush2.msra.mxu0 %v1045
  %1257 = vmatprep.subr.mxu0 %v1044
  %1258 = vmatpush2.msra.mxu0 %v1043
  %1259 = vmatprep.subr.mxu0 %v1042
  %1260 = vmatpush2.msra.mxu0 %v1041
  %1261 = vmatprep.subr.mxu0 %v1040
  %1262 = vmatpush2.msra.mxu0 %v1039
  %1263 = vmatprep.mubr.f32.mxu0 %v882
  %1264 = vmatmul.mubr.f32.gmra.mxu0 %v880
  %v1265 = vpop.f32.mrf.mxu0
  %v1266 = vadd.f32 0.0, %v1265
  %v1267 = vpop.f32.mrf.mxu0
  %v1268 = vadd.f32 0.0, %v1267
  %1269 = vmatprep.mubr.f32.mxu0 %v888
  %1270 = vmatmul.mubr.f32.gmra.mxu0 %v886
  %v1271 = vpop.f32.mrf.mxu0
  %v1272 = vadd.f32 0.0, %v1271
  %v1273 = vpop.f32.mrf.mxu0
  %v1274 = vadd.f32 0.0, %v1273
  %1275 = vmatprep.mubr.f32.mxu0 %v894
  %1276 = vmatmul.mubr.f32.gmra.mxu0 %v892
  %v1277 = vpop.f32.mrf.mxu0
  %v1278 = vadd.f32 0.0, %v1277
  %v1279 = vpop.f32.mrf.mxu0
  %v1280 = vadd.f32 0.0, %v1279
  %1281 = vmatprep.mubr.f32.mxu0 %v900
  %1282 = vmatmul.mubr.f32.gmra.mxu0 %v898
  %v1283 = vpop.f32.mrf.mxu0
  %v1284 = vadd.f32 0.0, %v1283
  %v1285 = vpop.f32.mrf.mxu0
  %v1286 = vadd.f32 0.0, %v1285
  %1287 = vdwg.mxu0
  %1288 = vmatprep.subr.mxu0 %v1102
  %1289 = vmatpush1.msra.mxu0 %v1101
  %1290 = vmatprep.subr.mxu0 %v1100
  %1291 = vmatpush1.msra.mxu0 %v1099
  %1292 = vmatprep.subr.mxu0 %v1098
  %1293 = vmatpush1.msra.mxu0 %v1097
  %1294 = vmatprep.subr.mxu0 %v1096
  %1295 = vmatpush1.msra.mxu0 %v1095
  %1296 = vmatprep.subr.mxu0 %v1094
  %1297 = vmatpush1.msra.mxu0 %v1093
  %1298 = vmatprep.subr.mxu0 %v1092
  %1299 = vmatpush1.msra.mxu0 %v1091
  %1300 = vmatprep.subr.mxu0 %v1090
  %1301 = vmatpush1.msra.mxu0 %v1089
  %1302 = vmatprep.subr.mxu0 %v1088
  %1303 = vmatpush1.msra.mxu0 %v1087
  %1304 = vmatprep.subr.mxu0 %v1086
  %1305 = vmatpush1.msra.mxu0 %v1085
  %1306 = vmatprep.subr.mxu0 %v1084
  %1307 = vmatpush1.msra.mxu0 %v1083
  %1308 = vmatprep.subr.mxu0 %v1082
  %1309 = vmatpush1.msra.mxu0 %v1081
  %1310 = vmatprep.subr.mxu0 %v1080
  %1311 = vmatpush1.msra.mxu0 %v1079
  %1312 = vmatprep.subr.mxu0 %v1078
  %1313 = vmatpush1.msra.mxu0 %v1077
  %1314 = vmatprep.subr.mxu0 %v1076
  %1315 = vmatpush1.msra.mxu0 %v1075
  %1316 = vmatprep.subr.mxu0 %v1074
  %1317 = vmatpush1.msra.mxu0 %v1073
  %1318 = vmatprep.subr.mxu0 %v1072
  %1319 = vmatpush1.msra.mxu0 %v1071
  %1320 = vmatprep.subr.mxu0 %v1134
  %1321 = vmatpush2.msra.mxu0 %v1133
  %1322 = vmatprep.subr.mxu0 %v1132
  %1323 = vmatpush2.msra.mxu0 %v1131
  %1324 = vmatprep.subr.mxu0 %v1130
  %1325 = vmatpush2.msra.mxu0 %v1129
  %1326 = vmatprep.subr.mxu0 %v1128
  %1327 = vmatpush2.msra.mxu0 %v1127
  %1328 = vmatprep.subr.mxu0 %v1126
  %1329 = vmatpush2.msra.mxu0 %v1125
  %1330 = vmatprep.subr.mxu0 %v1124
  %1331 = vmatpush2.msra.mxu0 %v1123
  %1332 = vmatprep.subr.mxu0 %v1122
  %1333 = vmatpush2.msra.mxu0 %v1121
  %1334 = vmatprep.subr.mxu0 %v1120
  %1335 = vmatpush2.msra.mxu0 %v1119
  %1336 = vmatprep.subr.mxu0 %v1118
  %1337 = vmatpush2.msra.mxu0 %v1117
  %1338 = vmatprep.subr.mxu0 %v1116
  %1339 = vmatpush2.msra.mxu0 %v1115
  %1340 = vmatprep.subr.mxu0 %v1114
  %1341 = vmatpush2.msra.mxu0 %v1113
  %1342 = vmatprep.subr.mxu0 %v1112
  %1343 = vmatpush2.msra.mxu0 %v1111
  %1344 = vmatprep.subr.mxu0 %v1110
  %1345 = vmatpush2.msra.mxu0 %v1109
  %1346 = vmatprep.subr.mxu0 %v1108
  %1347 = vmatpush2.msra.mxu0 %v1107
  %1348 = vmatprep.subr.mxu0 %v1106
  %1349 = vmatpush2.msra.mxu0 %v1105
  %1350 = vmatprep.subr.mxu0 %v1104
  %1351 = vmatpush2.msra.mxu0 %v1103
  %1352 = vmatprep.mubr.f32.mxu0 %v789
  %1353 = vmatmul.mubr.f32.gmra.mxu0 %v788
  %v1354 = vpop.f32.mrf.mxu0
  %v1355 = vadd.f32 %v1266, %v1354
  %v1356 = vpop.f32.mrf.mxu0
  %v1357 = vadd.f32 %v1268, %v1356
  %1358 = vmatprep.mubr.f32.mxu0 %v791
  %1359 = vmatmul.mubr.f32.gmra.mxu0 %v790
  %v1360 = vpop.f32.mrf.mxu0
  %v1361 = vadd.f32 %v1272, %v1360
  %v1362 = vpop.f32.mrf.mxu0
  %v1363 = vadd.f32 %v1274, %v1362
  %1364 = vmatprep.mubr.f32.mxu0 %v793
  %1365 = vmatmul.mubr.f32.gmra.mxu0 %v792
  %v1366 = vpop.f32.mrf.mxu0
  %v1367 = vadd.f32 %v1278, %v1366
  %v1368 = vpop.f32.mrf.mxu0
  %v1369 = vadd.f32 %v1280, %v1368
  %1370 = vmatprep.mubr.f32.mxu0 %v795
  %1371 = vmatmul.mubr.f32.gmra.mxu0 %v794
  %v1372 = vpop.f32.mrf.mxu0
  %v1373 = vadd.f32 %v1284, %v1372
  %v1374 = vpop.f32.mrf.mxu0
  %v1375 = vadd.f32 %v1286, %v1374
  %1376 = vdwg.mxu0
  %1377 = vmatprep.subr.mxu0 %v1166
  %1378 = vmatpush1.msra.mxu0 %v1165
  %1379 = vmatprep.subr.mxu0 %v1164
  %1380 = vmatpush1.msra.mxu0 %v1163
  %1381 = vmatprep.subr.mxu0 %v1162
  %1382 = vmatpush1.msra.mxu0 %v1161
  %1383 = vmatprep.subr.mxu0 %v1160
  %1384 = vmatpush1.msra.mxu0 %v1159
  %1385 = vmatprep.subr.mxu0 %v1158
  %1386 = vmatpush1.msra.mxu0 %v1157
  %1387 = vmatprep.subr.mxu0 %v1156
  %1388 = vmatpush1.msra.mxu0 %v1155
  %1389 = vmatprep.subr.mxu0 %v1154
  %1390 = vmatpush1.msra.mxu0 %v1153
  %1391 = vmatprep.subr.mxu0 %v1152
  %1392 = vmatpush1.msra.mxu0 %v1151
  %1393 = vmatprep.subr.mxu0 %v1150
  %1394 = vmatpush1.msra.mxu0 %v1149
  %1395 = vmatprep.subr.mxu0 %v1148
  %1396 = vmatpush1.msra.mxu0 %v1147
  %1397 = vmatprep.subr.mxu0 %v1146
  %1398 = vmatpush1.msra.mxu0 %v1145
  %1399 = vmatprep.subr.mxu0 %v1144
  %1400 = vmatpush1.msra.mxu0 %v1143
  %1401 = vmatprep.subr.mxu0 %v1142
  %1402 = vmatpush1.msra.mxu0 %v1141
  %1403 = vmatprep.subr.mxu0 %v1140
  %1404 = vmatpush1.msra.mxu0 %v1139
  %1405 = vmatprep.subr.mxu0 %v1138
  %1406 = vmatpush1.msra.mxu0 %v1137
  %1407 = vmatprep.subr.mxu0 %v1136
  %1408 = vmatpush1.msra.mxu0 %v1135
  %1409 = vmatprep.subr.mxu0 %v1198
  %1410 = vmatpush2.msra.mxu0 %v1197
  %1411 = vmatprep.subr.mxu0 %v1196
  %1412 = vmatpush2.msra.mxu0 %v1195
  %1413 = vmatprep.subr.mxu0 %v1194
  %1414 = vmatpush2.msra.mxu0 %v1193
  %1415 = vmatprep.subr.mxu0 %v1192
  %1416 = vmatpush2.msra.mxu0 %v1191
  %1417 = vmatprep.subr.mxu0 %v1190
  %1418 = vmatpush2.msra.mxu0 %v1189
  %1419 = vmatprep.subr.mxu0 %v1188
  %1420 = vmatpush2.msra.mxu0 %v1187
  %1421 = vmatprep.subr.mxu0 %v1186
  %1422 = vmatpush2.msra.mxu0 %v1185
  %1423 = vmatprep.subr.mxu0 %v1184
  %1424 = vmatpush2.msra.mxu0 %v1183
  %1425 = vmatprep.subr.mxu0 %v1182
  %1426 = vmatpush2.msra.mxu0 %v1181
  %1427 = vmatprep.subr.mxu0 %v1180
  %1428 = vmatpush2.msra.mxu0 %v1179
  %1429 = vmatprep.subr.mxu0 %v1178
  %1430 = vmatpush2.msra.mxu0 %v1177
  %1431 = vmatprep.subr.mxu0 %v1176
  %1432 = vmatpush2.msra.mxu0 %v1175
  %1433 = vmatprep.subr.mxu0 %v1174
  %1434 = vmatpush2.msra.mxu0 %v1173
  %1435 = vmatprep.subr.mxu0 %v1172
  %1436 = vmatpush2.msra.mxu0 %v1171
  %1437 = vmatprep.subr.mxu0 %v1170
  %1438 = vmatpush2.msra.mxu0 %v1169
  %1439 = vmatprep.subr.mxu0 %v1168
  %1440 = vmatpush2.msra.mxu0 %v1167
  %1441 = vmatprep.mubr.f32.mxu0 %v987
  %1442 = vmatmul.mubr.f32.gmra.mxu0 %v985
  %v1443 = vpop.f32.mrf.mxu0
  %v1444 = vadd.f32 %v1355, %v1443
  %v1445 = vpop.f32.mrf.mxu0
  %v1446 = vadd.f32 %v1357, %v1445
  %1447 = vmatprep.mubr.f32.mxu0 %v993
  %1448 = vmatmul.mubr.f32.gmra.mxu0 %v991
  %v1449 = vpop.f32.mrf.mxu0
  %v1450 = vadd.f32 %v1361, %v1449
  %v1451 = vpop.f32.mrf.mxu0
  %v1452 = vadd.f32 %v1363, %v1451
  %1453 = vmatprep.mubr.f32.mxu0 %v999
  %1454 = vmatmul.mubr.f32.gmra.mxu0 %v997
  %v1455 = vpop.f32.mrf.mxu0
  %v1456 = vadd.f32 %v1367, %v1455
  %v1457 = vpop.f32.mrf.mxu0
  %v1458 = vadd.f32 %v1369, %v1457
  %1459 = vmatprep.mubr.f32.mxu0 %v1005
  %1460 = vmatmul.mubr.f32.gmra.mxu0 %v1003
  %v1461 = vpop.f32.mrf.mxu0
  %v1462 = vadd.f32 %v1373, %v1461
  %v1463 = vpop.f32.mrf.mxu0
  %v1464 = vadd.f32 %v1375, %v1463
  %1465 = vdwg.mxu0
  %v1466 = vadd.f32 %v1444, %v1450
  %v1467 = vadd.f32 %v1466, %v1456
  %v1468 = vadd.f32 %v1467, %v1462
  %v1469 = vrot.slane %v1468, 4
  %v1470 = vadd.f32 %v1468, %v1469
  %v1471 = vrot.slane %v1470, 2
  %v1472 = vadd.f32 %v1470, %v1471
  %v1473 = vrot.slane %v1472, 1
  %v1474 = vadd.f32 %v1472, %v1473
  %v1475 = vadd.f32 %v1446, %v1452
  %v1476 = vadd.f32 %v1475, %v1458
  %v1477 = vadd.f32 %v1476, %v1464
  %v1478 = vrot.slane %v1477, 4
  %v1479 = vadd.f32 %v1477, %v1478
  %v1480 = vrot.slane %v1479, 2
  %v1481 = vadd.f32 %v1479, %v1480
  %v1482 = vrot.slane %v1481, 1
  %v1483 = vadd.f32 %v1481, %v1482
  %v1484 = vmul.f32 %v1444, %v1444
  %v1485 = vmul.f32 %v1446, %v1446
  %v1486 = vmul.f32 %v1450, %v1450
  %v1487 = vmul.f32 %v1452, %v1452
  %v1488 = vmul.f32 %v1456, %v1456
  %v1489 = vmul.f32 %v1458, %v1458
  %v1490 = vmul.f32 %v1462, %v1462
  %v1491 = vmul.f32 %v1464, %v1464
  %v1492 = vadd.f32 %v1484, %v1486
  %v1493 = vadd.f32 %v1492, %v1488
  %v1494 = vadd.f32 %v1493, %v1490
  %v1495 = vrot.slane %v1494, 4
  %v1496 = vadd.f32 %v1494, %v1495
  %v1497 = vrot.slane %v1496, 2
  %v1498 = vadd.f32 %v1496, %v1497
  %v1499 = vrot.slane %v1498, 1
  %v1500 = vadd.f32 %v1498, %v1499
  %v1501 = vadd.f32 %v1485, %v1487
  %v1502 = vadd.f32 %v1501, %v1489
  %v1503 = vadd.f32 %v1502, %v1491
  %v1504 = vrot.slane %v1503, 4
  %v1505 = vadd.f32 %v1503, %v1504
  %v1506 = vrot.slane %v1505, 2
  %v1507 = vadd.f32 %v1505, %v1506
  %v1508 = vrot.slane %v1507, 1
  %v1509 = vadd.f32 %v1507, %v1508
  %1510 = vmatprep.subr.mxu0 0.0
  %1511 = vmatpush1.msra.mxu0 %v434
  %1512 = vmatprep.subr.mxu0 0.0
  %1513 = vmatpush1.msra.mxu0 %v433
  %1514 = vmatprep.subr.mxu0 0.0
  %1515 = vmatpush1.msra.mxu0 %v432
  %1516 = vmatprep.subr.mxu0 0.0
  %1517 = vmatpush1.msra.mxu0 %v431
  %1518 = vmatprep.subr.mxu0 0.0
  %1519 = vmatpush1.msra.mxu0 %v430
  %1520 = vmatprep.subr.mxu0 0.0
  %1521 = vmatpush1.msra.mxu0 %v429
  %1522 = vmatprep.subr.mxu0 0.0
  %1523 = vmatpush1.msra.mxu0 %v428
  %1524 = vmatprep.subr.mxu0 0.0
  %1525 = vmatpush1.msra.mxu0 %v427
  %1526 = vmatprep.subr.mxu0 0.0
  %1527 = vmatpush1.msra.mxu0 %v426
  %1528 = vmatprep.subr.mxu0 0.0
  %1529 = vmatpush1.msra.mxu0 %v425
  %1530 = vmatprep.subr.mxu0 0.0
  %1531 = vmatpush1.msra.mxu0 %v424
  %1532 = vmatprep.subr.mxu0 0.0
  %1533 = vmatpush1.msra.mxu0 %v423
  %1534 = vmatprep.subr.mxu0 0.0
  %1535 = vmatpush1.msra.mxu0 %v422
  %1536 = vmatprep.subr.mxu0 0.0
  %1537 = vmatpush1.msra.mxu0 %v421
  %1538 = vmatprep.subr.mxu0 0.0
  %1539 = vmatpush1.msra.mxu0 %v420
  %1540 = vmatprep.subr.mxu0 0.0
  %1541 = vmatpush1.msra.mxu0 %v419
  %1542 = vmatprep.subr.mxu0 0.0
  %1543 = vmatpush2.msra.mxu0 %v450
  %1544 = vmatprep.subr.mxu0 0.0
  %1545 = vmatpush2.msra.mxu0 %v449
  %1546 = vmatprep.subr.mxu0 0.0
  %1547 = vmatpush2.msra.mxu0 %v448
  %1548 = vmatprep.subr.mxu0 0.0
  %1549 = vmatpush2.msra.mxu0 %v447
  %1550 = vmatprep.subr.mxu0 0.0
  %1551 = vmatpush2.msra.mxu0 %v446
  %1552 = vmatprep.subr.mxu0 0.0
  %1553 = vmatpush2.msra.mxu0 %v445
  %1554 = vmatprep.subr.mxu0 0.0
  %1555 = vmatpush2.msra.mxu0 %v444
  %1556 = vmatprep.subr.mxu0 0.0
  %1557 = vmatpush2.msra.mxu0 %v443
  %1558 = vmatprep.subr.mxu0 0.0
  %1559 = vmatpush2.msra.mxu0 %v442
  %1560 = vmatprep.subr.mxu0 0.0
  %1561 = vmatpush2.msra.mxu0 %v441
  %1562 = vmatprep.subr.mxu0 0.0
  %1563 = vmatpush2.msra.mxu0 %v440
  %1564 = vmatprep.subr.mxu0 0.0
  %1565 = vmatpush2.msra.mxu0 %v439
  %1566 = vmatprep.subr.mxu0 0.0
  %1567 = vmatpush2.msra.mxu0 %v438
  %1568 = vmatprep.subr.mxu0 0.0
  %1569 = vmatpush2.msra.mxu0 %v437
  %1570 = vmatprep.subr.mxu0 0.0
  %1571 = vmatpush2.msra.mxu0 %v436
  %1572 = vmatprep.subr.mxu0 0.0
  %1573 = vmatpush2.msra.mxu0 %v435
  %1574 = vmatprep.mubr.f32.mxu0 %v1483
  %1575 = vmatmul.mubr.f32.gmra.mxu0 %v1474
  %v1576 = vpop.f32.mrf.mxu0
  %v1577 = vadd.f32 0.0, %v1576
  %v1578 = vpop.f32.mrf.mxu0
  %1579 = vdwg.mxu0
  %v1580 = vmul.f32 %v1577, 0.001953125
  %1581 = vmatprep.subr.mxu0 0.0
  %1582 = vmatpush1.msra.mxu0 %v434
  %1583 = vmatprep.subr.mxu0 0.0
  %1584 = vmatpush1.msra.mxu0 %v433
  %1585 = vmatprep.subr.mxu0 0.0
  %1586 = vmatpush1.msra.mxu0 %v432
  %1587 = vmatprep.subr.mxu0 0.0
  %1588 = vmatpush1.msra.mxu0 %v431
  %1589 = vmatprep.subr.mxu0 0.0
  %1590 = vmatpush1.msra.mxu0 %v430
  %1591 = vmatprep.subr.mxu0 0.0
  %1592 = vmatpush1.msra.mxu0 %v429
  %1593 = vmatprep.subr.mxu0 0.0
  %1594 = vmatpush1.msra.mxu0 %v428
  %1595 = vmatprep.subr.mxu0 0.0
  %1596 = vmatpush1.msra.mxu0 %v427
  %1597 = vmatprep.subr.mxu0 0.0
  %1598 = vmatpush1.msra.mxu0 %v426
  %1599 = vmatprep.subr.mxu0 0.0
  %1600 = vmatpush1.msra.mxu0 %v425
  %1601 = vmatprep.subr.mxu0 0.0
  %1602 = vmatpush1.msra.mxu0 %v424
  %1603 = vmatprep.subr.mxu0 0.0
  %1604 = vmatpush1.msra.mxu0 %v423
  %1605 = vmatprep.subr.mxu0 0.0
  %1606 = vmatpush1.msra.mxu0 %v422
  %1607 = vmatprep.subr.mxu0 0.0
  %1608 = vmatpush1.msra.mxu0 %v421
  %1609 = vmatprep.subr.mxu0 0.0
  %1610 = vmatpush1.msra.mxu0 %v420
  %1611 = vmatprep.subr.mxu0 0.0
  %1612 = vmatpush1.msra.mxu0 %v419
  %1613 = vmatprep.subr.mxu0 0.0
  %1614 = vmatpush2.msra.mxu0 %v450
  %1615 = vmatprep.subr.mxu0 0.0
  %1616 = vmatpush2.msra.mxu0 %v449
  %1617 = vmatprep.subr.mxu0 0.0
  %1618 = vmatpush2.msra.mxu0 %v448
  %1619 = vmatprep.subr.mxu0 0.0
  %1620 = vmatpush2.msra.mxu0 %v447
  %1621 = vmatprep.subr.mxu0 0.0
  %1622 = vmatpush2.msra.mxu0 %v446
  %1623 = vmatprep.subr.mxu0 0.0
  %1624 = vmatpush2.msra.mxu0 %v445
  %1625 = vmatprep.subr.mxu0 0.0
  %1626 = vmatpush2.msra.mxu0 %v444
  %1627 = vmatprep.subr.mxu0 0.0
  %1628 = vmatpush2.msra.mxu0 %v443
  %1629 = vmatprep.subr.mxu0 0.0
  %1630 = vmatpush2.msra.mxu0 %v442
  %1631 = vmatprep.subr.mxu0 0.0
  %1632 = vmatpush2.msra.mxu0 %v441
  %1633 = vmatprep.subr.mxu0 0.0
  %1634 = vmatpush2.msra.mxu0 %v440
  %1635 = vmatprep.subr.mxu0 0.0
  %1636 = vmatpush2.msra.mxu0 %v439
  %1637 = vmatprep.subr.mxu0 0.0
  %1638 = vmatpush2.msra.mxu0 %v438
  %1639 = vmatprep.subr.mxu0 0.0
  %1640 = vmatpush2.msra.mxu0 %v437
  %1641 = vmatprep.subr.mxu0 0.0
  %1642 = vmatpush2.msra.mxu0 %v436
  %1643 = vmatprep.subr.mxu0 0.0
  %1644 = vmatpush2.msra.mxu0 %v435
  %1645 = vmatprep.mubr.f32.mxu0 %v1509
  %1646 = vmatmul.mubr.f32.gmra.mxu0 %v1500
  %v1647 = vpop.f32.mrf.mxu0
  %v1648 = vadd.f32 0.0, %v1647
  %v1649 = vpop.f32.mrf.mxu0
  %1650 = vdwg.mxu0
  %v1651 = vmul.f32 %v1648, 0.001953125
  %v1652 = vmul.f32 %v1580, %v1580
  %v1653 = vsub.f32 %v1651, %v1652
  %v1654 = vmax.f32 %v1653, 0.0
  %v1655 = vadd.f32 %v1654, 1e-05
  %v1656 = vrsqrt.pop %v1655
  %v1657 = vld [vmem:[%s12] sm:$0x1]
  %v1658 = vmul.f32 %v1656, %v1657
  %v1659 = vld [vmem:[%s13] sm:$0x1]
  %v1660 = vmul.f32 %v1580, %v1658
  %v1661 = vsub.f32 %v1659, %v1660
  %v1663 = vsel %vm607, %v1658, 0
  %1665 = vmatprep.subr.mxu0 0.0
  %1666 = vmatpush1.msra.mxu0 0.0
  %1667 = vmatprep.subr.mxu0 0.0
  %1668 = vmatpush1.msra.mxu0 0.0
  %1669 = vmatprep.subr.mxu0 0.0
  %1670 = vmatpush1.msra.mxu0 0.0
  %1671 = vmatprep.subr.mxu0 0.0
  %1672 = vmatpush1.msra.mxu0 0.0
  %1673 = vmatprep.subr.mxu0 0.0
  %1674 = vmatpush1.msra.mxu0 0.0
  %1675 = vmatprep.subr.mxu0 0.0
  %1676 = vmatpush1.msra.mxu0 0.0
  %1677 = vmatprep.subr.mxu0 0.0
  %1678 = vmatpush1.msra.mxu0 0.0
  %1679 = vmatprep.subr.mxu0 0.0
  %1680 = vmatpush1.msra.mxu0 0.0
  %1681 = vmatprep.subr.mxu0 0.0
  %1682 = vmatpush1.msra.mxu0 0.0
  %1683 = vmatprep.subr.mxu0 0.0
  %1684 = vmatpush1.msra.mxu0 0.0
  %1685 = vmatprep.subr.mxu0 0.0
  %1686 = vmatpush1.msra.mxu0 0.0
  %1687 = vmatprep.subr.mxu0 0.0
  %1688 = vmatpush1.msra.mxu0 0.0
  %1689 = vmatprep.subr.mxu0 0.0
  %1690 = vmatpush1.msra.mxu0 0.0
  %1691 = vmatprep.subr.mxu0 0.0
  %1692 = vmatpush1.msra.mxu0 0.0
  %1693 = vmatprep.subr.mxu0 %v606
  %1694 = vmatpush1.msra.mxu0 %v605
  %1695 = vmatprep.subr.mxu0 %v604
  %1696 = vmatpush1.msra.mxu0 %v603
  %1697 = vmatprep.subr.mxu0 0.0
  %1698 = vmatpush2.msra.mxu0 0.0
  %1699 = vmatprep.subr.mxu0 0.0
  %1700 = vmatpush2.msra.mxu0 0.0
  %1701 = vmatprep.subr.mxu0 0.0
  %1702 = vmatpush2.msra.mxu0 0.0
  %1703 = vmatprep.subr.mxu0 0.0
  %1704 = vmatpush2.msra.mxu0 0.0
  %1705 = vmatprep.subr.mxu0 0.0
  %1706 = vmatpush2.msra.mxu0 0.0
  %1707 = vmatprep.subr.mxu0 0.0
  %1708 = vmatpush2.msra.mxu0 0.0
  %1709 = vmatprep.subr.mxu0 0.0
  %1710 = vmatpush2.msra.mxu0 0.0
  %1711 = vmatprep.subr.mxu0 0.0
  %1712 = vmatpush2.msra.mxu0 0.0
  %1713 = vmatprep.subr.mxu0 0.0
  %1714 = vmatpush2.msra.mxu0 0.0
  %1715 = vmatprep.subr.mxu0 0.0
  %1716 = vmatpush2.msra.mxu0 0.0
  %1717 = vmatprep.subr.mxu0 0.0
  %1718 = vmatpush2.msra.mxu0 0.0
  %1719 = vmatprep.subr.mxu0 0.0
  %1720 = vmatpush2.msra.mxu0 0.0
  %1721 = vmatprep.subr.mxu0 0.0
  %1722 = vmatpush2.msra.mxu0 0.0
  %1723 = vmatprep.subr.mxu0 0.0
  %1724 = vmatpush2.msra.mxu0 0.0
  %1725 = vmatprep.subr.mxu0 0.0
  %1726 = vmatpush2.msra.mxu0 0.0
  %1727 = vmatprep.subr.mxu0 0.0
  %1728 = vmatpush2.msra.mxu0 0.0
  %1729 = vmatprep.mubr.f32.mxu0 0.0
  %1730 = vmatmul.mubr.f32.gmra.mxu0 %v1663
  %v1731 = vpop.f32.mrf.mxu0
  %v1732 = vadd.f32 0.0, %v1731
  %v1733 = vpop.f32.mrf.mxu0
  %v1734 = vadd.f32 0.0, %v1733
  %1735 = vdwg.mxu0
  %v1737 = vsel %vm607, %v1661, 0
  %1739 = vmatprep.subr.mxu0 0.0
  %1740 = vmatpush1.msra.mxu0 0.0
  %1741 = vmatprep.subr.mxu0 0.0
  %1742 = vmatpush1.msra.mxu0 0.0
  %1743 = vmatprep.subr.mxu0 0.0
  %1744 = vmatpush1.msra.mxu0 0.0
  %1745 = vmatprep.subr.mxu0 0.0
  %1746 = vmatpush1.msra.mxu0 0.0
  %1747 = vmatprep.subr.mxu0 0.0
  %1748 = vmatpush1.msra.mxu0 0.0
  %1749 = vmatprep.subr.mxu0 0.0
  %1750 = vmatpush1.msra.mxu0 0.0
  %1751 = vmatprep.subr.mxu0 0.0
  %1752 = vmatpush1.msra.mxu0 0.0
  %1753 = vmatprep.subr.mxu0 0.0
  %1754 = vmatpush1.msra.mxu0 0.0
  %1755 = vmatprep.subr.mxu0 0.0
  %1756 = vmatpush1.msra.mxu0 0.0
  %1757 = vmatprep.subr.mxu0 0.0
  %1758 = vmatpush1.msra.mxu0 0.0
  %1759 = vmatprep.subr.mxu0 0.0
  %1760 = vmatpush1.msra.mxu0 0.0
  %1761 = vmatprep.subr.mxu0 0.0
  %1762 = vmatpush1.msra.mxu0 0.0
  %1763 = vmatprep.subr.mxu0 0.0
  %1764 = vmatpush1.msra.mxu0 0.0
  %1765 = vmatprep.subr.mxu0 0.0
  %1766 = vmatpush1.msra.mxu0 0.0
  %1767 = vmatprep.subr.mxu0 %v606
  %1768 = vmatpush1.msra.mxu0 %v605
  %1769 = vmatprep.subr.mxu0 %v604
  %1770 = vmatpush1.msra.mxu0 %v603
  %1771 = vmatprep.subr.mxu0 0.0
  %1772 = vmatpush2.msra.mxu0 0.0
  %1773 = vmatprep.subr.mxu0 0.0
  %1774 = vmatpush2.msra.mxu0 0.0
  %1775 = vmatprep.subr.mxu0 0.0
  %1776 = vmatpush2.msra.mxu0 0.0
  %1777 = vmatprep.subr.mxu0 0.0
  %1778 = vmatpush2.msra.mxu0 0.0
  %1779 = vmatprep.subr.mxu0 0.0
  %1780 = vmatpush2.msra.mxu0 0.0
  %1781 = vmatprep.subr.mxu0 0.0
  %1782 = vmatpush2.msra.mxu0 0.0
  %1783 = vmatprep.subr.mxu0 0.0
  %1784 = vmatpush2.msra.mxu0 0.0
  %1785 = vmatprep.subr.mxu0 0.0
  %1786 = vmatpush2.msra.mxu0 0.0
  %1787 = vmatprep.subr.mxu0 0.0
  %1788 = vmatpush2.msra.mxu0 0.0
  %1789 = vmatprep.subr.mxu0 0.0
  %1790 = vmatpush2.msra.mxu0 0.0
  %1791 = vmatprep.subr.mxu0 0.0
  %1792 = vmatpush2.msra.mxu0 0.0
  %1793 = vmatprep.subr.mxu0 0.0
  %1794 = vmatpush2.msra.mxu0 0.0
  %1795 = vmatprep.subr.mxu0 0.0
  %1796 = vmatpush2.msra.mxu0 0.0
  %1797 = vmatprep.subr.mxu0 0.0
  %1798 = vmatpush2.msra.mxu0 0.0
  %1799 = vmatprep.subr.mxu0 0.0
  %1800 = vmatpush2.msra.mxu0 0.0
  %1801 = vmatprep.subr.mxu0 0.0
  %1802 = vmatpush2.msra.mxu0 0.0
  %1803 = vmatprep.mubr.f32.mxu0 0.0
  %1804 = vmatmul.mubr.f32.gmra.mxu0 %v1737
  %v1805 = vpop.f32.mrf.mxu0
  %v1806 = vadd.f32 0.0, %v1805
  %v1807 = vpop.f32.mrf.mxu0
  %v1808 = vadd.f32 0.0, %v1807
  %1809 = vdwg.mxu0
  %v1810 = vlaneseq
  %v1811 = vshrl.u32 %v1810, 7
  %v1812 = vsub.s32 0, %v1811
  %v1813 = vrot.slane %v1732, %v1812
  %v1814 = vlaneseq
  %v1815 = vshrl.u32 %v1814, 7
  %v1816 = vsub.s32 0, %v1815
  %v1817 = vrot.slane %v1734, %v1816
  %v1818 = vmul.f32 %v1444, %v1813
  %v1819 = vmul.f32 %v1446, %v1817
  %v1820 = vmul.f32 %v1450, %v1813
  %v1821 = vmul.f32 %v1452, %v1817
  %v1822 = vmul.f32 %v1456, %v1813
  %v1823 = vmul.f32 %v1458, %v1817
  %v1824 = vmul.f32 %v1462, %v1813
  %v1825 = vmul.f32 %v1464, %v1817
  %v1826 = vlaneseq
  %v1827 = vshrl.u32 %v1826, 7
  %v1828 = vsub.s32 0, %v1827
  %v1829 = vrot.slane %v1806, %v1828
  %v1830 = vlaneseq
  %v1831 = vshrl.u32 %v1830, 7
  %v1832 = vsub.s32 0, %v1831
  %v1833 = vrot.slane %v1808, %v1832
  %v1834 = vadd.f32 %v1818, %v1829
  %v1835 = vadd.f32 %v1819, %v1833
  %v1836 = vadd.f32 %v1820, %v1829
  %v1837 = vadd.f32 %v1821, %v1833
  %v1838 = vadd.f32 %v1822, %v1829
  %v1839 = vadd.f32 %v1823, %v1833
  %v1840 = vadd.f32 %v1824, %v1829
  %v1841 = vadd.f32 %v1825, %v1833
  %v1842 = vmax.f32 %v1834, 0.0
  %v1843 = vmax.f32 %v1835, 0.0
  %v1844 = vmax.f32 %v1836, 0.0
  %v1845 = vmax.f32 %v1837, 0.0
  %v1846 = vmax.f32 %v1838, 0.0
  %v1847 = vmax.f32 %v1839, 0.0
  %v1848 = vmax.f32 %v1840, 0.0
  %v1849 = vmax.f32 %v1841, 0.0
  %v1850 = vld [vmem:[%s3] sm:$0xff]
  %v1851 = vld [vmem:[%s3 + $0x8] sm:$0xff]
  %v1852 = vld [vmem:[%s3 + $0x10] sm:$0xff]
  %v1853 = vld [vmem:[%s3 + $0x18] sm:$0xff]
  %v1854 = vld [vmem:[%s3 + $0x20] sm:$0xff]
  %v1855 = vld [vmem:[%s3 + $0x28] sm:$0xff]
  %v1856 = vld [vmem:[%s3 + $0x30] sm:$0xff]
  %v1857 = vld [vmem:[%s3 + $0x38] sm:$0xff]
  %v1858 = vld [vmem:[%s3 + $0x40] sm:$0xff]
  %v1859 = vld [vmem:[%s3 + $0x48] sm:$0xff]
  %v1860 = vld [vmem:[%s3 + $0x50] sm:$0xff]
  %v1861 = vld [vmem:[%s3 + $0x58] sm:$0xff]
  %v1862 = vld [vmem:[%s3 + $0x60] sm:$0xff]
  %v1863 = vld [vmem:[%s3 + $0x68] sm:$0xff]
  %v1864 = vld [vmem:[%s3 + $0x70] sm:$0xff]
  %v1865 = vld [vmem:[%s3 + $0x78] sm:$0xff]
  %v1866 = vld [vmem:[%s3 + $0x80] sm:$0xff]
  %v1867 = vld [vmem:[%s3 + $0x88] sm:$0xff]
  %v1868 = vld [vmem:[%s3 + $0x90] sm:$0xff]
  %v1869 = vld [vmem:[%s3 + $0x98] sm:$0xff]
  %v1870 = vld [vmem:[%s3 + $0xa0] sm:$0xff]
  %v1871 = vld [vmem:[%s3 + $0xa8] sm:$0xff]
  %v1872 = vld [vmem:[%s3 + $0xb0] sm:$0xff]
  %v1873 = vld [vmem:[%s3 + $0xb8] sm:$0xff]
  %v1874 = vld [vmem:[%s3 + $0xc0] sm:$0xff]
  %v1875 = vld [vmem:[%s3 + $0xc8] sm:$0xff]
  %v1876 = vld [vmem:[%s3 + $0xd0] sm:$0xff]
  %v1877 = vld [vmem:[%s3 + $0xd8] sm:$0xff]
  %v1878 = vld [vmem:[%s3 + $0xe0] sm:$0xff]
  %v1879 = vld [vmem:[%s3 + $0xe8] sm:$0xff]
  %v1880 = vld [vmem:[%s3 + $0xf0] sm:$0xff]
  %v1881 = vld [vmem:[%s3 + $0xf8] sm:$0xff]
  %v1882 = vld [vmem:[%s3 + $0x100] sm:$0xff]
  %v1883 = vld [vmem:[%s3 + $0x108] sm:$0xff]
  %v1884 = vld [vmem:[%s3 + $0x110] sm:$0xff]
  %v1885 = vld [vmem:[%s3 + $0x118] sm:$0xff]
  %v1886 = vld [vmem:[%s3 + $0x120] sm:$0xff]
  %v1887 = vld [vmem:[%s3 + $0x128] sm:$0xff]
  %v1888 = vld [vmem:[%s3 + $0x130] sm:$0xff]
  %v1889 = vld [vmem:[%s3 + $0x138] sm:$0xff]
  %v1890 = vld [vmem:[%s3 + $0x140] sm:$0xff]
  %v1891 = vld [vmem:[%s3 + $0x148] sm:$0xff]
  %v1892 = vld [vmem:[%s3 + $0x150] sm:$0xff]
  %v1893 = vld [vmem:[%s3 + $0x158] sm:$0xff]
  %v1894 = vld [vmem:[%s3 + $0x160] sm:$0xff]
  %v1895 = vld [vmem:[%s3 + $0x168] sm:$0xff]
  %v1896 = vld [vmem:[%s3 + $0x170] sm:$0xff]
  %v1897 = vld [vmem:[%s3 + $0x178] sm:$0xff]
  %v1898 = vld [vmem:[%s3 + $0x180] sm:$0xff]
  %v1899 = vld [vmem:[%s3 + $0x188] sm:$0xff]
  %v1900 = vld [vmem:[%s3 + $0x190] sm:$0xff]
  %v1901 = vld [vmem:[%s3 + $0x198] sm:$0xff]
  %v1902 = vld [vmem:[%s3 + $0x1a0] sm:$0xff]
  %v1903 = vld [vmem:[%s3 + $0x1a8] sm:$0xff]
  %v1904 = vld [vmem:[%s3 + $0x1b0] sm:$0xff]
  %v1905 = vld [vmem:[%s3 + $0x1b8] sm:$0xff]
  %v1906 = vld [vmem:[%s3 + $0x1c0] sm:$0xff]
  %v1907 = vld [vmem:[%s3 + $0x1c8] sm:$0xff]
  %v1908 = vld [vmem:[%s3 + $0x1d0] sm:$0xff]
  %v1909 = vld [vmem:[%s3 + $0x1d8] sm:$0xff]
  %v1910 = vld [vmem:[%s3 + $0x1e0] sm:$0xff]
  %v1911 = vld [vmem:[%s3 + $0x1e8] sm:$0xff]
  %v1912 = vld [vmem:[%s3 + $0x1f0] sm:$0xff]
  %v1913 = vld [vmem:[%s3 + $0x1f8] sm:$0xff]
  %v1914 = vld [vmem:[%s3 + $0x200] sm:$0xff]
  %v1915 = vld [vmem:[%s3 + $0x208] sm:$0xff]
  %v1916 = vld [vmem:[%s3 + $0x210] sm:$0xff]
  %v1917 = vld [vmem:[%s3 + $0x218] sm:$0xff]
  %v1918 = vld [vmem:[%s3 + $0x220] sm:$0xff]
  %v1919 = vld [vmem:[%s3 + $0x228] sm:$0xff]
  %v1920 = vld [vmem:[%s3 + $0x230] sm:$0xff]
  %v1921 = vld [vmem:[%s3 + $0x238] sm:$0xff]
  %v1922 = vld [vmem:[%s3 + $0x240] sm:$0xff]
  %v1923 = vld [vmem:[%s3 + $0x248] sm:$0xff]
  %v1924 = vld [vmem:[%s3 + $0x250] sm:$0xff]
  %v1925 = vld [vmem:[%s3 + $0x258] sm:$0xff]
  %v1926 = vld [vmem:[%s3 + $0x260] sm:$0xff]
  %v1927 = vld [vmem:[%s3 + $0x268] sm:$0xff]
  %v1928 = vld [vmem:[%s3 + $0x270] sm:$0xff]
  %v1929 = vld [vmem:[%s3 + $0x278] sm:$0xff]
  %v1930 = vld [vmem:[%s3 + $0x280] sm:$0xff]
  %v1931 = vld [vmem:[%s3 + $0x288] sm:$0xff]
  %v1932 = vld [vmem:[%s3 + $0x290] sm:$0xff]
  %v1933 = vld [vmem:[%s3 + $0x298] sm:$0xff]
  %v1934 = vld [vmem:[%s3 + $0x2a0] sm:$0xff]
  %v1935 = vld [vmem:[%s3 + $0x2a8] sm:$0xff]
  %v1936 = vld [vmem:[%s3 + $0x2b0] sm:$0xff]
  %v1937 = vld [vmem:[%s3 + $0x2b8] sm:$0xff]
  %v1938 = vld [vmem:[%s3 + $0x2c0] sm:$0xff]
  %v1939 = vld [vmem:[%s3 + $0x2c8] sm:$0xff]
  %v1940 = vld [vmem:[%s3 + $0x2d0] sm:$0xff]
  %v1941 = vld [vmem:[%s3 + $0x2d8] sm:$0xff]
  %v1942 = vld [vmem:[%s3 + $0x2e0] sm:$0xff]
  %v1943 = vld [vmem:[%s3 + $0x2e8] sm:$0xff]
  %v1944 = vld [vmem:[%s3 + $0x2f0] sm:$0xff]
  %v1945 = vld [vmem:[%s3 + $0x2f8] sm:$0xff]
  %v1946 = vld [vmem:[%s3 + $0x300] sm:$0xff]
  %v1947 = vld [vmem:[%s3 + $0x308] sm:$0xff]
  %v1948 = vld [vmem:[%s3 + $0x310] sm:$0xff]
  %v1949 = vld [vmem:[%s3 + $0x318] sm:$0xff]
  %v1950 = vld [vmem:[%s3 + $0x320] sm:$0xff]
  %v1951 = vld [vmem:[%s3 + $0x328] sm:$0xff]
  %v1952 = vld [vmem:[%s3 + $0x330] sm:$0xff]
  %v1953 = vld [vmem:[%s3 + $0x338] sm:$0xff]
  %v1954 = vld [vmem:[%s3 + $0x340] sm:$0xff]
  %v1955 = vld [vmem:[%s3 + $0x348] sm:$0xff]
  %v1956 = vld [vmem:[%s3 + $0x350] sm:$0xff]
  %v1957 = vld [vmem:[%s3 + $0x358] sm:$0xff]
  %v1958 = vld [vmem:[%s3 + $0x360] sm:$0xff]
  %v1959 = vld [vmem:[%s3 + $0x368] sm:$0xff]
  %v1960 = vld [vmem:[%s3 + $0x370] sm:$0xff]
  %v1961 = vld [vmem:[%s3 + $0x378] sm:$0xff]
  %v1962 = vld [vmem:[%s3 + $0x380] sm:$0xff]
  %v1963 = vld [vmem:[%s3 + $0x388] sm:$0xff]
  %v1964 = vld [vmem:[%s3 + $0x390] sm:$0xff]
  %v1965 = vld [vmem:[%s3 + $0x398] sm:$0xff]
  %v1966 = vld [vmem:[%s3 + $0x3a0] sm:$0xff]
  %v1967 = vld [vmem:[%s3 + $0x3a8] sm:$0xff]
  %v1968 = vld [vmem:[%s3 + $0x3b0] sm:$0xff]
  %v1969 = vld [vmem:[%s3 + $0x3b8] sm:$0xff]
  %v1970 = vld [vmem:[%s3 + $0x3c0] sm:$0xff]
  %v1971 = vld [vmem:[%s3 + $0x3c8] sm:$0xff]
  %v1972 = vld [vmem:[%s3 + $0x3d0] sm:$0xff]
  %v1973 = vld [vmem:[%s3 + $0x3d8] sm:$0xff]
  %v1974 = vld [vmem:[%s3 + $0x3e0] sm:$0xff]
  %v1975 = vld [vmem:[%s3 + $0x3e8] sm:$0xff]
  %v1976 = vld [vmem:[%s3 + $0x3f0] sm:$0xff]
  %v1977 = vld [vmem:[%s3 + $0x3f8] sm:$0xff]
  %1978 = vmatprep.subr.mxu0 %v1911
  %1979 = vmatpush1.msra.mxu0 %v1910
  %1980 = vmatprep.subr.mxu0 %v1907
  %1981 = vmatpush1.msra.mxu0 %v1906
  %1982 = vmatprep.subr.mxu0 %v1903
  %1983 = vmatpush1.msra.mxu0 %v1902
  %1984 = vmatprep.subr.mxu0 %v1899
  %1985 = vmatpush1.msra.mxu0 %v1898
  %1986 = vmatprep.subr.mxu0 %v1895
  %1987 = vmatpush1.msra.mxu0 %v1894
  %1988 = vmatprep.subr.mxu0 %v1891
  %1989 = vmatpush1.msra.mxu0 %v1890
  %1990 = vmatprep.subr.mxu0 %v1887
  %1991 = vmatpush1.msra.mxu0 %v1886
  %1992 = vmatprep.subr.mxu0 %v1883
  %1993 = vmatpush1.msra.mxu0 %v1882
  %1994 = vmatprep.subr.mxu0 %v1879
  %1995 = vmatpush1.msra.mxu0 %v1878
  %1996 = vmatprep.subr.mxu0 %v1875
  %1997 = vmatpush1.msra.mxu0 %v1874
  %1998 = vmatprep.subr.mxu0 %v1871
  %1999 = vmatpush1.msra.mxu0 %v1870
  %2000 = vmatprep.subr.mxu0 %v1867
  %2001 = vmatpush1.msra.mxu0 %v1866
  %2002 = vmatprep.subr.mxu0 %v1863
  %2003 = vmatpush1.msra.mxu0 %v1862
  %2004 = vmatprep.subr.mxu0 %v1859
  %2005 = vmatpush1.msra.mxu0 %v1858
  %2006 = vmatprep.subr.mxu0 %v1855
  %2007 = vmatpush1.msra.mxu0 %v1854
  %2008 = vmatprep.subr.mxu0 %v1851
  %2009 = vmatpush1.msra.mxu0 %v1850
  %2010 = vmatprep.subr.mxu0 %v1975
  %2011 = vmatpush2.msra.mxu0 %v1974
  %2012 = vmatprep.subr.mxu0 %v1971
  %2013 = vmatpush2.msra.mxu0 %v1970
  %2014 = vmatprep.subr.mxu0 %v1967
  %2015 = vmatpush2.msra.mxu0 %v1966
  %2016 = vmatprep.subr.mxu0 %v1963
  %2017 = vmatpush2.msra.mxu0 %v1962
  %2018 = vmatprep.subr.mxu0 %v1959
  %2019 = vmatpush2.msra.mxu0 %v1958
  %2020 = vmatprep.subr.mxu0 %v1955
  %2021 = vmatpush2.msra.mxu0 %v1954
  %2022 = vmatprep.subr.mxu0 %v1951
  %2023 = vmatpush2.msra.mxu0 %v1950
  %2024 = vmatprep.subr.mxu0 %v1947
  %2025 = vmatpush2.msra.mxu0 %v1946
  %2026 = vmatprep.subr.mxu0 %v1943
  %2027 = vmatpush2.msra.mxu0 %v1942
  %2028 = vmatprep.subr.mxu0 %v1939
  %2029 = vmatpush2.msra.mxu0 %v1938
  %2030 = vmatprep.subr.mxu0 %v1935
  %2031 = vmatpush2.msra.mxu0 %v1934
  %2032 = vmatprep.subr.mxu0 %v1931
  %2033 = vmatpush2.msra.mxu0 %v1930
  %2034 = vmatprep.subr.mxu0 %v1927
  %2035 = vmatpush2.msra.mxu0 %v1926
  %2036 = vmatprep.subr.mxu0 %v1923
  %2037 = vmatpush2.msra.mxu0 %v1922
  %2038 = vmatprep.subr.mxu0 %v1919
  %2039 = vmatpush2.msra.mxu0 %v1918
  %2040 = vmatprep.subr.mxu0 %v1915
  %2041 = vmatpush2.msra.mxu0 %v1914
  %2042 = vmatprep.mubr.f32.mxu0 %v1843
  %2043 = vmatmul.mubr.f32.gmra.mxu0 %v1842
  %v2044 = vpop.f32.mrf.mxu0
  %v2045 = vadd.f32 0.0, %v2044
  %v2046 = vpop.f32.mrf.mxu0
  %v2047 = vadd.f32 0.0, %v2046
  %2048 = vmatprep.mubr.f32.mxu0 %v1845
  %2049 = vmatmul.mubr.f32.gmra.mxu0 %v1844
  %v2050 = vpop.f32.mrf.mxu0
  %v2051 = vadd.f32 0.0, %v2050
  %v2052 = vpop.f32.mrf.mxu0
  %v2053 = vadd.f32 0.0, %v2052
  %2054 = vmatprep.mubr.f32.mxu0 %v1847
  %2055 = vmatmul.mubr.f32.gmra.mxu0 %v1846
  %v2056 = vpop.f32.mrf.mxu0
  %v2057 = vadd.f32 0.0, %v2056
  %v2058 = vpop.f32.mrf.mxu0
  %v2059 = vadd.f32 0.0, %v2058
  %2060 = vmatprep.mubr.f32.mxu0 %v1849
  %2061 = vmatmul.mubr.f32.gmra.mxu0 %v1848
  %v2062 = vpop.f32.mrf.mxu0
  %v2063 = vadd.f32 0.0, %v2062
  %v2064 = vpop.f32.mrf.mxu0
  %v2065 = vadd.f32 0.0, %v2064
  %2066 = vdwg.mxu0
  %2067 = vmatprep.subr.mxu0 %v1913
  %2068 = vmatpush1.msra.mxu0 %v1912
  %2069 = vmatprep.subr.mxu0 %v1909
  %2070 = vmatpush1.msra.mxu0 %v1908
  %2071 = vmatprep.subr.mxu0 %v1905
  %2072 = vmatpush1.msra.mxu0 %v1904
  %2073 = vmatprep.subr.mxu0 %v1901
  %2074 = vmatpush1.msra.mxu0 %v1900
  %2075 = vmatprep.subr.mxu0 %v1897
  %2076 = vmatpush1.msra.mxu0 %v1896
  %2077 = vmatprep.subr.mxu0 %v1893
  %2078 = vmatpush1.msra.mxu0 %v1892
  %2079 = vmatprep.subr.mxu0 %v1889
  %2080 = vmatpush1.msra.mxu0 %v1888
  %2081 = vmatprep.subr.mxu0 %v1885
  %2082 = vmatpush1.msra.mxu0 %v1884
  %2083 = vmatprep.subr.mxu0 %v1881
  %2084 = vmatpush1.msra.mxu0 %v1880
  %2085 = vmatprep.subr.mxu0 %v1877
  %2086 = vmatpush1.msra.mxu0 %v1876
  %2087 = vmatprep.subr.mxu0 %v1873
  %2088 = vmatpush1.msra.mxu0 %v1872
  %2089 = vmatprep.subr.mxu0 %v1869
  %2090 = vmatpush1.msra.mxu0 %v1868
  %2091 = vmatprep.subr.mxu0 %v1865
  %2092 = vmatpush1.msra.mxu0 %v1864
  %2093 = vmatprep.subr.mxu0 %v1861
  %2094 = vmatpush1.msra.mxu0 %v1860
  %2095 = vmatprep.subr.mxu0 %v1857
  %2096 = vmatpush1.msra.mxu0 %v1856
  %2097 = vmatprep.subr.mxu0 %v1853
  %2098 = vmatpush1.msra.mxu0 %v1852
  %2099 = vmatprep.subr.mxu0 %v1977
  %2100 = vmatpush2.msra.mxu0 %v1976
  %2101 = vmatprep.subr.mxu0 %v1973
  %2102 = vmatpush2.msra.mxu0 %v1972
  %2103 = vmatprep.subr.mxu0 %v1969
  %2104 = vmatpush2.msra.mxu0 %v1968
  %2105 = vmatprep.subr.mxu0 %v1965
  %2106 = vmatpush2.msra.mxu0 %v1964
  %2107 = vmatprep.subr.mxu0 %v1961
  %2108 = vmatpush2.msra.mxu0 %v1960
  %2109 = vmatprep.subr.mxu0 %v1957
  %2110 = vmatpush2.msra.mxu0 %v1956
  %2111 = vmatprep.subr.mxu0 %v1953
  %2112 = vmatpush2.msra.mxu0 %v1952
  %2113 = vmatprep.subr.mxu0 %v1949
  %2114 = vmatpush2.msra.mxu0 %v1948
  %2115 = vmatprep.subr.mxu0 %v1945
  %2116 = vmatpush2.msra.mxu0 %v1944
  %2117 = vmatprep.subr.mxu0 %v1941
  %2118 = vmatpush2.msra.mxu0 %v1940
  %2119 = vmatprep.subr.mxu0 %v1937
  %2120 = vmatpush2.msra.mxu0 %v1936
  %2121 = vmatprep.subr.mxu0 %v1933
  %2122 = vmatpush2.msra.mxu0 %v1932
  %2123 = vmatprep.subr.mxu0 %v1929
  %2124 = vmatpush2.msra.mxu0 %v1928
  %2125 = vmatprep.subr.mxu0 %v1925
  %2126 = vmatpush2.msra.mxu0 %v1924
  %2127 = vmatprep.subr.mxu0 %v1921
  %2128 = vmatpush2.msra.mxu0 %v1920
  %2129 = vmatprep.subr.mxu0 %v1917
  %2130 = vmatpush2.msra.mxu0 %v1916
  %2131 = vmatprep.mubr.f32.mxu0 %v1843
  %2132 = vmatmul.mubr.f32.gmra.mxu0 %v1842
  %v2133 = vpop.f32.mrf.mxu0
  %v2134 = vadd.f32 0.0, %v2133
  %v2135 = vpop.f32.mrf.mxu0
  %v2136 = vadd.f32 0.0, %v2135
  %2137 = vmatprep.mubr.f32.mxu0 %v1845
  %2138 = vmatmul.mubr.f32.gmra.mxu0 %v1844
  %v2139 = vpop.f32.mrf.mxu0
  %v2140 = vadd.f32 0.0, %v2139
  %v2141 = vpop.f32.mrf.mxu0
  %v2142 = vadd.f32 0.0, %v2141
  %2143 = vmatprep.mubr.f32.mxu0 %v1847
  %2144 = vmatmul.mubr.f32.gmra.mxu0 %v1846
  %v2145 = vpop.f32.mrf.mxu0
  %v2146 = vadd.f32 0.0, %v2145
  %v2147 = vpop.f32.mrf.mxu0
  %v2148 = vadd.f32 0.0, %v2147
  %2149 = vmatprep.mubr.f32.mxu0 %v1849
  %2150 = vmatmul.mubr.f32.gmra.mxu0 %v1848
  %v2151 = vpop.f32.mrf.mxu0
  %v2152 = vadd.f32 0.0, %v2151
  %v2153 = vpop.f32.mrf.mxu0
  %v2154 = vadd.f32 0.0, %v2153
  %2155 = vdwg.mxu0
  %v2156 = vadd.f32 %v2045, %v2051
  %v2157 = vadd.f32 %v2156, %v2057
  %v2158 = vadd.f32 %v2157, %v2063
  %v2159 = vrot.slane %v2158, 4
  %v2160 = vadd.f32 %v2158, %v2159
  %v2161 = vrot.slane %v2160, 2
  %v2162 = vadd.f32 %v2160, %v2161
  %v2163 = vrot.slane %v2162, 1
  %v2164 = vadd.f32 %v2162, %v2163
  %v2165 = vadd.f32 %v2047, %v2053
  %v2166 = vadd.f32 %v2165, %v2059
  %v2167 = vadd.f32 %v2166, %v2065
  %v2168 = vrot.slane %v2167, 4
  %v2169 = vadd.f32 %v2167, %v2168
  %v2170 = vrot.slane %v2169, 2
  %v2171 = vadd.f32 %v2169, %v2170
  %v2172 = vrot.slane %v2171, 1
  %v2173 = vadd.f32 %v2171, %v2172
  %v2174 = vadd.f32 %v2134, %v2140
  %v2175 = vadd.f32 %v2174, %v2146
  %v2176 = vadd.f32 %v2175, %v2152
  %v2177 = vrot.slane %v2176, 4
  %v2178 = vadd.f32 %v2176, %v2177
  %v2179 = vrot.slane %v2178, 2
  %v2180 = vadd.f32 %v2178, %v2179
  %v2181 = vrot.slane %v2180, 1
  %v2182 = vadd.f32 %v2180, %v2181
  %v2183 = vadd.f32 %v2136, %v2142
  %v2184 = vadd.f32 %v2183, %v2148
  %v2185 = vadd.f32 %v2184, %v2154
  %v2186 = vrot.slane %v2185, 4
  %v2187 = vadd.f32 %v2185, %v2186
  %v2188 = vrot.slane %v2187, 2
  %v2189 = vadd.f32 %v2187, %v2188
  %v2190 = vrot.slane %v2189, 1
  %v2191 = vadd.f32 %v2189, %v2190
  %v2192 = vmul.f32 %v2045, %v2045
  %v2193 = vmul.f32 %v2047, %v2047
  %v2194 = vmul.f32 %v2134, %v2134
  %v2195 = vmul.f32 %v2136, %v2136
  %v2196 = vmul.f32 %v2051, %v2051
  %v2197 = vmul.f32 %v2053, %v2053
  %v2198 = vmul.f32 %v2140, %v2140
  %v2199 = vmul.f32 %v2142, %v2142
  %v2200 = vmul.f32 %v2057, %v2057
  %v2201 = vmul.f32 %v2059, %v2059
  %v2202 = vmul.f32 %v2146, %v2146
  %v2203 = vmul.f32 %v2148, %v2148
  %v2204 = vmul.f32 %v2063, %v2063
  %v2205 = vmul.f32 %v2065, %v2065
  %v2206 = vmul.f32 %v2152, %v2152
  %v2207 = vmul.f32 %v2154, %v2154
  %v2208 = vadd.f32 %v2192, %v2196
  %v2209 = vadd.f32 %v2208, %v2200
  %v2210 = vadd.f32 %v2209, %v2204
  %v2211 = vrot.slane %v2210, 4
  %v2212 = vadd.f32 %v2210, %v2211
  %v2213 = vrot.slane %v2212, 2
  %v2214 = vadd.f32 %v2212, %v2213
  %v2215 = vrot.slane %v2214, 1
  %v2216 = vadd.f32 %v2214, %v2215
  %v2217 = vadd.f32 %v2193, %v2197
  %v2218 = vadd.f32 %v2217, %v2201
  %v2219 = vadd.f32 %v2218, %v2205
  %v2220 = vrot.slane %v2219, 4
  %v2221 = vadd.f32 %v2219, %v2220
  %v2222 = vrot.slane %v2221, 2
  %v2223 = vadd.f32 %v2221, %v2222
  %v2224 = vrot.slane %v2223, 1
  %v2225 = vadd.f32 %v2223, %v2224
  %v2226 = vadd.f32 %v2194, %v2198
  %v2227 = vadd.f32 %v2226, %v2202
  %v2228 = vadd.f32 %v2227, %v2206
  %v2229 = vrot.slane %v2228, 4
  %v2230 = vadd.f32 %v2228, %v2229
  %v2231 = vrot.slane %v2230, 2
  %v2232 = vadd.f32 %v2230, %v2231
  %v2233 = vrot.slane %v2232, 1
  %v2234 = vadd.f32 %v2232, %v2233
  %v2235 = vadd.f32 %v2195, %v2199
  %v2236 = vadd.f32 %v2235, %v2203
  %v2237 = vadd.f32 %v2236, %v2207
  %v2238 = vrot.slane %v2237, 4
  %v2239 = vadd.f32 %v2237, %v2238
  %v2240 = vrot.slane %v2239, 2
  %v2241 = vadd.f32 %v2239, %v2240
  %v2242 = vrot.slane %v2241, 1
  %v2243 = vadd.f32 %v2241, %v2242
  %v2244 = vld [vmem:[%s8] sm:$0xff]
  %v2245 = vld [vmem:[%s8 + $0x8] sm:$0xff]
  %v2246 = vld [vmem:[%s8 + $0x10] sm:$0xff]
  %v2247 = vld [vmem:[%s8 + $0x18] sm:$0xff]
  %v2248 = vld [vmem:[%s8 + $0x20] sm:$0xff]
  %v2249 = vld [vmem:[%s8 + $0x28] sm:$0xff]
  %v2250 = vld [vmem:[%s8 + $0x30] sm:$0xff]
  %v2251 = vld [vmem:[%s8 + $0x38] sm:$0xff]
  %v2252 = vld [vmem:[%s8 + $0x40] sm:$0xff]
  %v2253 = vld [vmem:[%s8 + $0x48] sm:$0xff]
  %v2254 = vld [vmem:[%s8 + $0x50] sm:$0xff]
  %v2255 = vld [vmem:[%s8 + $0x58] sm:$0xff]
  %v2256 = vld [vmem:[%s8 + $0x60] sm:$0xff]
  %v2257 = vld [vmem:[%s8 + $0x68] sm:$0xff]
  %v2258 = vld [vmem:[%s8 + $0x70] sm:$0xff]
  %v2259 = vld [vmem:[%s8 + $0x78] sm:$0xff]
  %v2260 = vld [vmem:[%s8 + $0x80] sm:$0xff]
  %v2261 = vld [vmem:[%s8 + $0x88] sm:$0xff]
  %v2262 = vld [vmem:[%s8 + $0x90] sm:$0xff]
  %v2263 = vld [vmem:[%s8 + $0x98] sm:$0xff]
  %v2264 = vld [vmem:[%s8 + $0xa0] sm:$0xff]
  %v2265 = vld [vmem:[%s8 + $0xa8] sm:$0xff]
  %v2266 = vld [vmem:[%s8 + $0xb0] sm:$0xff]
  %v2267 = vld [vmem:[%s8 + $0xb8] sm:$0xff]
  %v2268 = vld [vmem:[%s8 + $0xc0] sm:$0xff]
  %v2269 = vld [vmem:[%s8 + $0xc8] sm:$0xff]
  %v2270 = vld [vmem:[%s8 + $0xd0] sm:$0xff]
  %v2271 = vld [vmem:[%s8 + $0xd8] sm:$0xff]
  %v2272 = vld [vmem:[%s8 + $0xe0] sm:$0xff]
  %v2273 = vld [vmem:[%s8 + $0xe8] sm:$0xff]
  %v2274 = vld [vmem:[%s8 + $0xf0] sm:$0xff]
  %v2275 = vld [vmem:[%s8 + $0xf8] sm:$0xff]
  %v2276 = vld [vmem:[%s8 + $0x100] sm:$0xff]
  %v2277 = vld [vmem:[%s8 + $0x108] sm:$0xff]
  %v2278 = vld [vmem:[%s8 + $0x110] sm:$0xff]
  %v2279 = vld [vmem:[%s8 + $0x118] sm:$0xff]
  %v2280 = vld [vmem:[%s8 + $0x120] sm:$0xff]
  %v2281 = vld [vmem:[%s8 + $0x128] sm:$0xff]
  %v2282 = vld [vmem:[%s8 + $0x130] sm:$0xff]
  %v2283 = vld [vmem:[%s8 + $0x138] sm:$0xff]
  %v2284 = vld [vmem:[%s8 + $0x140] sm:$0xff]
  %v2285 = vld [vmem:[%s8 + $0x148] sm:$0xff]
  %v2286 = vld [vmem:[%s8 + $0x150] sm:$0xff]
  %v2287 = vld [vmem:[%s8 + $0x158] sm:$0xff]
  %v2288 = vld [vmem:[%s8 + $0x160] sm:$0xff]
  %v2289 = vld [vmem:[%s8 + $0x168] sm:$0xff]
  %v2290 = vld [vmem:[%s8 + $0x170] sm:$0xff]
  %v2291 = vld [vmem:[%s8 + $0x178] sm:$0xff]
  %v2292 = vld [vmem:[%s8 + $0x180] sm:$0xff]
  %v2293 = vld [vmem:[%s8 + $0x188] sm:$0xff]
  %v2294 = vld [vmem:[%s8 + $0x190] sm:$0xff]
  %v2295 = vld [vmem:[%s8 + $0x198] sm:$0xff]
  %v2296 = vld [vmem:[%s8 + $0x1a0] sm:$0xff]
  %v2297 = vld [vmem:[%s8 + $0x1a8] sm:$0xff]
  %v2298 = vld [vmem:[%s8 + $0x1b0] sm:$0xff]
  %v2299 = vld [vmem:[%s8 + $0x1b8] sm:$0xff]
  %v2300 = vld [vmem:[%s8 + $0x1c0] sm:$0xff]
  %v2301 = vld [vmem:[%s8 + $0x1c8] sm:$0xff]
  %v2302 = vld [vmem:[%s8 + $0x1d0] sm:$0xff]
  %v2303 = vld [vmem:[%s8 + $0x1d8] sm:$0xff]
  %v2304 = vld [vmem:[%s8 + $0x1e0] sm:$0xff]
  %v2305 = vld [vmem:[%s8 + $0x1e8] sm:$0xff]
  %v2306 = vld [vmem:[%s8 + $0x1f0] sm:$0xff]
  %v2307 = vld [vmem:[%s8 + $0x1f8] sm:$0xff]
  %2308 = vmatprep.subr.mxu0 0.0
  %2309 = vmatpush1.msra.mxu0 %v2259
  %2310 = vmatprep.subr.mxu0 0.0
  %2311 = vmatpush1.msra.mxu0 %v2258
  %2312 = vmatprep.subr.mxu0 0.0
  %2313 = vmatpush1.msra.mxu0 %v2257
  %2314 = vmatprep.subr.mxu0 0.0
  %2315 = vmatpush1.msra.mxu0 %v2256
  %2316 = vmatprep.subr.mxu0 0.0
  %2317 = vmatpush1.msra.mxu0 %v2255
  %2318 = vmatprep.subr.mxu0 0.0
  %2319 = vmatpush1.msra.mxu0 %v2254
  %2320 = vmatprep.subr.mxu0 0.0
  %2321 = vmatpush1.msra.mxu0 %v2253
  %2322 = vmatprep.subr.mxu0 0.0
  %2323 = vmatpush1.msra.mxu0 %v2252
  %2324 = vmatprep.subr.mxu0 0.0
  %2325 = vmatpush1.msra.mxu0 %v2251
  %2326 = vmatprep.subr.mxu0 0.0
  %2327 = vmatpush1.msra.mxu0 %v2250
  %2328 = vmatprep.subr.mxu0 0.0
  %2329 = vmatpush1.msra.mxu0 %v2249
  %2330 = vmatprep.subr.mxu0 0.0
  %2331 = vmatpush1.msra.mxu0 %v2248
  %2332 = vmatprep.subr.mxu0 0.0
  %2333 = vmatpush1.msra.mxu0 %v2247
  %2334 = vmatprep.subr.mxu0 0.0
  %2335 = vmatpush1.msra.mxu0 %v2246
  %2336 = vmatprep.subr.mxu0 0.0
  %2337 = vmatpush1.msra.mxu0 %v2245
  %2338 = vmatprep.subr.mxu0 0.0
  %2339 = vmatpush1.msra.mxu0 %v2244
  %2340 = vmatprep.subr.mxu0 0.0
  %2341 = vmatpush2.msra.mxu0 %v2275
  %2342 = vmatprep.subr.mxu0 0.0
  %2343 = vmatpush2.msra.mxu0 %v2274
  %2344 = vmatprep.subr.mxu0 0.0
  %2345 = vmatpush2.msra.mxu0 %v2273
  %2346 = vmatprep.subr.mxu0 0.0
  %2347 = vmatpush2.msra.mxu0 %v2272
  %2348 = vmatprep.subr.mxu0 0.0
  %2349 = vmatpush2.msra.mxu0 %v2271
  %2350 = vmatprep.subr.mxu0 0.0
  %2351 = vmatpush2.msra.mxu0 %v2270
  %2352 = vmatprep.subr.mxu0 0.0
  %2353 = vmatpush2.msra.mxu0 %v2269
  %2354 = vmatprep.subr.mxu0 0.0
  %2355 = vmatpush2.msra.mxu0 %v2268
  %2356 = vmatprep.subr.mxu0 0.0
  %2357 = vmatpush2.msra.mxu0 %v2267
  %2358 = vmatprep.subr.mxu0 0.0
  %2359 = vmatpush2.msra.mxu0 %v2266
  %2360 = vmatprep.subr.mxu0 0.0
  %2361 = vmatpush2.msra.mxu0 %v2265
  %2362 = vmatprep.subr.mxu0 0.0
  %2363 = vmatpush2.msra.mxu0 %v2264
  %2364 = vmatprep.subr.mxu0 0.0
  %2365 = vmatpush2.msra.mxu0 %v2263
  %2366 = vmatprep.subr.mxu0 0.0
  %2367 = vmatpush2.msra.mxu0 %v2262
  %2368 = vmatprep.subr.mxu0 0.0
  %2369 = vmatpush2.msra.mxu0 %v2261
  %2370 = vmatprep.subr.mxu0 0.0
  %2371 = vmatpush2.msra.mxu0 %v2260
  %2372 = vmatprep.mubr.f32.mxu0 %v2173
  %2373 = vmatmul.mubr.f32.gmra.mxu0 %v2164
  %v2374 = vpop.f32.mrf.mxu0
  %v2375 = vadd.f32 0.0, %v2374
  %v2376 = vpop.f32.mrf.mxu0
  %2377 = vdwg.mxu0
  %2378 = vmatprep.subr.mxu0 0.0
  %2379 = vmatpush1.msra.mxu0 %v2291
  %2380 = vmatprep.subr.mxu0 0.0
  %2381 = vmatpush1.msra.mxu0 %v2290
  %2382 = vmatprep.subr.mxu0 0.0
  %2383 = vmatpush1.msra.mxu0 %v2289
  %2384 = vmatprep.subr.mxu0 0.0
  %2385 = vmatpush1.msra.mxu0 %v2288
  %2386 = vmatprep.subr.mxu0 0.0
  %2387 = vmatpush1.msra.mxu0 %v2287
  %2388 = vmatprep.subr.mxu0 0.0
  %2389 = vmatpush1.msra.mxu0 %v2286
  %2390 = vmatprep.subr.mxu0 0.0
  %2391 = vmatpush1.msra.mxu0 %v2285
  %2392 = vmatprep.subr.mxu0 0.0
  %2393 = vmatpush1.msra.mxu0 %v2284
  %2394 = vmatprep.subr.mxu0 0.0
  %2395 = vmatpush1.msra.mxu0 %v2283
  %2396 = vmatprep.subr.mxu0 0.0
  %2397 = vmatpush1.msra.mxu0 %v2282
  %2398 = vmatprep.subr.mxu0 0.0
  %2399 = vmatpush1.msra.mxu0 %v2281
  %2400 = vmatprep.subr.mxu0 0.0
  %2401 = vmatpush1.msra.mxu0 %v2280
  %2402 = vmatprep.subr.mxu0 0.0
  %2403 = vmatpush1.msra.mxu0 %v2279
  %2404 = vmatprep.subr.mxu0 0.0
  %2405 = vmatpush1.msra.mxu0 %v2278
  %2406 = vmatprep.subr.mxu0 0.0
  %2407 = vmatpush1.msra.mxu0 %v2277
  %2408 = vmatprep.subr.mxu0 0.0
  %2409 = vmatpush1.msra.mxu0 %v2276
  %2410 = vmatprep.subr.mxu0 0.0
  %2411 = vmatpush2.msra.mxu0 %v2307
  %2412 = vmatprep.subr.mxu0 0.0
  %2413 = vmatpush2.msra.mxu0 %v2306
  %2414 = vmatprep.subr.mxu0 0.0
  %2415 = vmatpush2.msra.mxu0 %v2305
  %2416 = vmatprep.subr.mxu0 0.0
  %2417 = vmatpush2.msra.mxu0 %v2304
  %2418 = vmatprep.subr.mxu0 0.0
  %2419 = vmatpush2.msra.mxu0 %v2303
  %2420 = vmatprep.subr.mxu0 0.0
  %2421 = vmatpush2.msra.mxu0 %v2302
  %2422 = vmatprep.subr.mxu0 0.0
  %2423 = vmatpush2.msra.mxu0 %v2301
  %2424 = vmatprep.subr.mxu0 0.0
  %2425 = vmatpush2.msra.mxu0 %v2300
  %2426 = vmatprep.subr.mxu0 0.0
  %2427 = vmatpush2.msra.mxu0 %v2299
  %2428 = vmatprep.subr.mxu0 0.0
  %2429 = vmatpush2.msra.mxu0 %v2298
  %2430 = vmatprep.subr.mxu0 0.0
  %2431 = vmatpush2.msra.mxu0 %v2297
  %2432 = vmatprep.subr.mxu0 0.0
  %2433 = vmatpush2.msra.mxu0 %v2296
  %2434 = vmatprep.subr.mxu0 0.0
  %2435 = vmatpush2.msra.mxu0 %v2295
  %2436 = vmatprep.subr.mxu0 0.0
  %2437 = vmatpush2.msra.mxu0 %v2294
  %2438 = vmatprep.subr.mxu0 0.0
  %2439 = vmatpush2.msra.mxu0 %v2293
  %2440 = vmatprep.subr.mxu0 0.0
  %2441 = vmatpush2.msra.mxu0 %v2292
  %2442 = vmatprep.mubr.f32.mxu0 %v2191
  %2443 = vmatmul.mubr.f32.gmra.mxu0 %v2182
  %v2444 = vpop.f32.mrf.mxu0
  %v2445 = vadd.f32 %v2375, %v2444
  %v2446 = vpop.f32.mrf.mxu0
  %2447 = vdwg.mxu0
  %v2448 = vmul.f32 %v2445, 0.001953125
  %2449 = vmatprep.subr.mxu0 0.0
  %2450 = vmatpush1.msra.mxu0 %v2259
  %2451 = vmatprep.subr.mxu0 0.0
  %2452 = vmatpush1.msra.mxu0 %v2258
  %2453 = vmatprep.subr.mxu0 0.0
  %2454 = vmatpush1.msra.mxu0 %v2257
  %2455 = vmatprep.subr.mxu0 0.0
  %2456 = vmatpush1.msra.mxu0 %v2256
  %2457 = vmatprep.subr.mxu0 0.0
  %2458 = vmatpush1.msra.mxu0 %v2255
  %2459 = vmatprep.subr.mxu0 0.0
  %2460 = vmatpush1.msra.mxu0 %v2254
  %2461 = vmatprep.subr.mxu0 0.0
  %2462 = vmatpush1.msra.mxu0 %v2253
  %2463 = vmatprep.subr.mxu0 0.0
  %2464 = vmatpush1.msra.mxu0 %v2252
  %2465 = vmatprep.subr.mxu0 0.0
  %2466 = vmatpush1.msra.mxu0 %v2251
  %2467 = vmatprep.subr.mxu0 0.0
  %2468 = vmatpush1.msra.mxu0 %v2250
  %2469 = vmatprep.subr.mxu0 0.0
  %2470 = vmatpush1.msra.mxu0 %v2249
  %2471 = vmatprep.subr.mxu0 0.0
  %2472 = vmatpush1.msra.mxu0 %v2248
  %2473 = vmatprep.subr.mxu0 0.0
  %2474 = vmatpush1.msra.mxu0 %v2247
  %2475 = vmatprep.subr.mxu0 0.0
  %2476 = vmatpush1.msra.mxu0 %v2246
  %2477 = vmatprep.subr.mxu0 0.0
  %2478 = vmatpush1.msra.mxu0 %v2245
  %2479 = vmatprep.subr.mxu0 0.0
  %2480 = vmatpush1.msra.mxu0 %v2244
  %2481 = vmatprep.subr.mxu0 0.0
  %2482 = vmatpush2.msra.mxu0 %v2275
  %2483 = vmatprep.subr.mxu0 0.0
  %2484 = vmatpush2.msra.mxu0 %v2274
  %2485 = vmatprep.subr.mxu0 0.0
  %2486 = vmatpush2.msra.mxu0 %v2273
  %2487 = vmatprep.subr.mxu0 0.0
  %2488 = vmatpush2.msra.mxu0 %v2272
  %2489 = vmatprep.subr.mxu0 0.0
  %2490 = vmatpush2.msra.mxu0 %v2271
  %2491 = vmatprep.subr.mxu0 0.0
  %2492 = vmatpush2.msra.mxu0 %v2270
  %2493 = vmatprep.subr.mxu0 0.0
  %2494 = vmatpush2.msra.mxu0 %v2269
  %2495 = vmatprep.subr.mxu0 0.0
  %2496 = vmatpush2.msra.mxu0 %v2268
  %2497 = vmatprep.subr.mxu0 0.0
  %2498 = vmatpush2.msra.mxu0 %v2267
  %2499 = vmatprep.subr.mxu0 0.0
  %2500 = vmatpush2.msra.mxu0 %v2266
  %2501 = vmatprep.subr.mxu0 0.0
  %2502 = vmatpush2.msra.mxu0 %v2265
  %2503 = vmatprep.subr.mxu0 0.0
  %2504 = vmatpush2.msra.mxu0 %v2264
  %2505 = vmatprep.subr.mxu0 0.0
  %2506 = vmatpush2.msra.mxu0 %v2263
  %2507 = vmatprep.subr.mxu0 0.0
  %2508 = vmatpush2.msra.mxu0 %v2262
  %2509 = vmatprep.subr.mxu0 0.0
  %2510 = vmatpush2.msra.mxu0 %v2261
  %2511 = vmatprep.subr.mxu0 0.0
  %2512 = vmatpush2.msra.mxu0 %v2260
  %2513 = vmatprep.mubr.f32.mxu0 %v2225
  %2514 = vmatmul.mubr.f32.gmra.mxu0 %v2216
  %v2515 = vpop.f32.mrf.mxu0
  %v2516 = vadd.f32 0.0, %v2515
  %v2517 = vpop.f32.mrf.mxu0
  %2518 = vdwg.mxu0
  %2519 = vmatprep.subr.mxu0 0.0
  %2520 = vmatpush1.msra.mxu0 %v2291
  %2521 = vmatprep.subr.mxu0 0.0
  %2522 = vmatpush1.msra.mxu0 %v2290
  %2523 = vmatprep.subr.mxu0 0.0
  %2524 = vmatpush1.msra.mxu0 %v2289
  %2525 = vmatprep.subr.mxu0 0.0
  %2526 = vmatpush1.msra.mxu0 %v2288
  %2527 = vmatprep.subr.mxu0 0.0
  %2528 = vmatpush1.msra.mxu0 %v2287
  %2529 = vmatprep.subr.mxu0 0.0
  %2530 = vmatpush1.msra.mxu0 %v2286
  %2531 = vmatprep.subr.mxu0 0.0
  %2532 = vmatpush1.msra.mxu0 %v2285
  %2533 = vmatprep.subr.mxu0 0.0
  %2534 = vmatpush1.msra.mxu0 %v2284
  %2535 = vmatprep.subr.mxu0 0.0
  %2536 = vmatpush1.msra.mxu0 %v2283
  %2537 = vmatprep.subr.mxu0 0.0
  %2538 = vmatpush1.msra.mxu0 %v2282
  %2539 = vmatprep.subr.mxu0 0.0
  %2540 = vmatpush1.msra.mxu0 %v2281
  %2541 = vmatprep.subr.mxu0 0.0
  %2542 = vmatpush1.msra.mxu0 %v2280
  %2543 = vmatprep.subr.mxu0 0.0
  %2544 = vmatpush1.msra.mxu0 %v2279
  %2545 = vmatprep.subr.mxu0 0.0
  %2546 = vmatpush1.msra.mxu0 %v2278
  %2547 = vmatprep.subr.mxu0 0.0
  %2548 = vmatpush1.msra.mxu0 %v2277
  %2549 = vmatprep.subr.mxu0 0.0
  %2550 = vmatpush1.msra.mxu0 %v2276
  %2551 = vmatprep.subr.mxu0 0.0
  %2552 = vmatpush2.msra.mxu0 %v2307
  %2553 = vmatprep.subr.mxu0 0.0
  %2554 = vmatpush2.msra.mxu0 %v2306
  %2555 = vmatprep.subr.mxu0 0.0
  %2556 = vmatpush2.msra.mxu0 %v2305
  %2557 = vmatprep.subr.mxu0 0.0
  %2558 = vmatpush2.msra.mxu0 %v2304
  %2559 = vmatprep.subr.mxu0 0.0
  %2560 = vmatpush2.msra.mxu0 %v2303
  %2561 = vmatprep.subr.mxu0 0.0
  %2562 = vmatpush2.msra.mxu0 %v2302
  %2563 = vmatprep.subr.mxu0 0.0
  %2564 = vmatpush2.msra.mxu0 %v2301
  %2565 = vmatprep.subr.mxu0 0.0
  %2566 = vmatpush2.msra.mxu0 %v2300
  %2567 = vmatprep.subr.mxu0 0.0
  %2568 = vmatpush2.msra.mxu0 %v2299
  %2569 = vmatprep.subr.mxu0 0.0
  %2570 = vmatpush2.msra.mxu0 %v2298
  %2571 = vmatprep.subr.mxu0 0.0
  %2572 = vmatpush2.msra.mxu0 %v2297
  %2573 = vmatprep.subr.mxu0 0.0
  %2574 = vmatpush2.msra.mxu0 %v2296
  %2575 = vmatprep.subr.mxu0 0.0
  %2576 = vmatpush2.msra.mxu0 %v2295
  %2577 = vmatprep.subr.mxu0 0.0
  %2578 = vmatpush2.msra.mxu0 %v2294
  %2579 = vmatprep.subr.mxu0 0.0
  %2580 = vmatpush2.msra.mxu0 %v2293
  %2581 = vmatprep.subr.mxu0 0.0
  %2582 = vmatpush2.msra.mxu0 %v2292
  %2583 = vmatprep.mubr.f32.mxu0 %v2243
  %2584 = vmatmul.mubr.f32.gmra.mxu0 %v2234
  %v2585 = vpop.f32.mrf.mxu0
  %v2586 = vadd.f32 %v2516, %v2585
  %v2587 = vpop.f32.mrf.mxu0
  %2588 = vdwg.mxu0
  %v2589 = vmul.f32 %v2586, 0.001953125
  %v2590 = vmul.f32 %v2448, %v2448
  %v2591 = vsub.f32 %v2589, %v2590
  %v2592 = vmax.f32 %v2591, 0.0
  %v2593 = vadd.f32 %v2592, 1e-05
  %v2594 = vrsqrt.pop %v2593
  %v2595 = vld [vmem:[%s14] sm:$0x1]
  %v2596 = vmul.f32 %v2594, %v2595
  %v2597 = vld [vmem:[%s15] sm:$0x1]
  %v2598 = vmul.f32 %v2448, %v2596
  %v2599 = vsub.f32 %v2597, %v2598
  %v2600 = vld [vmem:[%s9] sm:$0xff]
  %v2601 = vld [vmem:[%s9 + $0x8] sm:$0xff]
  %v2602 = vld [vmem:[%s9 + $0x10] sm:$0xff]
  %v2603 = vld [vmem:[%s9 + $0x18] sm:$0xff]
  %v2604 = vld [vmem:[%s9 + $0x20] sm:$0xff]
  %v2605 = vld [vmem:[%s9 + $0x28] sm:$0xff]
  %v2606 = vld [vmem:[%s9 + $0x30] sm:$0xff]
  %v2607 = vld [vmem:[%s9 + $0x38] sm:$0xff]
  %v2608 = vld [vmem:[%s9 + $0x40] sm:$0xff]
  %v2609 = vld [vmem:[%s9 + $0x48] sm:$0xff]
  %v2610 = vld [vmem:[%s9 + $0x50] sm:$0xff]
  %v2611 = vld [vmem:[%s9 + $0x58] sm:$0xff]
  %v2612 = vld [vmem:[%s9 + $0x60] sm:$0xff]
  %v2613 = vld [vmem:[%s9 + $0x68] sm:$0xff]
  %v2614 = vld [vmem:[%s9 + $0x70] sm:$0xff]
  %v2615 = vld [vmem:[%s9 + $0x78] sm:$0xff]
  %v2617 = vsel %vm800, %v2596, 0
  %2619 = vmatprep.subr.mxu0 0.0
  %2620 = vmatpush1.msra.mxu0 0.0
  %2621 = vmatprep.subr.mxu0 0.0
  %2622 = vmatpush1.msra.mxu0 0.0
  %2623 = vmatprep.subr.mxu0 0.0
  %2624 = vmatpush1.msra.mxu0 0.0
  %2625 = vmatprep.subr.mxu0 0.0
  %2626 = vmatpush1.msra.mxu0 0.0
  %2627 = vmatprep.subr.mxu0 0.0
  %2628 = vmatpush1.msra.mxu0 0.0
  %2629 = vmatprep.subr.mxu0 0.0
  %2630 = vmatpush1.msra.mxu0 0.0
  %2631 = vmatprep.subr.mxu0 0.0
  %2632 = vmatpush1.msra.mxu0 0.0
  %2633 = vmatprep.subr.mxu0 0.0
  %2634 = vmatpush1.msra.mxu0 0.0
  %2635 = vmatprep.subr.mxu0 0.0
  %2636 = vmatpush1.msra.mxu0 0.0
  %2637 = vmatprep.subr.mxu0 0.0
  %2638 = vmatpush1.msra.mxu0 0.0
  %2639 = vmatprep.subr.mxu0 0.0
  %2640 = vmatpush1.msra.mxu0 0.0
  %2641 = vmatprep.subr.mxu0 0.0
  %2642 = vmatpush1.msra.mxu0 0.0
  %2643 = vmatprep.subr.mxu0 %v2613
  %2644 = vmatpush1.msra.mxu0 %v2612
  %2645 = vmatprep.subr.mxu0 %v2609
  %2646 = vmatpush1.msra.mxu0 %v2608
  %2647 = vmatprep.subr.mxu0 %v2605
  %2648 = vmatpush1.msra.mxu0 %v2604
  %2649 = vmatprep.subr.mxu0 %v2601
  %2650 = vmatpush1.msra.mxu0 %v2600
  %2651 = vmatprep.subr.mxu0 0.0
  %2652 = vmatpush2.msra.mxu0 0.0
  %2653 = vmatprep.subr.mxu0 0.0
  %2654 = vmatpush2.msra.mxu0 0.0
  %2655 = vmatprep.subr.mxu0 0.0
  %2656 = vmatpush2.msra.mxu0 0.0
  %2657 = vmatprep.subr.mxu0 0.0
  %2658 = vmatpush2.msra.mxu0 0.0
  %2659 = vmatprep.subr.mxu0 0.0
  %2660 = vmatpush2.msra.mxu0 0.0
  %2661 = vmatprep.subr.mxu0 0.0
  %2662 = vmatpush2.msra.mxu0 0.0
  %2663 = vmatprep.subr.mxu0 0.0
  %2664 = vmatpush2.msra.mxu0 0.0
  %2665 = vmatprep.subr.mxu0 0.0
  %2666 = vmatpush2.msra.mxu0 0.0
  %2667 = vmatprep.subr.mxu0 0.0
  %2668 = vmatpush2.msra.mxu0 0.0
  %2669 = vmatprep.subr.mxu0 0.0
  %2670 = vmatpush2.msra.mxu0 0.0
  %2671 = vmatprep.subr.mxu0 0.0
  %2672 = vmatpush2.msra.mxu0 0.0
  %2673 = vmatprep.subr.mxu0 0.0
  %2674 = vmatpush2.msra.mxu0 0.0
  %2675 = vmatprep.subr.mxu0 0.0
  %2676 = vmatpush2.msra.mxu0 0.0
  %2677 = vmatprep.subr.mxu0 0.0
  %2678 = vmatpush2.msra.mxu0 0.0
  %2679 = vmatprep.subr.mxu0 0.0
  %2680 = vmatpush2.msra.mxu0 0.0
  %2681 = vmatprep.subr.mxu0 0.0
  %2682 = vmatpush2.msra.mxu0 0.0
  %2683 = vmatprep.mubr.f32.mxu0 0.0
  %2684 = vmatmul.mubr.f32.gmra.mxu0 %v2617
  %v2685 = vpop.f32.mrf.mxu0
  %v2686 = vadd.f32 0.0, %v2685
  %v2687 = vpop.f32.mrf.mxu0
  %v2688 = vadd.f32 0.0, %v2687
  %2689 = vdwg.mxu0
  %2690 = vmatprep.subr.mxu0 0.0
  %2691 = vmatpush1.msra.mxu0 0.0
  %2692 = vmatprep.subr.mxu0 0.0
  %2693 = vmatpush1.msra.mxu0 0.0
  %2694 = vmatprep.subr.mxu0 0.0
  %2695 = vmatpush1.msra.mxu0 0.0
  %2696 = vmatprep.subr.mxu0 0.0
  %2697 = vmatpush1.msra.mxu0 0.0
  %2698 = vmatprep.subr.mxu0 0.0
  %2699 = vmatpush1.msra.mxu0 0.0
  %2700 = vmatprep.subr.mxu0 0.0
  %2701 = vmatpush1.msra.mxu0 0.0
  %2702 = vmatprep.subr.mxu0 0.0
  %2703 = vmatpush1.msra.mxu0 0.0
  %2704 = vmatprep.subr.mxu0 0.0
  %2705 = vmatpush1.msra.mxu0 0.0
  %2706 = vmatprep.subr.mxu0 0.0
  %2707 = vmatpush1.msra.mxu0 0.0
  %2708 = vmatprep.subr.mxu0 0.0
  %2709 = vmatpush1.msra.mxu0 0.0
  %2710 = vmatprep.subr.mxu0 0.0
  %2711 = vmatpush1.msra.mxu0 0.0
  %2712 = vmatprep.subr.mxu0 0.0
  %2713 = vmatpush1.msra.mxu0 0.0
  %2714 = vmatprep.subr.mxu0 %v2615
  %2715 = vmatpush1.msra.mxu0 %v2614
  %2716 = vmatprep.subr.mxu0 %v2611
  %2717 = vmatpush1.msra.mxu0 %v2610
  %2718 = vmatprep.subr.mxu0 %v2607
  %2719 = vmatpush1.msra.mxu0 %v2606
  %2720 = vmatprep.subr.mxu0 %v2603
  %2721 = vmatpush1.msra.mxu0 %v2602
  %2722 = vmatprep.subr.mxu0 0.0
  %2723 = vmatpush2.msra.mxu0 0.0
  %2724 = vmatprep.subr.mxu0 0.0
  %2725 = vmatpush2.msra.mxu0 0.0
  %2726 = vmatprep.subr.mxu0 0.0
  %2727 = vmatpush2.msra.mxu0 0.0
  %2728 = vmatprep.subr.mxu0 0.0
  %2729 = vmatpush2.msra.mxu0 0.0
  %2730 = vmatprep.subr.mxu0 0.0
  %2731 = vmatpush2.msra.mxu0 0.0
  %2732 = vmatprep.subr.mxu0 0.0
  %2733 = vmatpush2.msra.mxu0 0.0
  %2734 = vmatprep.subr.mxu0 0.0
  %2735 = vmatpush2.msra.mxu0 0.0
  %2736 = vmatprep.subr.mxu0 0.0
  %2737 = vmatpush2.msra.mxu0 0.0
  %2738 = vmatprep.subr.mxu0 0.0
  %2739 = vmatpush2.msra.mxu0 0.0
  %2740 = vmatprep.subr.mxu0 0.0
  %2741 = vmatpush2.msra.mxu0 0.0
  %2742 = vmatprep.subr.mxu0 0.0
  %2743 = vmatpush2.msra.mxu0 0.0
  %2744 = vmatprep.subr.mxu0 0.0
  %2745 = vmatpush2.msra.mxu0 0.0
  %2746 = vmatprep.subr.mxu0 0.0
  %2747 = vmatpush2.msra.mxu0 0.0
  %2748 = vmatprep.subr.mxu0 0.0
  %2749 = vmatpush2.msra.mxu0 0.0
  %2750 = vmatprep.subr.mxu0 0.0
  %2751 = vmatpush2.msra.mxu0 0.0
  %2752 = vmatprep.subr.mxu0 0.0
  %2753 = vmatpush2.msra.mxu0 0.0
  %2754 = vmatprep.mubr.f32.mxu0 0.0
  %2755 = vmatmul.mubr.f32.gmra.mxu0 %v2617
  %v2756 = vpop.f32.mrf.mxu0
  %v2757 = vadd.f32 0.0, %v2756
  %v2758 = vpop.f32.mrf.mxu0
  %v2759 = vadd.f32 0.0, %v2758
  %2760 = vdwg.mxu0
  %v2762 = vsel %vm800, %v2599, 0
  %2764 = vmatprep.subr.mxu0 0.0
  %2765 = vmatpush1.msra.mxu0 0.0
  %2766 = vmatprep.subr.mxu0 0.0
  %2767 = vmatpush1.msra.mxu0 0.0
  %2768 = vmatprep.subr.mxu0 0.0
  %2769 = vmatpush1.msra.mxu0 0.0
  %2770 = vmatprep.subr.mxu0 0.0
  %2771 = vmatpush1.msra.mxu0 0.0
  %2772 = vmatprep.subr.mxu0 0.0
  %2773 = vmatpush1.msra.mxu0 0.0
  %2774 = vmatprep.subr.mxu0 0.0
  %2775 = vmatpush1.msra.mxu0 0.0
  %2776 = vmatprep.subr.mxu0 0.0
  %2777 = vmatpush1.msra.mxu0 0.0
  %2778 = vmatprep.subr.mxu0 0.0
  %2779 = vmatpush1.msra.mxu0 0.0
  %2780 = vmatprep.subr.mxu0 0.0
  %2781 = vmatpush1.msra.mxu0 0.0
  %2782 = vmatprep.subr.mxu0 0.0
  %2783 = vmatpush1.msra.mxu0 0.0
  %2784 = vmatprep.subr.mxu0 0.0
  %2785 = vmatpush1.msra.mxu0 0.0
  %2786 = vmatprep.subr.mxu0 0.0
  %2787 = vmatpush1.msra.mxu0 0.0
  %2788 = vmatprep.subr.mxu0 %v2613
  %2789 = vmatpush1.msra.mxu0 %v2612
  %2790 = vmatprep.subr.mxu0 %v2609
  %2791 = vmatpush1.msra.mxu0 %v2608
  %2792 = vmatprep.subr.mxu0 %v2605
  %2793 = vmatpush1.msra.mxu0 %v2604
  %2794 = vmatprep.subr.mxu0 %v2601
  %2795 = vmatpush1.msra.mxu0 %v2600
  %2796 = vmatprep.subr.mxu0 0.0
  %2797 = vmatpush2.msra.mxu0 0.0
  %2798 = vmatprep.subr.mxu0 0.0
  %2799 = vmatpush2.msra.mxu0 0.0
  %2800 = vmatprep.subr.mxu0 0.0
  %2801 = vmatpush2.msra.mxu0 0.0
  %2802 = vmatprep.subr.mxu0 0.0
  %2803 = vmatpush2.msra.mxu0 0.0
  %2804 = vmatprep.subr.mxu0 0.0
  %2805 = vmatpush2.msra.mxu0 0.0
  %2806 = vmatprep.subr.mxu0 0.0
  %2807 = vmatpush2.msra.mxu0 0.0
  %2808 = vmatprep.subr.mxu0 0.0
  %2809 = vmatpush2.msra.mxu0 0.0
  %2810 = vmatprep.subr.mxu0 0.0
  %2811 = vmatpush2.msra.mxu0 0.0
  %2812 = vmatprep.subr.mxu0 0.0
  %2813 = vmatpush2.msra.mxu0 0.0
  %2814 = vmatprep.subr.mxu0 0.0
  %2815 = vmatpush2.msra.mxu0 0.0
  %2816 = vmatprep.subr.mxu0 0.0
  %2817 = vmatpush2.msra.mxu0 0.0
  %2818 = vmatprep.subr.mxu0 0.0
  %2819 = vmatpush2.msra.mxu0 0.0
  %2820 = vmatprep.subr.mxu0 0.0
  %2821 = vmatpush2.msra.mxu0 0.0
  %2822 = vmatprep.subr.mxu0 0.0
  %2823 = vmatpush2.msra.mxu0 0.0
  %2824 = vmatprep.subr.mxu0 0.0
  %2825 = vmatpush2.msra.mxu0 0.0
  %2826 = vmatprep.subr.mxu0 0.0
  %2827 = vmatpush2.msra.mxu0 0.0
  %2828 = vmatprep.mubr.f32.mxu0 0.0
  %2829 = vmatmul.mubr.f32.gmra.mxu0 %v2762
  %v2830 = vpop.f32.mrf.mxu0
  %v2831 = vadd.f32 0.0, %v2830
  %v2832 = vpop.f32.mrf.mxu0
  %v2833 = vadd.f32 0.0, %v2832
  %2834 = vdwg.mxu0
  %2835 = vmatprep.subr.mxu0 0.0
  %2836 = vmatpush1.msra.mxu0 0.0
  %2837 = vmatprep.subr.mxu0 0.0
  %2838 = vmatpush1.msra.mxu0 0.0
  %2839 = vmatprep.subr.mxu0 0.0
  %2840 = vmatpush1.msra.mxu0 0.0
  %2841 = vmatprep.subr.mxu0 0.0
  %2842 = vmatpush1.msra.mxu0 0.0
  %2843 = vmatprep.subr.mxu0 0.0
  %2844 = vmatpush1.msra.mxu0 0.0
  %2845 = vmatprep.subr.mxu0 0.0
  %2846 = vmatpush1.msra.mxu0 0.0
  %2847 = vmatprep.subr.mxu0 0.0
  %2848 = vmatpush1.msra.mxu0 0.0
  %2849 = vmatprep.subr.mxu0 0.0
  %2850 = vmatpush1.msra.mxu0 0.0
  %2851 = vmatprep.subr.mxu0 0.0
  %2852 = vmatpush1.msra.mxu0 0.0
  %2853 = vmatprep.subr.mxu0 0.0
  %2854 = vmatpush1.msra.mxu0 0.0
  %2855 = vmatprep.subr.mxu0 0.0
  %2856 = vmatpush1.msra.mxu0 0.0
  %2857 = vmatprep.subr.mxu0 0.0
  %2858 = vmatpush1.msra.mxu0 0.0
  %2859 = vmatprep.subr.mxu0 %v2615
  %2860 = vmatpush1.msra.mxu0 %v2614
  %2861 = vmatprep.subr.mxu0 %v2611
  %2862 = vmatpush1.msra.mxu0 %v2610
  %2863 = vmatprep.subr.mxu0 %v2607
  %2864 = vmatpush1.msra.mxu0 %v2606
  %2865 = vmatprep.subr.mxu0 %v2603
  %2866 = vmatpush1.msra.mxu0 %v2602
  %2867 = vmatprep.subr.mxu0 0.0
  %2868 = vmatpush2.msra.mxu0 0.0
  %2869 = vmatprep.subr.mxu0 0.0
  %2870 = vmatpush2.msra.mxu0 0.0
  %2871 = vmatprep.subr.mxu0 0.0
  %2872 = vmatpush2.msra.mxu0 0.0
  %2873 = vmatprep.subr.mxu0 0.0
  %2874 = vmatpush2.msra.mxu0 0.0
  %2875 = vmatprep.subr.mxu0 0.0
  %2876 = vmatpush2.msra.mxu0 0.0
  %2877 = vmatprep.subr.mxu0 0.0
  %2878 = vmatpush2.msra.mxu0 0.0
  %2879 = vmatprep.subr.mxu0 0.0
  %2880 = vmatpush2.msra.mxu0 0.0
  %2881 = vmatprep.subr.mxu0 0.0
  %2882 = vmatpush2.msra.mxu0 0.0
  %2883 = vmatprep.subr.mxu0 0.0
  %2884 = vmatpush2.msra.mxu0 0.0
  %2885 = vmatprep.subr.mxu0 0.0
  %2886 = vmatpush2.msra.mxu0 0.0
  %2887 = vmatprep.subr.mxu0 0.0
  %2888 = vmatpush2.msra.mxu0 0.0
  %2889 = vmatprep.subr.mxu0 0.0
  %2890 = vmatpush2.msra.mxu0 0.0
  %2891 = vmatprep.subr.mxu0 0.0
  %2892 = vmatpush2.msra.mxu0 0.0
  %2893 = vmatprep.subr.mxu0 0.0
  %2894 = vmatpush2.msra.mxu0 0.0
  %2895 = vmatprep.subr.mxu0 0.0
  %2896 = vmatpush2.msra.mxu0 0.0
  %2897 = vmatprep.subr.mxu0 0.0
  %2898 = vmatpush2.msra.mxu0 0.0
  %2899 = vmatprep.mubr.f32.mxu0 0.0
  %2900 = vmatmul.mubr.f32.gmra.mxu0 %v2762
  %v2901 = vpop.f32.mrf.mxu0
  %v2902 = vadd.f32 0.0, %v2901
  %v2903 = vpop.f32.mrf.mxu0
  %v2904 = vadd.f32 0.0, %v2903
  %2905 = vdwg.mxu0
  %v2906 = vlaneseq
  %v2907 = vshrl.u32 %v2906, 7
  %v2908 = vsub.s32 0, %v2907
  %v2909 = vrot.slane %v2686, %v2908
  %v2910 = vlaneseq
  %v2911 = vshrl.u32 %v2910, 7
  %v2912 = vsub.s32 0, %v2911
  %v2913 = vrot.slane %v2688, %v2912
  %v2914 = vlaneseq
  %v2915 = vshrl.u32 %v2914, 7
  %v2916 = vsub.s32 0, %v2915
  %v2917 = vrot.slane %v2757, %v2916
  %v2918 = vlaneseq
  %v2919 = vshrl.u32 %v2918, 7
  %v2920 = vsub.s32 0, %v2919
  %v2921 = vrot.slane %v2759, %v2920
  %v2922 = vmul.f32 %v2045, %v2909
  %v2923 = vmul.f32 %v2047, %v2913
  %v2924 = vmul.f32 %v2134, %v2917
  %v2925 = vmul.f32 %v2136, %v2921
  %v2926 = vmul.f32 %v2051, %v2909
  %v2927 = vmul.f32 %v2053, %v2913
  %v2928 = vmul.f32 %v2140, %v2917
  %v2929 = vmul.f32 %v2142, %v2921
  %v2930 = vmul.f32 %v2057, %v2909
  %v2931 = vmul.f32 %v2059, %v2913
  %v2932 = vmul.f32 %v2146, %v2917
  %v2933 = vmul.f32 %v2148, %v2921
  %v2934 = vmul.f32 %v2063, %v2909
  %v2935 = vmul.f32 %v2065, %v2913
  %v2936 = vmul.f32 %v2152, %v2917
  %v2937 = vmul.f32 %v2154, %v2921
  %v2938 = vlaneseq
  %v2939 = vshrl.u32 %v2938, 7
  %v2940 = vsub.s32 0, %v2939
  %v2941 = vrot.slane %v2831, %v2940
  %v2942 = vlaneseq
  %v2943 = vshrl.u32 %v2942, 7
  %v2944 = vsub.s32 0, %v2943
  %v2945 = vrot.slane %v2833, %v2944
  %v2946 = vlaneseq
  %v2947 = vshrl.u32 %v2946, 7
  %v2948 = vsub.s32 0, %v2947
  %v2949 = vrot.slane %v2902, %v2948
  %v2950 = vlaneseq
  %v2951 = vshrl.u32 %v2950, 7
  %v2952 = vsub.s32 0, %v2951
  %v2953 = vrot.slane %v2904, %v2952
  %v2954 = vadd.f32 %v2922, %v2941
  %v2955 = vadd.f32 %v2923, %v2945
  %v2956 = vadd.f32 %v2924, %v2949
  %v2957 = vadd.f32 %v2925, %v2953
  %v2958 = vadd.f32 %v2926, %v2941
  %v2959 = vadd.f32 %v2927, %v2945
  %v2960 = vadd.f32 %v2928, %v2949
  %v2961 = vadd.f32 %v2929, %v2953
  %v2962 = vadd.f32 %v2930, %v2941
  %v2963 = vadd.f32 %v2931, %v2945
  %v2964 = vadd.f32 %v2932, %v2949
  %v2965 = vadd.f32 %v2933, %v2953
  %v2966 = vadd.f32 %v2934, %v2941
  %v2967 = vadd.f32 %v2935, %v2945
  %v2968 = vadd.f32 %v2936, %v2949
  %v2969 = vadd.f32 %v2937, %v2953
  %v2970 = vadd.f32 %v2954, %v53
  %v2971 = vadd.f32 %v2955, %v54
  %v2972 = vadd.f32 %v2956, %v55
  %v2973 = vadd.f32 %v2957, %v56
  %v2974 = vadd.f32 %v2958, %v57
  %v2975 = vadd.f32 %v2959, %v58
  %v2976 = vadd.f32 %v2960, %v59
  %v2977 = vadd.f32 %v2961, %v60
  %v2978 = vadd.f32 %v2962, %v61
  %v2979 = vadd.f32 %v2963, %v62
  %v2980 = vadd.f32 %v2964, %v63
  %v2981 = vadd.f32 %v2965, %v64
  %v2982 = vadd.f32 %v2966, %v65
  %v2983 = vadd.f32 %v2967, %v66
  %v2984 = vadd.f32 %v2968, %v67
  %v2985 = vadd.f32 %v2969, %v68
  %v2986 = vmax.f32 %v2970, 0.0
  %v2987 = vmax.f32 %v2971, 0.0
  %v2988 = vmax.f32 %v2972, 0.0
  %v2989 = vmax.f32 %v2973, 0.0
  %v2990 = vmax.f32 %v2974, 0.0
  %v2991 = vmax.f32 %v2975, 0.0
  %v2992 = vmax.f32 %v2976, 0.0
  %v2993 = vmax.f32 %v2977, 0.0
  %v2994 = vmax.f32 %v2978, 0.0
  %v2995 = vmax.f32 %v2979, 0.0
  %v2996 = vmax.f32 %v2980, 0.0
  %v2997 = vmax.f32 %v2981, 0.0
  %v2998 = vmax.f32 %v2982, 0.0
  %v2999 = vmax.f32 %v2983, 0.0
  %v3000 = vmax.f32 %v2984, 0.0
  %v3001 = vmax.f32 %v2985, 0.0
  %3002 = vst [vmem:[%s16] sm:$0xff] %v2986
  %3003 = vst [vmem:[%s16 + $0x8] sm:$0xff] %v2987
  %3004 = vst [vmem:[%s16 + $0x10] sm:$0xff] %v2988
  %3005 = vst [vmem:[%s16 + $0x18] sm:$0xff] %v2989
  %3006 = vst [vmem:[%s16 + $0x20] sm:$0xff] %v2990
  %3007 = vst [vmem:[%s16 + $0x28] sm:$0xff] %v2991
  %3008 = vst [vmem:[%s16 + $0x30] sm:$0xff] %v2992
  %3009 = vst [vmem:[%s16 + $0x38] sm:$0xff] %v2993
  %3010 = vst [vmem:[%s16 + $0x40] sm:$0xff] %v2994
  %3011 = vst [vmem:[%s16 + $0x48] sm:$0xff] %v2995
  %3012 = vst [vmem:[%s16 + $0x50] sm:$0xff] %v2996
  %3013 = vst [vmem:[%s16 + $0x58] sm:$0xff] %v2997
  %3014 = vst [vmem:[%s16 + $0x60] sm:$0xff] %v2998
  %3015 = vst [vmem:[%s16 + $0x68] sm:$0xff] %v2999
  %3016 = vst [vmem:[%s16 + $0x70] sm:$0xff] %v3000
  %3017 = vst [vmem:[%s16 + $0x78] sm:$0xff] %v3001
  // Predicated region
  $region66: #{bottleneck_forward.1} parent=0 // pred_check
    _
  $region67: #{bottleneck_forward.1} parent=0 // pred_check_branch
    %3019 = sbr.rel (0) target = $region69
  $region68: #{bottleneck_forward.1} parent=0 // pred_region
    _
  $region69: #{bottleneck_forward.1} parent=0 // pred_fallthru
    _
  // Predicated region
  $region70: #{bottleneck_forward.1} parent=0 // pred_check
    _
  $region71: #{bottleneck_forward.1} parent=0 // pred_check_branch
    %3021 = sbr.rel (0) target = $region73
  $region72: #{bottleneck_forward.1} parent=0 // pred_region
    _
  $region73: #{bottleneck_forward.1} parent=0 // pred_fallthru
    _

</llo_original>
